<compile_context>
chip_gen: v7x
topology: tpu7x:2x2x1
jax: 0.10.0
libtpu: 0.0.40
codegen_flags: <defaults>
</compile_context>

<pallas_src>
import functools

import jax
import jax.numpy as jnp
from jax import lax
from jax.experimental import pallas as pl
from jax.experimental.pallas import tpu as pltpu

_LANE = 128
_SUBLANE = 8
_HIGHEST = jax.lax.Precision.HIGHEST


def _detect_budgets():
    """Per-chip tile / scoped-VMEM budgets (v5e/v6e: 128 MiB VMEM, v7x: 64 MiB)."""
    tile_bytes = 6 * 1024 * 1024
    vmem_limit = 48 * 1024 * 1024
    try:
        info = pltpu.get_tpu_info()
        vmem = getattr(info, "vmem_capacity_bytes", None)
        if vmem is not None and vmem >= 100 * 1024 * 1024:
            tile_bytes = 14 * 1024 * 1024
            vmem_limit = 100 * 1024 * 1024
    except Exception:
        pass
    return tile_bytes, vmem_limit


_TILE_BYTES, _VMEM_LIMIT = _detect_budgets()


def _round_up(x, m):
    return (x + m - 1) // m * m


def _largest_divisor_tile(total, cap):
    """Largest multiple of 8 that divides `total` (itself a multiple of 8) and is <= cap."""
    cap = max(_SUBLANE, min(cap, total))
    cap = (cap // _SUBLANE) * _SUBLANE
    t = cap
    while t > _SUBLANE:
        if total % t == 0:
            return t
        t -= _SUBLANE
    return _SUBLANE


def _choose_row_tile(rows, k_cols, itemsize):
    budget_rows = max(_SUBLANE, _TILE_BYTES // max(1, k_cols * itemsize))
    return _largest_divisor_tile(rows, min(512, budget_rows))


def _choose_col_tile(n, k, itemsize):
    """Lane-dense output-column tile that divides n and keeps the (k, tn) weight slab budgeted."""
    if n % _LANE != 0:
        return n  # full extent (legal block shape)
    budget_cols = max(_LANE, _TILE_BYTES // max(1, k * itemsize))
    cap = min(n, 512, (budget_cols // _LANE) * _LANE)
    tn = max(_LANE, (cap // _LANE) * _LANE)
    while tn > _LANE and n % tn != 0:
        tn -= _LANE
    return tn


# ---------------------------------------------------------------------------
# Kernel 1: fused LayerNorm + matmul (+ optional GELU)
# ---------------------------------------------------------------------------
def _ln_matmul_kernel(x_ref, g_ref, w_ref, o_ref, xn_ref, *, eps, activation):
    # x_ref: (tm, K) f32 rows; g_ref: (1, K) f32 LN weight; w_ref: (K, tn) bf16;
    # o_ref: (tm, tn) bf16; xn_ref: bf16 VMEM scratch (tm, K) of normalized rows,
    # computed once per row tile (column axis is the innermost, sequential grid axis).
    @pl.when(pl.program_id(1) == 0)
    def _():
        x = x_ref[...].astype(jnp.float32)
        mean = jnp.mean(x, axis=-1, keepdims=True)
        xc = x - mean
        var = jnp.mean(xc * xc, axis=-1, keepdims=True)   # two-pass variance (stable)
        inv = lax.rsqrt(var + eps)
        xn_ref[...] = (xc * inv * g_ref[...].astype(jnp.float32)).astype(xn_ref.dtype)

    acc = jnp.dot(xn_ref[...], w_ref[...], preferred_element_type=jnp.float32)
    if activation == "gelu":
        # TODO(synk): PyTorch nn.GELU() is exact erf-GELU; tanh-form used here (and in the
        # in-script reference) since erf lowering inside Mosaic is not guaranteed.
        acc = jax.nn.gelu(acc, approximate=True)
    o_ref[...] = acc.astype(o_ref.dtype)


def ln_matmul(x2, gamma, w, *, eps=1e-6, activation=None):
    """Compute LayerNorm(x2, gamma) @ w.  x2: (rows, K) f32, gamma: (K,) f32, w: (K, N) bf16."""
    rows, K = x2.shape
    N = w.shape[1]
    tm = _choose_row_tile(rows, K, 4)      # f32 input row slab
    tn = _choose_col_tile(N, K, 2)         # bf16 weight slab
    grid = (rows // tm, N // tn)

    return pl.pallas_call(
        functools.partial(_ln_matmul_kernel, eps=eps, activation=activation),
        out_shape=jax.ShapeDtypeStruct((rows, N), jnp.bfloat16),
        grid_spec=pltpu.PrefetchScalarGridSpec(
            num_scalar_prefetch=0,
            grid=grid,
            in_specs=[
                pl.BlockSpec((tm, K), lambda i, j: (i, 0)),
                pl.BlockSpec((1, K), lambda i, j: (0, 0)),
                pl.BlockSpec((K, tn), lambda i, j: (0, j)),
            ],
            out_specs=pl.BlockSpec((tm, tn), lambda i, j: (i, j)),
            scratch_shapes=[pltpu.VMEM((tm, K), jnp.bfloat16)],
        ),
        compiler_params=pltpu.CompilerParams(
            dimension_semantics=("parallel", "arbitrary"),
            vmem_limit_bytes=_VMEM_LIMIT,
        ),
    )(x2, gamma.reshape(1, K).astype(jnp.float32), w)


# ---------------------------------------------------------------------------
# Kernel 2: matmul with fused residual add
# ---------------------------------------------------------------------------
def _matmul_residual_kernel(x_ref, w_ref, r_ref, o_ref):
    acc = jnp.dot(x_ref[...], w_ref[...], preferred_element_type=jnp.float32)
    o_ref[...] = (r_ref[...].astype(jnp.float32) + acc).astype(o_ref.dtype)


def matmul_residual(x2, w, r2):
    """Compute r2 + x2 @ w.  x2: (rows, K) bf16, w: (K, N) bf16, r2: (rows, N) f32."""
    rows, K = x2.shape
    N = w.shape[1]
    tm = _choose_row_tile(rows, K, 2)      # tm from K only (bf16 LHS slab)
    tn = _choose_col_tile(N, K, 2)
    grid = (rows // tm, N // tn)

    return pl.pallas_call(
        _matmul_residual_kernel,
        out_shape=jax.ShapeDtypeStruct((rows, N), r2.dtype),
        grid_spec=pltpu.PrefetchScalarGridSpec(
            num_scalar_prefetch=0,
            grid=grid,
            in_specs=[
                pl.BlockSpec((tm, K), lambda i, j: (i, 0)),
                pl.BlockSpec((K, tn), lambda i, j: (0, j)),
                pl.BlockSpec((tm, tn), lambda i, j: (i, j)),
            ],
            out_specs=pl.BlockSpec((tm, tn), lambda i, j: (i, j)),
        ),
        compiler_params=pltpu.CompilerParams(
            dimension_semantics=("parallel", "parallel"),
            vmem_limit_bytes=_VMEM_LIMIT,
        ),
    )(x2, w, r2)


# ---------------------------------------------------------------------------
# Kernel 3: attention core (heads looped in-kernel, lane-dense (tq, D) output)
# ---------------------------------------------------------------------------
def _mha_head(q, k, v, bias, scale):
    # q: (tq, hd) bf16, k/v: (Lk, hd) bf16, bias: (tq, Lk) f32 additive (0 or -1e30)
    s = lax.dot_general(q, k, (((1,), (1,)), ((), ())),
                        preferred_element_type=jnp.float32)
    s = s * scale + bias
    m = jnp.max(s, axis=-1, keepdims=True)
    p = jnp.exp(s - m)
    denom = jnp.sum(p, axis=-1, keepdims=True)
    o = jnp.dot(p.astype(v.dtype), v, preferred_element_type=jnp.float32)
    return o * pl.reciprocal(denom, approx=True)


def _self_attn_kernel(qkv_ref, bias_ref, o_ref, *, num_heads, head_dim, scale, tq):
    # qkv_ref: (Lk, 3*D) bf16 (resident per batch); bias_ref: (tq, Lk) bf16; o_ref: (tq, D) bf16
    # TODO(synk): for very long sequences, switch to flash-style Lk tiling with an
    # online-softmax accumulator instead of holding the full per-batch K/V block in VMEM.
    D = num_heads * head_dim
    row0 = pl.multiple_of(pl.program_id(1) * tq, 8)
    bias = bias_ref[...].astype(jnp.float32)
    for h in range(num_heads):
        c = h * head_dim
        q = qkv_ref[pl.ds(row0, tq), c:c + head_dim]
        k = qkv_ref[:, D + c:D + c + head_dim]
        v = qkv_ref[:, 2 * D + c:2 * D + c + head_dim]
        o = _mha_head(q, k, v, bias, scale)
        o_ref[:, c:c + head_dim] = o.astype(o_ref.dtype)


def _cross_attn_kernel(q_ref, kv_ref, bias_ref, o_ref, *, num_heads, head_dim, scale):
    # q_ref: (tq, D) bf16; kv_ref: (Mk, 2*D) bf16 (resident per batch); bias_ref: (tq, Mk) bf16
    D = num_heads * head_dim
    bias = bias_ref[...].astype(jnp.float32)
    for h in range(num_heads):
        c = h * head_dim
        q = q_ref[:, c:c + head_dim]
        k = kv_ref[:, c:c + head_dim]
        v = kv_ref[:, D + c:D + c + head_dim]
        o = _mha_head(q, k, v, bias, scale)
        o_ref[:, c:c + head_dim] = o.astype(o_ref.dtype)


def self_attention(qkv_bld, bias, *, num_heads, head_dim):
    """qkv_bld: (B, Lp, 3*D) bf16 fused projection output, bias: (B, Lp, Lp) bf16 additive."""
    B, Lp, threeD = qkv_bld.shape
    D = num_heads * head_dim
    tq = _largest_divisor_tile(Lp, 256)
    grid = (B, Lp // tq)
    return pl.pallas_call(
        functools.partial(_self_attn_kernel, num_heads=num_heads, head_dim=head_dim,
                          scale=head_dim ** -0.5, tq=tq),
        out_shape=jax.ShapeDtypeStruct((B, Lp, D), jnp.bfloat16),
        grid_spec=pltpu.PrefetchScalarGridSpec(
            num_scalar_prefetch=0,
            grid=grid,
            in_specs=[
                pl.BlockSpec((None, Lp, threeD), lambda b, i: (b, 0, 0)),
                pl.BlockSpec((None, tq, Lp), lambda b, i: (b, i, 0)),
            ],
            out_specs=pl.BlockSpec((None, tq, D), lambda b, i: (b, i, 0)),
        ),
        compiler_params=pltpu.CompilerParams(
            dimension_semantics=("parallel", "arbitrary"),
            vmem_limit_bytes=_VMEM_LIMIT,
        ),
    )(qkv_bld, bias)


def cross_attention(q_bld, kv_bmd, bias, *, num_heads, head_dim):
    """q_bld: (B, Lp, D) bf16, kv_bmd: (B, Mp, 2*D) bf16, bias: (B, Lp, Mp) bf16 additive."""
    B, Lp, D = q_bld.shape
    Mp, twoD = kv_bmd.shape[1], kv_bmd.shape[2]
    tq = _largest_divisor_tile(Lp, 256)
    grid = (B, Lp // tq)
    return pl.pallas_call(
        functools.partial(_cross_attn_kernel, num_heads=num_heads, head_dim=head_dim,
                          scale=head_dim ** -0.5),
        out_shape=jax.ShapeDtypeStruct((B, Lp, D), jnp.bfloat16),
        grid_spec=pltpu.PrefetchScalarGridSpec(
            num_scalar_prefetch=0,
            grid=grid,
            in_specs=[
                pl.BlockSpec((None, tq, D), lambda b, i: (b, i, 0)),
                pl.BlockSpec((None, Mp, twoD), lambda b, i: (b, 0, 0)),
                pl.BlockSpec((None, tq, Mp), lambda b, i: (b, i, 0)),
            ],
            out_specs=pl.BlockSpec((None, tq, D), lambda b, i: (b, i, 0)),
        ),
        compiler_params=pltpu.CompilerParams(
            dimension_semantics=("parallel", "arbitrary"),
            vmem_limit_bytes=_VMEM_LIMIT,
        ),
    )(q_bld, kv_bmd, bias)


# ---------------------------------------------------------------------------
# DecoderBlock / TransformerDecoderTrunk forward (composition of the kernels)
# ---------------------------------------------------------------------------
def _mask_to_bias(mask, B, n, m, n_p, m_p):
    """Padded additive bias (0 / -1e30) in bf16 (half the mask DMA of an f32 bias)."""
    if mask is None:
        mask = jnp.ones((B, n, m), dtype=bool)
    mask = mask.astype(bool)
    if (n_p, m_p) != (n, m):
        mask = jnp.pad(mask, ((0, 0), (0, n_p - n), (0, m_p - m)), constant_values=False)
    return jnp.where(mask, 0.0, -1e30).astype(jnp.bfloat16)


def _prep_block_params(p):
    """Cast weight matrices to bf16 (native MXU dtype); LN gains stay f32."""
    out = {}
    for k, v in p.items():
        out[k] = v.astype(jnp.bfloat16) if k.startswith("w_") else v.astype(jnp.float32)
    return out


def decoder_block_forward(x2, ctx2, p, sa_bias, xa_bias, *, B, Lp, Mp,
                          num_heads, head_dim, eps):
    D = num_heads * head_dim

    # --- self-attention: x = x + attn_out_proj(SA(norm1(x))) ---
    qkv = ln_matmul(x2, p["ln1_g"], p["w_qkv"], eps=eps)                 # (B*Lp, 3*D) bf16
    a = self_attention(qkv.reshape(B, Lp, 3 * D), sa_bias,
                       num_heads=num_heads, head_dim=head_dim)           # (B, Lp, D) bf16
    x2 = matmul_residual(a.reshape(B * Lp, D), p["w_attn_out"], x2)      # f32 residual stream

    # --- cross-attention: x = x + attn_out_proj(XA(query_norm(x), context_norm(ctx))) ---
    q = ln_matmul(x2, p["ln_q_g"], p["w_q"], eps=eps)                    # (B*Lp, D) bf16
    kv = ln_matmul(ctx2, p["ln_ctx_g"], p["w_kv"], eps=eps)              # (B*Mp, 2*D) bf16
    a = cross_attention(q.reshape(B, Lp, D), kv.reshape(B, Mp, 2 * D), xa_bias,
                        num_heads=num_heads, head_dim=head_dim)          # (B, Lp, D) bf16
    x2 = matmul_residual(a.reshape(B * Lp, D), p["w_xattn_out"], x2)

    # --- MLP: x = x + fc2(gelu(fc1(norm2(x)))) ---
    h = ln_matmul(x2, p["ln2_g"], p["w_fc1"], eps=eps, activation="gelu")
    x2 = matmul_residual(h, p["w_fc2"], x2)
    return x2


def decoder_trunk_forward(x, context, blocks, sa_mask=None, xa_mask=None, *,
                          num_heads, head_dim, eps=1e-6):
    B, L, D = x.shape
    M = context.shape[1]
    Lp = _round_up(L, _SUBLANE)
    Mp = _round_up(M, _SUBLANE)

    # Pad once at trunk entry (padded rows are zeros -> benign through LN/matmul/attention).
    if Lp != L:
        x = jnp.pad(x, ((0, 0), (0, Lp - L), (0, 0)))
    if Mp != M:
        context = jnp.pad(context, ((0, 0), (0, Mp - M), (0, 0)))
    sa_bias = _mask_to_bias(sa_mask, B, L, L, Lp, Lp)
    xa_bias = _mask_to_bias(xa_mask, B, L, M, Lp, Mp)

    x2 = x.astype(jnp.float32).reshape(B * Lp, D)
    ctx2 = context.astype(jnp.float32).reshape(B * Mp, D)
    for p in blocks:
        pb = _prep_block_params(p)
        x2 = decoder_block_forward(x2, ctx2, pb, sa_bias, xa_bias, B=B, Lp=Lp, Mp=Mp,
                                   num_heads=num_heads, head_dim=head_dim, eps=eps)
    out = x2.reshape(B, Lp, D)
    if Lp != L:
        out = out[:, :L, :]
    return out


# ---------------------------------------------------------------------------
# Pure-JAX reference (mirrors the PyTorch module math; GELU tanh-form, see TODO above)
# ---------------------------------------------------------------------------
def _ref_layer_norm(x, g, eps):
    mu = jnp.mean(x, axis=-1, keepdims=True)
    var = jnp.mean((x - mu) ** 2, axis=-1, keepdims=True)
    return (x - mu) * lax.rsqrt(var + eps) * g


def _ref_attention(q, k, v, mask, scale):
    s = jnp.einsum("bhld,bhmd->bhlm", q, k, precision=_HIGHEST) * scale
    if mask is not None:
        s = jnp.where(mask[:, None, :, :], s, -jnp.inf)
    p = jax.nn.softmax(s, axis=-1)
    return jnp.einsum("bhlm,bhmd->bhld", p, v, precision=_HIGHEST)


def _ref_block(x, context, p, sa_mask, xa_mask, num_heads, head_dim, eps):
    B, L, D = x.shape
    M = context.shape[1]
    scale = head_dim ** -0.5
    mm = functools.partial(jnp.matmul, precision=_HIGHEST)

    xn = _ref_layer_norm(x, p["ln1_g"], eps)
    qkv = mm(xn, p["w_qkv"]).reshape(B, L, 3, num_heads, head_dim).transpose(2, 0, 3, 1, 4)
    a = _ref_attention(qkv[0], qkv[1], qkv[2], sa_mask, scale)
    x = x + mm(a.transpose(0, 2, 1, 3).reshape(B, L, D), p["w_attn_out"])

    xq = _ref_layer_norm(x, p["ln_q_g"], eps)
    cn = _ref_layer_norm(context, p["ln_ctx_g"], eps)
    q = mm(xq, p["w_q"]).reshape(B, L, num_heads, head_dim).transpose(0, 2, 1, 3)
    kv = mm(cn, p["w_kv"]).reshape(B, M, 2, num_heads, head_dim).transpose(2, 0, 3, 1, 4)
    a = _ref_attention(q, kv[0], kv[1], xa_mask, scale)
    x = x + mm(a.transpose(0, 2, 1, 3).reshape(B, L, D), p["w_xattn_out"])

    xn = _ref_layer_norm(x, p["ln2_g"], eps)
    h = jax.nn.gelu(mm(xn, p["w_fc1"]), approximate=True)
    x = x + mm(h, p["w_fc2"])
    return x


def init_trunk_params(key, dim, depth, head_dim, mlp_ratio):
    num_heads = dim // head_dim
    hidden = int(dim * mlp_ratio)
    blocks = []
    for _ in range(depth):
        key, k1, k2, k3, k4, k5, k6, k7, k8, k9, k10, k11 = jax.random.split(key, 12)
        blocks.append(dict(
            ln1_g=1.0 + 0.1 * jax.random.normal(k1, (dim,), jnp.float32),
            ln_q_g=1.0 + 0.1 * jax.random.normal(k2, (dim,), jnp.float32),
            ln_ctx_g=1.0 + 0.1 * jax.random.normal(k3, (dim,), jnp.float32),
            ln2_g=1.0 + 0.1 * jax.random.normal(k4, (dim,), jnp.float32),
            # weights stored as (in_features, out_features), i.e. torch_weight.T
            w_qkv=0.02 * jax.random.normal(k5, (dim, 3 * num_heads * head_dim), jnp.float32),
            w_attn_out=0.02 * jax.random.normal(k6, (dim, dim), jnp.float32),
            w_q=0.02 * jax.random.normal(k7, (dim, num_heads * head_dim), jnp.float32),
            w_kv=0.02 * jax.random.normal(k8, (dim, 2 * num_heads * head_dim), jnp.float32),
            w_xattn_out=0.02 * jax.random.normal(k9, (dim, dim), jnp.float32),
            w_fc1=0.02 * jax.random.normal(k10, (dim, hidden), jnp.float32),
            w_fc2=0.02 * jax.random.normal(k11, (hidden, dim), jnp.float32),
        ))
    return blocks


if __name__ == "__main__":
    key = jax.random.PRNGKey(0)
    batch, seq, ctx_len = 2, 8, 16
    dim, head_dim, depth, mlp_ratio = 128, 64, 2, 4.0
    num_heads = dim // head_dim
    eps = 1e-6  # matches the module's LayerNorm(eps=1e-06)

    key, kx, kc, km = jax.random.split(key, 4)
    params = init_trunk_params(key, dim, depth, head_dim, mlp_ratio)
    x = jax.random.normal(kx, (batch, seq, dim), jnp.float32)
    context = jax.random.normal(kc, (batch, ctx_len, dim), jnp.float32)
    # Causal self-attention mask; random cross-attention mask (first key always visible).
    sa_mask = jnp.broadcast_to(jnp.tril(jnp.ones((seq, seq), bool)), (batch, seq, seq))
    xa_mask = jax.random.bernoulli(km, 0.7, (batch, seq, ctx_len)).at[:, :, 0].set(True)

    fwd = jax.jit(functools.partial(decoder_trunk_forward,
                                    num_heads=num_heads, head_dim=head_dim, eps=eps))
    y = fwd(x, context, params, sa_mask, xa_mask)
    y = jax.block_until_ready(y)

    ref = x
    for p in params:
        ref = _ref_block(ref, context, p, sa_mask, xa_mask, num_heads, head_dim, eps)

    assert y.shape == (batch, seq, dim)
    max_err = float(jnp.max(jnp.abs(y - ref)))
    # bf16 MXU operands + approx reciprocal -> compare to the f32 reference at a loose tolerance.
    assert jnp.allclose(y, ref, atol=3e-2, rtol=3e-2), f"mismatch vs reference, max |err|={max_err}"

    print("KERNEL_OK")
</pallas_src>

<mosaic_0001>
module attributes {stable_mosaic.version = 11 : i64} {
  func.func @_ln_matmul_kernel(%arg0: i32, %arg1: i32, %arg2: memref<16x128xf32, #tpu.memory_space<vmem>>, %arg3: memref<1x128xf32, #tpu.memory_space<vmem>>, %arg4: memref<128x384xbf16, #tpu.memory_space<vmem>>, %arg5: memref<16x384xbf16, #tpu.memory_space<vmem>>, %arg6: memref<16x128xbf16, #tpu.memory_space<vmem>>) attributes {dimension_semantics = [#tpu.dimension_semantics<parallel>, #tpu.dimension_semantics<arbitrary>], iteration_bounds = array<i64: 1, 1>, scalar_prefetch = 0 : i64, scratch_operands = 1 : i64, tpu.core_type = #tpu.core_type<tc>, window_params = [{transform_indices = @transform_0, window_bounds = array<i64: 16, 128>}, {pipeline_mode = #tpu.pipeline_mode<synchronous>, transform_indices = @transform_1, window_bounds = array<i64: 1, 128>}, {transform_indices = @transform_2, window_bounds = array<i64: 128, 384>}, {transform_indices = @transform_3, window_bounds = array<i64: 16, 384>}]} {
    %c0_i32 = arith.constant 0 : i32
    %0 = arith.cmpi eq, %arg1, %c0_i32 : i32
    %1 = arith.extui %0 : i1 to i32
    %c0_i32_0 = arith.constant 0 : i32
    %2 = arith.cmpi ne, %1, %c0_i32_0 : i32
    scf.if %2 {
      %c0_6 = arith.constant 0 : index
      %c0_7 = arith.constant 0 : index
      %8 = vector.load %arg2[%c0_6, %c0_7] : memref<16x128xf32, #tpu.memory_space<vmem>>, vector<16x128xf32>
      %cst_8 = arith.constant dense<0.000000e+00> : vector<16xf32>
      %9 = vector.multi_reduction <add>, %8, %cst_8 [1] : vector<16x128xf32> to vector<16xf32>
      %10 = vector.shape_cast %9 : vector<16xf32> to vector<16x1xf32>
      %cst_9 = arith.constant 1.280000e+02 : f32
      %11 = vector.broadcast %cst_9 : f32 to vector<16x1xf32>
      %12 = arith.divf %10, %11 : vector<16x1xf32>
      %13 = vector.broadcast %12 : vector<16x1xf32> to vector<16x128xf32>
      %14 = arith.subf %8, %13 : vector<16x128xf32>
      %15 = arith.mulf %14, %14 : vector<16x128xf32>
      %cst_10 = arith.constant dense<0.000000e+00> : vector<16xf32>
      %16 = vector.multi_reduction <add>, %15, %cst_10 [1] : vector<16x128xf32> to vector<16xf32>
      %17 = vector.shape_cast %16 : vector<16xf32> to vector<16x1xf32>
      %cst_11 = arith.constant 1.280000e+02 : f32
      %18 = vector.broadcast %cst_11 : f32 to vector<16x1xf32>
      %19 = arith.divf %17, %18 : vector<16x1xf32>
      %cst_12 = arith.constant 9.99999997E-7 : f32
      %20 = vector.broadcast %cst_12 : f32 to vector<16x1xf32>
      %21 = arith.addf %19, %20 : vector<16x1xf32>
      %22 = math.rsqrt %21 : vector<16x1xf32>
      %23 = vector.broadcast %22 : vector<16x1xf32> to vector<16x128xf32>
      %24 = arith.mulf %14, %23 : vector<16x128xf32>
      %c0_13 = arith.constant 0 : index
      %c0_14 = arith.constant 0 : index
      %25 = vector.load %arg3[%c0_13, %c0_14] : memref<1x128xf32, #tpu.memory_space<vmem>>, vector<1x128xf32>
      %26 = vector.broadcast %25 : vector<1x128xf32> to vector<16x128xf32>
      %27 = arith.mulf %24, %26 : vector<16x128xf32>
      %28 = arith.truncf %27 : vector<16x128xf32> to vector<16x128xbf16>
      %c0_15 = arith.constant 0 : index
      %c0_16 = arith.constant 0 : index
      %29 = vector.load %arg6[%c0_15, %c0_16] : memref<16x128xbf16, #tpu.memory_space<vmem>>, vector<16x128xbf16>
      tpu.vector_store %arg6[%c0_15, %c0_16], %28 {strides = array<i32>} : memref<16x128xbf16, #tpu.memory_space<vmem>>, vector<16x128xbf16>,
    } else {
    }
    %c0 = arith.constant 0 : index
    %c0_1 = arith.constant 0 : index
    %3 = vector.load %arg6[%c0, %c0_1] : memref<16x128xbf16, #tpu.memory_space<vmem>>, vector<16x128xbf16>
    %c0_2 = arith.constant 0 : index
    %c0_3 = arith.constant 0 : index
    %4 = vector.load %arg4[%c0_2, %c0_3] : memref<128x384xbf16, #tpu.memory_space<vmem>>, vector<128x384xbf16>
    %cst = arith.constant dense<0.000000e+00> : vector<16x384xf32>
    %5 = tpu.matmul %3, %4, %cst {dimension_numbers = #tpu.dot_dimension_numbers<[1], [0], [0], [1], [0, 0, 1, 1], [], []>} : vector<16x128xbf16>, vector<128x384xbf16>, vector<16x384xf32> -> vector<16x384xf32>
    %6 = arith.truncf %5 : vector<16x384xf32> to vector<16x384xbf16>
    %c0_4 = arith.constant 0 : index
    %c0_5 = arith.constant 0 : index
    %7 = vector.load %arg5[%c0_4, %c0_5] : memref<16x384xbf16, #tpu.memory_space<vmem>>, vector<16x384xbf16>
    tpu.vector_store %arg5[%c0_4, %c0_5], %6 {strides = array<i32>} : memref<16x384xbf16, #tpu.memory_space<vmem>>, vector<16x384xbf16>,
    return
  }
  func.func @transform_0(%arg0: i32, %arg1: i32) -> (i32, i32) {
    %c0_i32 = arith.constant 0 : i32
    %c0_i32_0 = arith.constant 0 : i32
    return %arg0, %c0_i32 : i32, i32
  }
  func.func @transform_1(%arg0: i32, %arg1: i32) -> (i32, i32) {
    %c0_i32 = arith.constant 0 : i32
    %c0_i32_0 = arith.constant 0 : i32
    %c0_i32_1 = arith.constant 0 : i32
    return %c0_i32, %c0_i32_0 : i32, i32
  }
  func.func @transform_2(%arg0: i32, %arg1: i32) -> (i32, i32) {
    %c0_i32 = arith.constant 0 : i32
    %c0_i32_0 = arith.constant 0 : i32
    return %c0_i32, %arg1 : i32, i32
  }
  func.func @transform_3(%arg0: i32, %arg1: i32) -> (i32, i32) {
    %c0_i32 = arith.constant 0 : i32
    return %arg0, %arg1 : i32, i32
  }
}

module attributes {stable_mosaic.version = 11 : i64} {
  func.func @_self_attn_kernel(%arg0: i32, %arg1: i32, %arg2: memref<1x8x384xbf16, #tpu.memory_space<vmem>>, %arg3: memref<1x8x8xbf16, #tpu.memory_space<vmem>>, %arg4: memref<1x8x128xbf16, #tpu.memory_space<vmem>>) attributes {dimension_semantics = [#tpu.dimension_semantics<parallel>, #tpu.dimension_semantics<arbitrary>], iteration_bounds = array<i64: 2, 1>, scalar_prefetch = 0 : i64, scratch_operands = 0 : i64, tpu.core_type = #tpu.core_type<tc>, window_params = [{transform_indices = @transform_0, window_bounds = array<i64: 1, 8, 384>}, {transform_indices = @transform_1, window_bounds = array<i64: 1, 8, 8>}, {transform_indices = @transform_2, window_bounds = array<i64: 1, 8, 128>}]} {
    %c8_i32 = arith.constant 8 : i32
    %0 = arith.muli %arg1, %c8_i32 : i32
    %1 = tpu.assume_multiple %0, 8 : i32
    %c0 = arith.constant 0 : index
    %c0_0 = arith.constant 0 : index
    %c0_1 = arith.constant 0 : index
    %2 = vector.load %arg3[%c0, %c0_0, %c0_1] : memref<1x8x8xbf16, #tpu.memory_space<vmem>>, vector<1x8x8xbf16>
    %3 = vector.shape_cast %2 : vector<1x8x8xbf16> to vector<8x8xbf16>
    %4 = arith.extf %3 : vector<8x8xbf16> to vector<8x8xf32>
    %c0_2 = arith.constant 0 : index
    %5 = arith.index_cast %1 : i32 to index
    %c0_3 = arith.constant 0 : index
    %6 = vector.load %arg2[%c0_2, %5, %c0_3] : memref<1x8x384xbf16, #tpu.memory_space<vmem>>, vector<1x8x64xbf16>
    %7 = vector.shape_cast %6 : vector<1x8x64xbf16> to vector<8x64xbf16>
    %c0_4 = arith.constant 0 : index
    %c0_5 = arith.constant 0 : index
    %c128 = arith.constant 128 : index
    %8 = vector.load %arg2[%c0_4, %c0_5, %c128] : memref<1x8x384xbf16, #tpu.memory_space<vmem>>, vector<1x8x64xbf16>
    %9 = vector.shape_cast %8 : vector<1x8x64xbf16> to vector<8x64xbf16>
    %c0_6 = arith.constant 0 : index
    %c0_7 = arith.constant 0 : index
    %c256 = arith.constant 256 : index
    %10 = vector.load %arg2[%c0_6, %c0_7, %c256] : memref<1x8x384xbf16, #tpu.memory_space<vmem>>, vector<1x8x64xbf16>
    %11 = vector.shape_cast %10 : vector<1x8x64xbf16> to vector<8x64xbf16>
    %cst = arith.constant dense<0.000000e+00> : vector<8x8xf32>
    %12 = tpu.matmul %7, %9, %cst {dimension_numbers = #tpu.dot_dimension_numbers<[1], [1], [0], [0], [0, 0, 1, 0], [], []>} : vector<8x64xbf16>, vector<8x64xbf16>, vector<8x8xf32> -> vector<8x8xf32>
    %cst_8 = arith.constant 1.250000e-01 : f32
    %13 = vector.broadcast %cst_8 : f32 to vector<8x8xf32>
    %14 = arith.mulf %12, %13 : vector<8x8xf32>
    %15 = arith.addf %14, %4 : vector<8x8xf32>
    %cst_9 = arith.constant dense<0xFF800000> : vector<8xf32>
    %16 = vector.multi_reduction <maximumf>, %15, %cst_9 [1] : vector<8x8xf32> to vector<8xf32>
    %17 = vector.shape_cast %16 : vector<8xf32> to vector<8x1xf32>
    %18 = vector.broadcast %17 : vector<8x1xf32> to vector<8x8xf32>
    %19 = arith.subf %15, %18 : vector<8x8xf32>
    %20 = math.exp %19 : vector<8x8xf32>
    %cst_10 = arith.constant dense<0.000000e+00> : vector<8xf32>
    %21 = vector.multi_reduction <add>, %20, %cst_10 [1] : vector<8x8xf32> to vector<8xf32>
    %22 = vector.shape_cast %21 : vector<8xf32> to vector<8x1xf32>
    %23 = arith.truncf %20 : vector<8x8xf32> to vector<8x8xbf16>
    %cst_11 = arith.constant dense<0.000000e+00> : vector<8x64xf32>
    %24 = tpu.matmul %23, %11, %cst_11 {dimension_numbers = #tpu.dot_dimension_numbers<[1], [0], [0], [1], [0, 0, 1, 1], [], []>} : vector<8x8xbf16>, vector<8x64xbf16>, vector<8x64xf32> -> vector<8x64xf32>
    %25 = tpu.reciprocal %22 {approx = true} : vector<8x1xf32> -> vector<8x1xf32>
    %26 = vector.broadcast %25 : vector<8x1xf32> to vector<8x64xf32>
    %27 = arith.mulf %24, %26 : vector<8x64xf32>
    %28 = arith.truncf %27 : vector<8x64xf32> to vector<8x64xbf16>
    %c0_12 = arith.constant 0 : index
    %c0_13 = arith.constant 0 : index
    %c0_14 = arith.constant 0 : index
    %29 = vector.load %arg4[%c0_12, %c0_13, %c0_14] : memref<1x8x128xbf16, #tpu.memory_space<vmem>>, vector<1x8x64xbf16>
    %30 = vector.shape_cast %29 : vector<1x8x64xbf16> to vector<8x64xbf16>
    %31 = vector.shape_cast %28 : vector<8x64xbf16> to vector<1x8x64xbf16>
    tpu.vector_store %arg4[%c0_12, %c0_13, %c0_14], %31 {strides = array<i32>} : memref<1x8x128xbf16, #tpu.memory_space<vmem>>, vector<1x8x64xbf16>,
    %c0_15 = arith.constant 0 : index
    %32 = arith.index_cast %1 : i32 to index
    %c64 = arith.constant 64 : index
    %33 = vector.load %arg2[%c0_15, %32, %c64] : memref<1x8x384xbf16, #tpu.memory_space<vmem>>, vector<1x8x64xbf16>
    %34 = vector.shape_cast %33 : vector<1x8x64xbf16> to vector<8x64xbf16>
    %c0_16 = arith.constant 0 : index
    %c0_17 = arith.constant 0 : index
    %c192 = arith.constant 192 : index
    %35 = vector.load %arg2[%c0_16, %c0_17, %c192] : memref<1x8x384xbf16, #tpu.memory_space<vmem>>, vector<1x8x64xbf16>
    %36 = vector.shape_cast %35 : vector<1x8x64xbf16> to vector<8x64xbf16>
    %c0_18 = arith.constant 0 : index
    %c0_19 = arith.constant 0 : index
    %c320 = arith.constant 320 : index
    %37 = vector.load %arg2[%c0_18, %c0_19, %c320] : memref<1x8x384xbf16, #tpu.memory_space<vmem>>, vector<1x8x64xbf16>
    %38 = vector.shape_cast %37 : vector<1x8x64xbf16> to vector<8x64xbf16>
    %cst_20 = arith.constant dense<0.000000e+00> : vector<8x8xf32>
    %39 = tpu.matmul %34, %36, %cst_20 {dimension_numbers = #tpu.dot_dimension_numbers<[1], [1], [0], [0], [0, 0, 1, 0], [], []>} : vector<8x64xbf16>, vector<8x64xbf16>, vector<8x8xf32> -> vector<8x8xf32>
    %cst_21 = arith.constant 1.250000e-01 : f32
    %40 = vector.broadcast %cst_21 : f32 to vector<8x8xf32>
    %41 = arith.mulf %39, %40 : vector<8x8xf32>
    %42 = arith.addf %41, %4 : vector<8x8xf32>
    %cst_22 = arith.constant dense<0xFF800000> : vector<8xf32>
    %43 = vector.multi_reduction <maximumf>, %42, %cst_22 [1] : vector<8x8xf32> to vector<8xf32>
    %44 = vector.shape_cast %43 : vector<8xf32> to vector<8x1xf32>
    %45 = vector.broadcast %44 : vector<8x1xf32> to vector<8x8xf32>
    %46 = arith.subf %42, %45 : vector<8x8xf32>
    %47 = math.exp %46 : vector<8x8xf32>
    %cst_23 = arith.constant dense<0.000000e+00> : vector<8xf32>
    %48 = vector.multi_reduction <add>, %47, %cst_23 [1] : vector<8x8xf32> to vector<8xf32>
    %49 = vector.shape_cast %48 : vector<8xf32> to vector<8x1xf32>
    %50 = arith.truncf %47 : vector<8x8xf32> to vector<8x8xbf16>
    %cst_24 = arith.constant dense<0.000000e+00> : vector<8x64xf32>
    %51 = tpu.matmul %50, %38, %cst_24 {dimension_numbers = #tpu.dot_dimension_numbers<[1], [0], [0], [1], [0, 0, 1, 1], [], []>} : vector<8x8xbf16>, vector<8x64xbf16>, vector<8x64xf32> -> vector<8x64xf32>
    %52 = tpu.reciprocal %49 {approx = true} : vector<8x1xf32> -> vector<8x1xf32>
    %53 = vector.broadcast %52 : vector<8x1xf32> to vector<8x64xf32>
    %54 = arith.mulf %51, %53 : vector<8x64xf32>
    %55 = arith.truncf %54 : vector<8x64xf32> to vector<8x64xbf16>
    %c0_25 = arith.constant 0 : index
    %c0_26 = arith.constant 0 : index
    %c64_27 = arith.constant 64 : index
    %56 = vector.load %arg4[%c0_25, %c0_26, %c64_27] : memref<1x8x128xbf16, #tpu.memory_space<vmem>>, vector<1x8x64xbf16>
    %57 = vector.shape_cast %56 : vector<1x8x64xbf16> to vector<8x64xbf16>
    %58 = vector.shape_cast %55 : vector<8x64xbf16> to vector<1x8x64xbf16>
    tpu.vector_store %arg4[%c0_25, %c0_26, %c64_27], %58 {strides = array<i32>} : memref<1x8x128xbf16, #tpu.memory_space<vmem>>, vector<1x8x64xbf16>,
    return
  }
  func.func @transform_0(%arg0: i32, %arg1: i32) -> (i32, i32, i32) {
    %c0_i32 = arith.constant 0 : i32
    %c0_i32_0 = arith.constant 0 : i32
    %c0_i32_1 = arith.constant 0 : i32
    return %arg0, %c0_i32, %c0_i32_0 : i32, i32, i32
  }
  func.func @transform_1(%arg0: i32, %arg1: i32) -> (i32, i32, i32) {
    %c0_i32 = arith.constant 0 : i32
    %c0_i32_0 = arith.constant 0 : i32
    return %arg0, %arg1, %c0_i32 : i32, i32, i32
  }
  func.func @transform_2(%arg0: i32, %arg1: i32) -> (i32, i32, i32) {
    %c0_i32 = arith.constant 0 : i32
    %c0_i32_0 = arith.constant 0 : i32
    return %arg0, %arg1, %c0_i32 : i32, i32, i32
  }
}

module attributes {stable_mosaic.version = 11 : i64} {
  func.func @_matmul_residual_kernel(%arg0: i32, %arg1: i32, %arg2: memref<16x128xbf16, #tpu.memory_space<vmem>>, %arg3: memref<128x128xbf16, #tpu.memory_space<vmem>>, %arg4: memref<16x128xf32, #tpu.memory_space<vmem>>, %arg5: memref<16x128xf32, #tpu.memory_space<vmem>>) attributes {dimension_semantics = [#tpu.dimension_semantics<parallel>, #tpu.dimension_semantics<parallel>], iteration_bounds = array<i64: 1, 1>, scalar_prefetch = 0 : i64, scratch_operands = 0 : i64, tpu.core_type = #tpu.core_type<tc>, window_params = [{transform_indices = @transform_0, window_bounds = array<i64: 16, 128>}, {transform_indices = @transform_1, window_bounds = array<i64: 128, 128>}, {transform_indices = @transform_2, window_bounds = array<i64: 16, 128>}, {transform_indices = @transform_3, window_bounds = array<i64: 16, 128>}]} {
    %c0 = arith.constant 0 : index
    %c0_0 = arith.constant 0 : index
    %0 = vector.load %arg2[%c0, %c0_0] : memref<16x128xbf16, #tpu.memory_space<vmem>>, vector<16x128xbf16>
    %c0_1 = arith.constant 0 : index
    %c0_2 = arith.constant 0 : index
    %1 = vector.load %arg3[%c0_1, %c0_2] : memref<128x128xbf16, #tpu.memory_space<vmem>>, vector<128x128xbf16>
    %cst = arith.constant dense<0.000000e+00> : vector<16x128xf32>
    %2 = tpu.matmul %0, %1, %cst {dimension_numbers = #tpu.dot_dimension_numbers<[1], [0], [0], [1], [0, 0, 1, 1], [], []>} : vector<16x128xbf16>, vector<128x128xbf16>, vector<16x128xf32> -> vector<16x128xf32>
    %c0_3 = arith.constant 0 : index
    %c0_4 = arith.constant 0 : index
    %3 = vector.load %arg4[%c0_3, %c0_4] : memref<16x128xf32, #tpu.memory_space<vmem>>, vector<16x128xf32>
    %4 = arith.addf %3, %2 : vector<16x128xf32>
    %c0_5 = arith.constant 0 : index
    %c0_6 = arith.constant 0 : index
    %5 = vector.load %arg5[%c0_5, %c0_6] : memref<16x128xf32, #tpu.memory_space<vmem>>, vector<16x128xf32>
    tpu.vector_store %arg5[%c0_5, %c0_6], %4 {strides = array<i32>} : memref<16x128xf32, #tpu.memory_space<vmem>>, vector<16x128xf32>,
    return
  }
  func.func @transform_0(%arg0: i32, %arg1: i32) -> (i32, i32) {
    %c0_i32 = arith.constant 0 : i32
    %c0_i32_0 = arith.constant 0 : i32
    return %arg0, %c0_i32 : i32, i32
  }
  func.func @transform_1(%arg0: i32, %arg1: i32) -> (i32, i32) {
    %c0_i32 = arith.constant 0 : i32
    %c0_i32_0 = arith.constant 0 : i32
    return %c0_i32, %arg1 : i32, i32
  }
  func.func @transform_2(%arg0: i32, %arg1: i32) -> (i32, i32) {
    %c0_i32 = arith.constant 0 : i32
    return %arg0, %arg1 : i32, i32
  }
  func.func @transform_3(%arg0: i32, %arg1: i32) -> (i32, i32) {
    %c0_i32 = arith.constant 0 : i32
    return %arg0, %arg1 : i32, i32
  }
}

module attributes {stable_mosaic.version = 11 : i64} {
  func.func @_ln_matmul_kernel(%arg0: i32, %arg1: i32, %arg2: memref<16x128xf32, #tpu.memory_space<vmem>>, %arg3: memref<1x128xf32, #tpu.memory_space<vmem>>, %arg4: memref<128x128xbf16, #tpu.memory_space<vmem>>, %arg5: memref<16x128xbf16, #tpu.memory_space<vmem>>, %arg6: memref<16x128xbf16, #tpu.memory_space<vmem>>) attributes {dimension_semantics = [#tpu.dimension_semantics<parallel>, #tpu.dimension_semantics<arbitrary>], iteration_bounds = array<i64: 1, 1>, scalar_prefetch = 0 : i64, scratch_operands = 1 : i64, tpu.core_type = #tpu.core_type<tc>, window_params = [{transform_indices = @transform_0, window_bounds = array<i64: 16, 128>}, {pipeline_mode = #tpu.pipeline_mode<synchronous>, transform_indices = @transform_1, window_bounds = array<i64: 1, 128>}, {transform_indices = @transform_2, window_bounds = array<i64: 128, 128>}, {transform_indices = @transform_3, window_bounds = array<i64: 16, 128>}]} {
    %c0_i32 = arith.constant 0 : i32
    %0 = arith.cmpi eq, %arg1, %c0_i32 : i32
    %1 = arith.extui %0 : i1 to i32
    %c0_i32_0 = arith.constant 0 : i32
    %2 = arith.cmpi ne, %1, %c0_i32_0 : i32
    scf.if %2 {
      %c0_6 = arith.constant 0 : index
      %c0_7 = arith.constant 0 : index
      %8 = vector.load %arg2[%c0_6, %c0_7] : memref<16x128xf32, #tpu.memory_space<vmem>>, vector<16x128xf32>
      %cst_8 = arith.constant dense<0.000000e+00> : vector<16xf32>
      %9 = vector.multi_reduction <add>, %8, %cst_8 [1] : vector<16x128xf32> to vector<16xf32>
      %10 = vector.shape_cast %9 : vector<16xf32> to vector<16x1xf32>
      %cst_9 = arith.constant 1.280000e+02 : f32
      %11 = vector.broadcast %cst_9 : f32 to vector<16x1xf32>
      %12 = arith.divf %10, %11 : vector<16x1xf32>
      %13 = vector.broadcast %12 : vector<16x1xf32> to vector<16x128xf32>
      %14 = arith.subf %8, %13 : vector<16x128xf32>
      %15 = arith.mulf %14, %14 : vector<16x128xf32>
      %cst_10 = arith.constant dense<0.000000e+00> : vector<16xf32>
      %16 = vector.multi_reduction <add>, %15, %cst_10 [1] : vector<16x128xf32> to vector<16xf32>
      %17 = vector.shape_cast %16 : vector<16xf32> to vector<16x1xf32>
      %cst_11 = arith.constant 1.280000e+02 : f32
      %18 = vector.broadcast %cst_11 : f32 to vector<16x1xf32>
      %19 = arith.divf %17, %18 : vector<16x1xf32>
      %cst_12 = arith.constant 9.99999997E-7 : f32
      %20 = vector.broadcast %cst_12 : f32 to vector<16x1xf32>
      %21 = arith.addf %19, %20 : vector<16x1xf32>
      %22 = math.rsqrt %21 : vector<16x1xf32>
      %23 = vector.broadcast %22 : vector<16x1xf32> to vector<16x128xf32>
      %24 = arith.mulf %14, %23 : vector<16x128xf32>
      %c0_13 = arith.constant 0 : index
      %c0_14 = arith.constant 0 : index
      %25 = vector.load %arg3[%c0_13, %c0_14] : memref<1x128xf32, #tpu.memory_space<vmem>>, vector<1x128xf32>
      %26 = vector.broadcast %25 : vector<1x128xf32> to vector<16x128xf32>
      %27 = arith.mulf %24, %26 : vector<16x128xf32>
      %28 = arith.truncf %27 : vector<16x128xf32> to vector<16x128xbf16>
      %c0_15 = arith.constant 0 : index
      %c0_16 = arith.constant 0 : index
      %29 = vector.load %arg6[%c0_15, %c0_16] : memref<16x128xbf16, #tpu.memory_space<vmem>>, vector<16x128xbf16>
      tpu.vector_store %arg6[%c0_15, %c0_16], %28 {strides = array<i32>} : memref<16x128xbf16, #tpu.memory_space<vmem>>, vector<16x128xbf16>,
    } else {
    }
    %c0 = arith.constant 0 : index
    %c0_1 = arith.constant 0 : index
    %3 = vector.load %arg6[%c0, %c0_1] : memref<16x128xbf16, #tpu.memory_space<vmem>>, vector<16x128xbf16>
    %c0_2 = arith.constant 0 : index
    %c0_3 = arith.constant 0 : index
    %4 = vector.load %arg4[%c0_2, %c0_3] : memref<128x128xbf16, #tpu.memory_space<vmem>>, vector<128x128xbf16>
    %cst = arith.constant dense<0.000000e+00> : vector<16x128xf32>
    %5 = tpu.matmul %3, %4, %cst {dimension_numbers = #tpu.dot_dimension_numbers<[1], [0], [0], [1], [0, 0, 1, 1], [], []>} : vector<16x128xbf16>, vector<128x128xbf16>, vector<16x128xf32> -> vector<16x128xf32>
    %6 = arith.truncf %5 : vector<16x128xf32> to vector<16x128xbf16>
    %c0_4 = arith.constant 0 : index
    %c0_5 = arith.constant 0 : index
    %7 = vector.load %arg5[%c0_4, %c0_5] : memref<16x128xbf16, #tpu.memory_space<vmem>>, vector<16x128xbf16>
    tpu.vector_store %arg5[%c0_4, %c0_5], %6 {strides = array<i32>} : memref<16x128xbf16, #tpu.memory_space<vmem>>, vector<16x128xbf16>,
    return
  }
  func.func @transform_0(%arg0: i32, %arg1: i32) -> (i32, i32) {
    %c0_i32 = arith.constant 0 : i32
    %c0_i32_0 = arith.constant 0 : i32
    return %arg0, %c0_i32 : i32, i32
  }
  func.func @transform_1(%arg0: i32, %arg1: i32) -> (i32, i32) {
    %c0_i32 = arith.constant 0 : i32
    %c0_i32_0 = arith.constant 0 : i32
    %c0_i32_1 = arith.constant 0 : i32
    return %c0_i32, %c0_i32_0 : i32, i32
  }
  func.func @transform_2(%arg0: i32, %arg1: i32) -> (i32, i32) {
    %c0_i32 = arith.constant 0 : i32
    %c0_i32_0 = arith.constant 0 : i32
    return %c0_i32, %arg1 : i32, i32
  }
  func.func @transform_3(%arg0: i32, %arg1: i32) -> (i32, i32) {
    %c0_i32 = arith.constant 0 : i32
    return %arg0, %arg1 : i32, i32
  }
}

module attributes {stable_mosaic.version = 11 : i64} {
  func.func @_ln_matmul_kernel(%arg0: i32, %arg1: i32, %arg2: memref<32x128xf32, #tpu.memory_space<vmem>>, %arg3: memref<1x128xf32, #tpu.memory_space<vmem>>, %arg4: memref<128x256xbf16, #tpu.memory_space<vmem>>, %arg5: memref<32x256xbf16, #tpu.memory_space<vmem>>, %arg6: memref<32x128xbf16, #tpu.memory_space<vmem>>) attributes {dimension_semantics = [#tpu.dimension_semantics<parallel>, #tpu.dimension_semantics<arbitrary>], iteration_bounds = array<i64: 1, 1>, scalar_prefetch = 0 : i64, scratch_operands = 1 : i64, tpu.core_type = #tpu.core_type<tc>, window_params = [{transform_indices = @transform_0, window_bounds = array<i64: 32, 128>}, {pipeline_mode = #tpu.pipeline_mode<synchronous>, transform_indices = @transform_1, window_bounds = array<i64: 1, 128>}, {transform_indices = @transform_2, window_bounds = array<i64: 128, 256>}, {transform_indices = @transform_3, window_bounds = array<i64: 32, 256>}]} {
    %c0_i32 = arith.constant 0 : i32
    %0 = arith.cmpi eq, %arg1, %c0_i32 : i32
    %1 = arith.extui %0 : i1 to i32
    %c0_i32_0 = arith.constant 0 : i32
    %2 = arith.cmpi ne, %1, %c0_i32_0 : i32
    scf.if %2 {
      %c0_6 = arith.constant 0 : index
      %c0_7 = arith.constant 0 : index
      %8 = vector.load %arg2[%c0_6, %c0_7] : memref<32x128xf32, #tpu.memory_space<vmem>>, vector<32x128xf32>
      %cst_8 = arith.constant dense<0.000000e+00> : vector<32xf32>
      %9 = vector.multi_reduction <add>, %8, %cst_8 [1] : vector<32x128xf32> to vector<32xf32>
      %10 = vector.shape_cast %9 : vector<32xf32> to vector<32x1xf32>
      %cst_9 = arith.constant 1.280000e+02 : f32
      %11 = vector.broadcast %cst_9 : f32 to vector<32x1xf32>
      %12 = arith.divf %10, %11 : vector<32x1xf32>
      %13 = vector.broadcast %12 : vector<32x1xf32> to vector<32x128xf32>
      %14 = arith.subf %8, %13 : vector<32x128xf32>
      %15 = arith.mulf %14, %14 : vector<32x128xf32>
      %cst_10 = arith.constant dense<0.000000e+00> : vector<32xf32>
      %16 = vector.multi_reduction <add>, %15, %cst_10 [1] : vector<32x128xf32> to vector<32xf32>
      %17 = vector.shape_cast %16 : vector<32xf32> to vector<32x1xf32>
      %cst_11 = arith.constant 1.280000e+02 : f32
      %18 = vector.broadcast %cst_11 : f32 to vector<32x1xf32>
      %19 = arith.divf %17, %18 : vector<32x1xf32>
      %cst_12 = arith.constant 9.99999997E-7 : f32
      %20 = vector.broadcast %cst_12 : f32 to vector<32x1xf32>
      %21 = arith.addf %19, %20 : vector<32x1xf32>
      %22 = math.rsqrt %21 : vector<32x1xf32>
      %23 = vector.broadcast %22 : vector<32x1xf32> to vector<32x128xf32>
      %24 = arith.mulf %14, %23 : vector<32x128xf32>
      %c0_13 = arith.constant 0 : index
      %c0_14 = arith.constant 0 : index
      %25 = vector.load %arg3[%c0_13, %c0_14] : memref<1x128xf32, #tpu.memory_space<vmem>>, vector<1x128xf32>
      %26 = vector.broadcast %25 : vector<1x128xf32> to vector<32x128xf32>
      %27 = arith.mulf %24, %26 : vector<32x128xf32>
      %28 = arith.truncf %27 : vector<32x128xf32> to vector<32x128xbf16>
      %c0_15 = arith.constant 0 : index
      %c0_16 = arith.constant 0 : index
      %29 = vector.load %arg6[%c0_15, %c0_16] : memref<32x128xbf16, #tpu.memory_space<vmem>>, vector<32x128xbf16>
      tpu.vector_store %arg6[%c0_15, %c0_16], %28 {strides = array<i32>} : memref<32x128xbf16, #tpu.memory_space<vmem>>, vector<32x128xbf16>,
    } else {
    }
    %c0 = arith.constant 0 : index
    %c0_1 = arith.constant 0 : index
    %3 = vector.load %arg6[%c0, %c0_1] : memref<32x128xbf16, #tpu.memory_space<vmem>>, vector<32x128xbf16>
    %c0_2 = arith.constant 0 : index
    %c0_3 = arith.constant 0 : index
    %4 = vector.load %arg4[%c0_2, %c0_3] : memref<128x256xbf16, #tpu.memory_space<vmem>>, vector<128x256xbf16>
    %cst = arith.constant dense<0.000000e+00> : vector<32x256xf32>
    %5 = tpu.matmul %3, %4, %cst {dimension_numbers = #tpu.dot_dimension_numbers<[1], [0], [0], [1], [0, 0, 1, 1], [], []>} : vector<32x128xbf16>, vector<128x256xbf16>, vector<32x256xf32> -> vector<32x256xf32>
    %6 = arith.truncf %5 : vector<32x256xf32> to vector<32x256xbf16>
    %c0_4 = arith.constant 0 : index
    %c0_5 = arith.constant 0 : index
    %7 = vector.load %arg5[%c0_4, %c0_5] : memref<32x256xbf16, #tpu.memory_space<vmem>>, vector<32x256xbf16>
    tpu.vector_store %arg5[%c0_4, %c0_5], %6 {strides = array<i32>} : memref<32x256xbf16, #tpu.memory_space<vmem>>, vector<32x256xbf16>,
    return
  }
  func.func @transform_0(%arg0: i32, %arg1: i32) -> (i32, i32) {
    %c0_i32 = arith.constant 0 : i32
    %c0_i32_0 = arith.constant 0 : i32
    return %arg0, %c0_i32 : i32, i32
  }
  func.func @transform_1(%arg0: i32, %arg1: i32) -> (i32, i32) {
    %c0_i32 = arith.constant 0 : i32
    %c0_i32_0 = arith.constant 0 : i32
    %c0_i32_1 = arith.constant 0 : i32
    return %c0_i32, %c0_i32_0 : i32, i32
  }
  func.func @transform_2(%arg0: i32, %arg1: i32) -> (i32, i32) {
    %c0_i32 = arith.constant 0 : i32
    %c0_i32_0 = arith.constant 0 : i32
    return %c0_i32, %arg1 : i32, i32
  }
  func.func @transform_3(%arg0: i32, %arg1: i32) -> (i32, i32) {
    %c0_i32 = arith.constant 0 : i32
    return %arg0, %arg1 : i32, i32
  }
}

module attributes {stable_mosaic.version = 11 : i64} {
  func.func @_ln_matmul_kernel(%arg0: i32, %arg1: i32, %arg2: memref<16x128xf32, #tpu.memory_space<vmem>>, %arg3: memref<1x128xf32, #tpu.memory_space<vmem>>, %arg4: memref<128x512xbf16, #tpu.memory_space<vmem>>, %arg5: memref<16x512xbf16, #tpu.memory_space<vmem>>, %arg6: memref<16x128xbf16, #tpu.memory_space<vmem>>) attributes {dimension_semantics = [#tpu.dimension_semantics<parallel>, #tpu.dimension_semantics<arbitrary>], iteration_bounds = array<i64: 1, 1>, scalar_prefetch = 0 : i64, scratch_operands = 1 : i64, tpu.core_type = #tpu.core_type<tc>, window_params = [{transform_indices = @transform_0, window_bounds = array<i64: 16, 128>}, {pipeline_mode = #tpu.pipeline_mode<synchronous>, transform_indices = @transform_1, window_bounds = array<i64: 1, 128>}, {transform_indices = @transform_2, window_bounds = array<i64: 128, 512>}, {transform_indices = @transform_3, window_bounds = array<i64: 16, 512>}]} {
    %c0_i32 = arith.constant 0 : i32
    %0 = arith.cmpi eq, %arg1, %c0_i32 : i32
    %1 = arith.extui %0 : i1 to i32
    %c0_i32_0 = arith.constant 0 : i32
    %2 = arith.cmpi ne, %1, %c0_i32_0 : i32
    scf.if %2 {
      %c0_10 = arith.constant 0 : index
      %c0_11 = arith.constant 0 : index
      %21 = vector.load %arg2[%c0_10, %c0_11] : memref<16x128xf32, #tpu.memory_space<vmem>>, vector<16x128xf32>
      %cst_12 = arith.constant dense<0.000000e+00> : vector<16xf32>
      %22 = vector.multi_reduction <add>, %21, %cst_12 [1] : vector<16x128xf32> to vector<16xf32>
      %23 = vector.shape_cast %22 : vector<16xf32> to vector<16x1xf32>
      %cst_13 = arith.constant 1.280000e+02 : f32
      %24 = vector.broadcast %cst_13 : f32 to vector<16x1xf32>
      %25 = arith.divf %23, %24 : vector<16x1xf32>
      %26 = vector.broadcast %25 : vector<16x1xf32> to vector<16x128xf32>
      %27 = arith.subf %21, %26 : vector<16x128xf32>
      %28 = arith.mulf %27, %27 : vector<16x128xf32>
      %cst_14 = arith.constant dense<0.000000e+00> : vector<16xf32>
      %29 = vector.multi_reduction <add>, %28, %cst_14 [1] : vector<16x128xf32> to vector<16xf32>
      %30 = vector.shape_cast %29 : vector<16xf32> to vector<16x1xf32>
      %cst_15 = arith.constant 1.280000e+02 : f32
      %31 = vector.broadcast %cst_15 : f32 to vector<16x1xf32>
      %32 = arith.divf %30, %31 : vector<16x1xf32>
      %cst_16 = arith.constant 9.99999997E-7 : f32
      %33 = vector.broadcast %cst_16 : f32 to vector<16x1xf32>
      %34 = arith.addf %32, %33 : vector<16x1xf32>
      %35 = math.rsqrt %34 : vector<16x1xf32>
      %36 = vector.broadcast %35 : vector<16x1xf32> to vector<16x128xf32>
      %37 = arith.mulf %27, %36 : vector<16x128xf32>
      %c0_17 = arith.constant 0 : index
      %c0_18 = arith.constant 0 : index
      %38 = vector.load %arg3[%c0_17, %c0_18] : memref<1x128xf32, #tpu.memory_space<vmem>>, vector<1x128xf32>
      %39 = vector.broadcast %38 : vector<1x128xf32> to vector<16x128xf32>
      %40 = arith.mulf %37, %39 : vector<16x128xf32>
      %41 = arith.truncf %40 : vector<16x128xf32> to vector<16x128xbf16>
      %c0_19 = arith.constant 0 : index
      %c0_20 = arith.constant 0 : index
      %42 = vector.load %arg6[%c0_19, %c0_20] : memref<16x128xbf16, #tpu.memory_space<vmem>>, vector<16x128xbf16>
      tpu.vector_store %arg6[%c0_19, %c0_20], %41 {strides = array<i32>} : memref<16x128xbf16, #tpu.memory_space<vmem>>, vector<16x128xbf16>,
    } else {
    }
    %c0 = arith.constant 0 : index
    %c0_1 = arith.constant 0 : index
    %3 = vector.load %arg6[%c0, %c0_1] : memref<16x128xbf16, #tpu.memory_space<vmem>>, vector<16x128xbf16>
    %c0_2 = arith.constant 0 : index
    %c0_3 = arith.constant 0 : index
    %4 = vector.load %arg4[%c0_2, %c0_3] : memref<128x512xbf16, #tpu.memory_space<vmem>>, vector<128x512xbf16>
    %cst = arith.constant dense<0.000000e+00> : vector<16x512xf32>
    %5 = tpu.matmul %3, %4, %cst {dimension_numbers = #tpu.dot_dimension_numbers<[1], [0], [0], [1], [0, 0, 1, 1], [], []>} : vector<16x128xbf16>, vector<128x512xbf16>, vector<16x512xf32> -> vector<16x512xf32>
    %6 = arith.mulf %5, %5 : vector<16x512xf32>
    %7 = arith.mulf %5, %6 : vector<16x512xf32>
    %cst_4 = arith.constant 4.471500e-02 : f32
    %8 = vector.broadcast %cst_4 : f32 to vector<16x512xf32>
    %9 = arith.mulf %8, %7 : vector<16x512xf32>
    %10 = arith.addf %5, %9 : vector<16x512xf32>
    %cst_5 = arith.constant 0.797884583 : f32
    %11 = vector.broadcast %cst_5 : f32 to vector<16x512xf32>
    %12 = arith.mulf %11, %10 : vector<16x512xf32>
    %13 = math.tanh %12 : vector<16x512xf32>
    %cst_6 = arith.constant 1.000000e+00 : f32
    %14 = vector.broadcast %cst_6 : f32 to vector<16x512xf32>
    %15 = arith.addf %14, %13 : vector<16x512xf32>
    %cst_7 = arith.constant 5.000000e-01 : f32
    %16 = vector.broadcast %cst_7 : f32 to vector<16x512xf32>
    %17 = arith.mulf %16, %15 : vector<16x512xf32>
    %18 = arith.mulf %5, %17 : vector<16x512xf32>
    %19 = arith.truncf %18 : vector<16x512xf32> to vector<16x512xbf16>
    %c0_8 = arith.constant 0 : index
    %c0_9 = arith.constant 0 : index
    %20 = vector.load %arg5[%c0_8, %c0_9] : memref<16x512xbf16, #tpu.memory_space<vmem>>, vector<16x512xbf16>
    tpu.vector_store %arg5[%c0_8, %c0_9], %19 {strides = array<i32>} : memref<16x512xbf16, #tpu.memory_space<vmem>>, vector<16x512xbf16>,
    return
  }
  func.func @transform_0(%arg0: i32, %arg1: i32) -> (i32, i32) {
    %c0_i32 = arith.constant 0 : i32
    %c0_i32_0 = arith.constant 0 : i32
    return %arg0, %c0_i32 : i32, i32
  }
  func.func @transform_1(%arg0: i32, %arg1: i32) -> (i32, i32) {
    %c0_i32 = arith.constant 0 : i32
    %c0_i32_0 = arith.constant 0 : i32
    %c0_i32_1 = arith.constant 0 : i32
    return %c0_i32, %c0_i32_0 : i32, i32
  }
  func.func @transform_2(%arg0: i32, %arg1: i32) -> (i32, i32) {
    %c0_i32 = arith.constant 0 : i32
    %c0_i32_0 = arith.constant 0 : i32
    return %c0_i32, %arg1 : i32, i32
  }
  func.func @transform_3(%arg0: i32, %arg1: i32) -> (i32, i32) {
    %c0_i32 = arith.constant 0 : i32
    return %arg0, %arg1 : i32, i32
  }
}

module attributes {stable_mosaic.version = 11 : i64} {
  func.func @_cross_attn_kernel(%arg0: i32, %arg1: i32, %arg2: memref<1x8x128xbf16, #tpu.memory_space<vmem>>, %arg3: memref<1x16x256xbf16, #tpu.memory_space<vmem>>, %arg4: memref<1x8x16xbf16, #tpu.memory_space<vmem>>, %arg5: memref<1x8x128xbf16, #tpu.memory_space<vmem>>) attributes {dimension_semantics = [#tpu.dimension_semantics<parallel>, #tpu.dimension_semantics<arbitrary>], iteration_bounds = array<i64: 2, 1>, scalar_prefetch = 0 : i64, scratch_operands = 0 : i64, tpu.core_type = #tpu.core_type<tc>, window_params = [{transform_indices = @transform_0, window_bounds = array<i64: 1, 8, 128>}, {transform_indices = @transform_1, window_bounds = array<i64: 1, 16, 256>}, {transform_indices = @transform_2, window_bounds = array<i64: 1, 8, 16>}, {transform_indices = @transform_3, window_bounds = array<i64: 1, 8, 128>}]} {
    %c0 = arith.constant 0 : index
    %c0_0 = arith.constant 0 : index
    %c0_1 = arith.constant 0 : index
    %0 = vector.load %arg4[%c0, %c0_0, %c0_1] : memref<1x8x16xbf16, #tpu.memory_space<vmem>>, vector<1x8x16xbf16>
    %1 = vector.shape_cast %0 : vector<1x8x16xbf16> to vector<8x16xbf16>
    %2 = arith.extf %1 : vector<8x16xbf16> to vector<8x16xf32>
    %c0_2 = arith.constant 0 : index
    %c0_3 = arith.constant 0 : index
    %c0_4 = arith.constant 0 : index
    %3 = vector.load %arg2[%c0_2, %c0_3, %c0_4] : memref<1x8x128xbf16, #tpu.memory_space<vmem>>, vector<1x8x64xbf16>
    %4 = vector.shape_cast %3 : vector<1x8x64xbf16> to vector<8x64xbf16>
    %c0_5 = arith.constant 0 : index
    %c0_6 = arith.constant 0 : index
    %c0_7 = arith.constant 0 : index
    %5 = vector.load %arg3[%c0_5, %c0_6, %c0_7] : memref<1x16x256xbf16, #tpu.memory_space<vmem>>, vector<1x16x64xbf16>
    %6 = vector.shape_cast %5 : vector<1x16x64xbf16> to vector<16x64xbf16>
    %c0_8 = arith.constant 0 : index
    %c0_9 = arith.constant 0 : index
    %c128 = arith.constant 128 : index
    %7 = vector.load %arg3[%c0_8, %c0_9, %c128] : memref<1x16x256xbf16, #tpu.memory_space<vmem>>, vector<1x16x64xbf16>
    %8 = vector.shape_cast %7 : vector<1x16x64xbf16> to vector<16x64xbf16>
    %cst = arith.constant dense<0.000000e+00> : vector<8x16xf32>
    %9 = tpu.matmul %4, %6, %cst {dimension_numbers = #tpu.dot_dimension_numbers<[1], [1], [0], [0], [0, 0, 1, 0], [], []>} : vector<8x64xbf16>, vector<16x64xbf16>, vector<8x16xf32> -> vector<8x16xf32>
    %cst_10 = arith.constant 1.250000e-01 : f32
    %10 = vector.broadcast %cst_10 : f32 to vector<8x16xf32>
    %11 = arith.mulf %9, %10 : vector<8x16xf32>
    %12 = arith.addf %11, %2 : vector<8x16xf32>
    %cst_11 = arith.constant dense<0xFF800000> : vector<8xf32>
    %13 = vector.multi_reduction <maximumf>, %12, %cst_11 [1] : vector<8x16xf32> to vector<8xf32>
    %14 = vector.shape_cast %13 : vector<8xf32> to vector<8x1xf32>
    %15 = vector.broadcast %14 : vector<8x1xf32> to vector<8x16xf32>
    %16 = arith.subf %12, %15 : vector<8x16xf32>
    %17 = math.exp %16 : vector<8x16xf32>
    %cst_12 = arith.constant dense<0.000000e+00> : vector<8xf32>
    %18 = vector.multi_reduction <add>, %17, %cst_12 [1] : vector<8x16xf32> to vector<8xf32>
    %19 = vector.shape_cast %18 : vector<8xf32> to vector<8x1xf32>
    %20 = arith.truncf %17 : vector<8x16xf32> to vector<8x16xbf16>
    %cst_13 = arith.constant dense<0.000000e+00> : vector<8x64xf32>
    %21 = tpu.matmul %20, %8, %cst_13 {dimension_numbers = #tpu.dot_dimension_numbers<[1], [0], [0], [1], [0, 0, 1, 1], [], []>} : vector<8x16xbf16>, vector<16x64xbf16>, vector<8x64xf32> -> vector<8x64xf32>
    %22 = tpu.reciprocal %19 {approx = true} : vector<8x1xf32> -> vector<8x1xf32>
    %23 = vector.broadcast %22 : vector<8x1xf32> to vector<8x64xf32>
    %24 = arith.mulf %21, %23 : vector<8x64xf32>
    %25 = arith.truncf %24 : vector<8x64xf32> to vector<8x64xbf16>
    %c0_14 = arith.constant 0 : index
    %c0_15 = arith.constant 0 : index
    %c0_16 = arith.constant 0 : index
    %26 = vector.load %arg5[%c0_14, %c0_15, %c0_16] : memref<1x8x128xbf16, #tpu.memory_space<vmem>>, vector<1x8x64xbf16>
    %27 = vector.shape_cast %26 : vector<1x8x64xbf16> to vector<8x64xbf16>
    %28 = vector.shape_cast %25 : vector<8x64xbf16> to vector<1x8x64xbf16>
    tpu.vector_store %arg5[%c0_14, %c0_15, %c0_16], %28 {strides = array<i32>} : memref<1x8x128xbf16, #tpu.memory_space<vmem>>, vector<1x8x64xbf16>,
    %c0_17 = arith.constant 0 : index
    %c0_18 = arith.constant 0 : index
    %c64 = arith.constant 64 : index
    %29 = vector.load %arg2[%c0_17, %c0_18, %c64] : memref<1x8x128xbf16, #tpu.memory_space<vmem>>, vector<1x8x64xbf16>
    %30 = vector.shape_cast %29 : vector<1x8x64xbf16> to vector<8x64xbf16>
    %c0_19 = arith.constant 0 : index
    %c0_20 = arith.constant 0 : index
    %c64_21 = arith.constant 64 : index
    %31 = vector.load %arg3[%c0_19, %c0_20, %c64_21] : memref<1x16x256xbf16, #tpu.memory_space<vmem>>, vector<1x16x64xbf16>
    %32 = vector.shape_cast %31 : vector<1x16x64xbf16> to vector<16x64xbf16>
    %c0_22 = arith.constant 0 : index
    %c0_23 = arith.constant 0 : index
    %c192 = arith.constant 192 : index
    %33 = vector.load %arg3[%c0_22, %c0_23, %c192] : memref<1x16x256xbf16, #tpu.memory_space<vmem>>, vector<1x16x64xbf16>
    %34 = vector.shape_cast %33 : vector<1x16x64xbf16> to vector<16x64xbf16>
    %cst_24 = arith.constant dense<0.000000e+00> : vector<8x16xf32>
    %35 = tpu.matmul %30, %32, %cst_24 {dimension_numbers = #tpu.dot_dimension_numbers<[1], [1], [0], [0], [0, 0, 1, 0], [], []>} : vector<8x64xbf16>, vector<16x64xbf16>, vector<8x16xf32> -> vector<8x16xf32>
    %cst_25 = arith.constant 1.250000e-01 : f32
    %36 = vector.broadcast %cst_25 : f32 to vector<8x16xf32>
    %37 = arith.mulf %35, %36 : vector<8x16xf32>
    %38 = arith.addf %37, %2 : vector<8x16xf32>
    %cst_26 = arith.constant dense<0xFF800000> : vector<8xf32>
    %39 = vector.multi_reduction <maximumf>, %38, %cst_26 [1] : vector<8x16xf32> to vector<8xf32>
    %40 = vector.shape_cast %39 : vector<8xf32> to vector<8x1xf32>
    %41 = vector.broadcast %40 : vector<8x1xf32> to vector<8x16xf32>
    %42 = arith.subf %38, %41 : vector<8x16xf32>
    %43 = math.exp %42 : vector<8x16xf32>
    %cst_27 = arith.constant dense<0.000000e+00> : vector<8xf32>
    %44 = vector.multi_reduction <add>, %43, %cst_27 [1] : vector<8x16xf32> to vector<8xf32>
    %45 = vector.shape_cast %44 : vector<8xf32> to vector<8x1xf32>
    %46 = arith.truncf %43 : vector<8x16xf32> to vector<8x16xbf16>
    %cst_28 = arith.constant dense<0.000000e+00> : vector<8x64xf32>
    %47 = tpu.matmul %46, %34, %cst_28 {dimension_numbers = #tpu.dot_dimension_numbers<[1], [0], [0], [1], [0, 0, 1, 1], [], []>} : vector<8x16xbf16>, vector<16x64xbf16>, vector<8x64xf32> -> vector<8x64xf32>
    %48 = tpu.reciprocal %45 {approx = true} : vector<8x1xf32> -> vector<8x1xf32>
    %49 = vector.broadcast %48 : vector<8x1xf32> to vector<8x64xf32>
    %50 = arith.mulf %47, %49 : vector<8x64xf32>
    %51 = arith.truncf %50 : vector<8x64xf32> to vector<8x64xbf16>
    %c0_29 = arith.constant 0 : index
    %c0_30 = arith.constant 0 : index
    %c64_31 = arith.constant 64 : index
    %52 = vector.load %arg5[%c0_29, %c0_30, %c64_31] : memref<1x8x128xbf16, #tpu.memory_space<vmem>>, vector<1x8x64xbf16>
    %53 = vector.shape_cast %52 : vector<1x8x64xbf16> to vector<8x64xbf16>
    %54 = vector.shape_cast %51 : vector<8x64xbf16> to vector<1x8x64xbf16>
    tpu.vector_store %arg5[%c0_29, %c0_30, %c64_31], %54 {strides = array<i32>} : memref<1x8x128xbf16, #tpu.memory_space<vmem>>, vector<1x8x64xbf16>,
    return
  }
  func.func @transform_0(%arg0: i32, %arg1: i32) -> (i32, i32, i32) {
    %c0_i32 = arith.constant 0 : i32
    %c0_i32_0 = arith.constant 0 : i32
    return %arg0, %arg1, %c0_i32 : i32, i32, i32
  }
  func.func @transform_1(%arg0: i32, %arg1: i32) -> (i32, i32, i32) {
    %c0_i32 = arith.constant 0 : i32
    %c0_i32_0 = arith.constant 0 : i32
    %c0_i32_1 = arith.constant 0 : i32
    return %arg0, %c0_i32, %c0_i32_0 : i32, i32, i32
  }
  func.func @transform_2(%arg0: i32, %arg1: i32) -> (i32, i32, i32) {
    %c0_i32 = arith.constant 0 : i32
    %c0_i32_0 = arith.constant 0 : i32
    return %arg0, %arg1, %c0_i32 : i32, i32, i32
  }
  func.func @transform_3(%arg0: i32, %arg1: i32) -> (i32, i32, i32) {
    %c0_i32 = arith.constant 0 : i32
    %c0_i32_0 = arith.constant 0 : i32
    return %arg0, %arg1, %c0_i32 : i32, i32, i32
  }
}

module attributes {stable_mosaic.version = 11 : i64} {
  func.func @_matmul_residual_kernel(%arg0: i32, %arg1: i32, %arg2: memref<16x512xbf16, #tpu.memory_space<vmem>>, %arg3: memref<512x128xbf16, #tpu.memory_space<vmem>>, %arg4: memref<16x128xf32, #tpu.memory_space<vmem>>, %arg5: memref<16x128xf32, #tpu.memory_space<vmem>>) attributes {dimension_semantics = [#tpu.dimension_semantics<parallel>, #tpu.dimension_semantics<parallel>], iteration_bounds = array<i64: 1, 1>, scalar_prefetch = 0 : i64, scratch_operands = 0 : i64, tpu.core_type = #tpu.core_type<tc>, window_params = [{transform_indices = @transform_0, window_bounds = array<i64: 16, 512>}, {transform_indices = @transform_1, window_bounds = array<i64: 512, 128>}, {transform_indices = @transform_2, window_bounds = array<i64: 16, 128>}, {transform_indices = @transform_3, window_bounds = array<i64: 16, 128>}]} {
    %c0 = arith.constant 0 : index
    %c0_0 = arith.constant 0 : index
    %0 = vector.load %arg2[%c0, %c0_0] : memref<16x512xbf16, #tpu.memory_space<vmem>>, vector<16x512xbf16>
    %c0_1 = arith.constant 0 : index
    %c0_2 = arith.constant 0 : index
    %1 = vector.load %arg3[%c0_1, %c0_2] : memref<512x128xbf16, #tpu.memory_space<vmem>>, vector<512x128xbf16>
    %cst = arith.constant dense<0.000000e+00> : vector<16x128xf32>
    %2 = tpu.matmul %0, %1, %cst {dimension_numbers = #tpu.dot_dimension_numbers<[1], [0], [0], [1], [0, 0, 1, 1], [], []>} : vector<16x512xbf16>, vector<512x128xbf16>, vector<16x128xf32> -> vector<16x128xf32>
    %c0_3 = arith.constant 0 : index
    %c0_4 = arith.constant 0 : index
    %3 = vector.load %arg4[%c0_3, %c0_4] : memref<16x128xf32, #tpu.memory_space<vmem>>, vector<16x128xf32>
    %4 = arith.addf %3, %2 : vector<16x128xf32>
    %c0_5 = arith.constant 0 : index
    %c0_6 = arith.constant 0 : index
    %5 = vector.load %arg5[%c0_5, %c0_6] : memref<16x128xf32, #tpu.memory_space<vmem>>, vector<16x128xf32>
    tpu.vector_store %arg5[%c0_5, %c0_6], %4 {strides = array<i32>} : memref<16x128xf32, #tpu.memory_space<vmem>>, vector<16x128xf32>,
    return
  }
  func.func @transform_0(%arg0: i32, %arg1: i32) -> (i32, i32) {
    %c0_i32 = arith.constant 0 : i32
    %c0_i32_0 = arith.constant 0 : i32
    return %arg0, %c0_i32 : i32, i32
  }
  func.func @transform_1(%arg0: i32, %arg1: i32) -> (i32, i32) {
    %c0_i32 = arith.constant 0 : i32
    %c0_i32_0 = arith.constant 0 : i32
    return %c0_i32, %arg1 : i32, i32
  }
  func.func @transform_2(%arg0: i32, %arg1: i32) -> (i32, i32) {
    %c0_i32 = arith.constant 0 : i32
    return %arg0, %arg1 : i32, i32
  }
  func.func @transform_3(%arg0: i32, %arg1: i32) -> (i32, i32) {
    %c0_i32 = arith.constant 0 : i32
    return %arg0, %arg1 : i32, i32
  }
}

module attributes {stable_mosaic.version = 11 : i64} {
  func.func @_matmul_residual_kernel(%arg0: i32, %arg1: i32, %arg2: memref<16x512xbf16, #tpu.memory_space<vmem>>, %arg3: memref<512x128xbf16, #tpu.memory_space<vmem>>, %arg4: memref<16x128xf32, #tpu.memory_space<vmem>>, %arg5: memref<16x128xf32, #tpu.memory_space<vmem>>) attributes {dimension_semantics = [#tpu.dimension_semantics<parallel>, #tpu.dimension_semantics<parallel>], iteration_bounds = array<i64: 1, 1>, scalar_prefetch = 0 : i64, scratch_operands = 0 : i64, tpu.core_type = #tpu.core_type<tc>, window_params = [{transform_indices = @transform_0, window_bounds = array<i64: 16, 512>}, {transform_indices = @transform_1, window_bounds = array<i64: 512, 128>}, {transform_indices = @transform_2, window_bounds = array<i64: 16, 128>}, {transform_indices = @transform_3, window_bounds = array<i64: 16, 128>}]} {
    %c0 = arith.constant 0 : index
    %c0_0 = arith.constant 0 : index
    %0 = vector.load %arg2[%c0, %c0_0] : memref<16x512xbf16, #tpu.memory_space<vmem>>, vector<16x512xbf16>
    %c0_1 = arith.constant 0 : index
    %c0_2 = arith.constant 0 : index
    %1 = vector.load %arg3[%c0_1, %c0_2] : memref<512x128xbf16, #tpu.memory_space<vmem>>, vector<512x128xbf16>
    %cst = arith.constant dense<0.000000e+00> : vector<16x128xf32>
    %2 = tpu.matmul %0, %1, %cst {dimension_numbers = #tpu.dot_dimension_numbers<[1], [0], [0], [1], [0, 0, 1, 1], [], []>} : vector<16x512xbf16>, vector<512x128xbf16>, vector<16x128xf32> -> vector<16x128xf32>
    %c0_3 = arith.constant 0 : index
    %c0_4 = arith.constant 0 : index
    %3 = vector.load %arg4[%c0_3, %c0_4] : memref<16x128xf32, #tpu.memory_space<vmem>>, vector<16x128xf32>
    %4 = arith.addf %3, %2 : vector<16x128xf32>
    %c0_5 = arith.constant 0 : index
    %c0_6 = arith.constant 0 : index
    %5 = vector.load %arg5[%c0_5, %c0_6] : memref<16x128xf32, #tpu.memory_space<vmem>>, vector<16x128xf32>
    tpu.vector_store %arg5[%c0_5, %c0_6], %4 {strides = array<i32>} : memref<16x128xf32, #tpu.memory_space<vmem>>, vector<16x128xf32>,
    return
  }
  func.func @transform_0(%arg0: i32, %arg1: i32) -> (i32, i32) {
    %c0_i32 = arith.constant 0 : i32
    %c0_i32_0 = arith.constant 0 : i32
    return %arg0, %c0_i32 : i32, i32
  }
  func.func @transform_1(%arg0: i32, %arg1: i32) -> (i32, i32) {
    %c0_i32 = arith.constant 0 : i32
    %c0_i32_0 = arith.constant 0 : i32
    return %c0_i32, %arg1 : i32, i32
  }
  func.func @transform_2(%arg0: i32, %arg1: i32) -> (i32, i32) {
    %c0_i32 = arith.constant 0 : i32
    return %arg0, %arg1 : i32, i32
  }
  func.func @transform_3(%arg0: i32, %arg1: i32) -> (i32, i32) {
    %c0_i32 = arith.constant 0 : i32
    return %arg0, %arg1 : i32, i32
  }
}

</mosaic_0001>

<llo_original>
// kernel: decoder_trunk_forward.19
$region0: #{decoder_trunk_forward.19}
  #allocation0 [shape = 'u32[]', space=smem, size = 0x4, offset = 0x4, fixed_abs, tag = 'smem constant byte address 0x4 - core index']
  #allocation1 [shape = 'u32[144,128]{1,0:T(1,128)}', space=vmem, size = 0x12000, scoped, tag = 'internal scratch']
  %s0 = inlined_call_operand.vmem [shape: bf16[2,8,384], index: 0, kind: input, shape index: {}]
  %s1 = inlined_call_operand.vmem [shape: bf16[2,8,8], index: 1, kind: input, shape index: {}]
  %s2 = inlined_call_operand.vmem [shape: bf16[2,8,128], index: 2, kind: output, shape index: {}]
  %s3 = sld [smem:[#allocation0]]
  $region41: #{decoder_trunk_forward.19} parent=0
    _
  %s5 = ssub.s32 1, %s3
  %s6 = scalar_select 0, %s5, %s3
  loop: start=0, step=1, limit=4
  $region2: #{decoder_trunk_forward.19} parent=0 // loop_pre_header
    _
  $region3: #{decoder_trunk_forward.19} parent=0 // loop_header
    %s8 = sphi 0, %s12
    %p9 = scmp.ge.s32.totalorder %s8, 4
    %s15 = sphi 0, %s27
    %s16 = sphi 0, %s23
    %s17 = sphi 0, %s15
    %s18 = sphi 0, %s16
    %s19 = sphi 0, %s17
    %s20 = sphi 0, %s18
    %s30 = sphi 0, %s32
    %s33 = sphi 0, %s30
    %s34 = sphi 0, %s33
    %s50 = sphi 0, %s34
    %s58 = sphi 0, %s60
    %s61 = sphi 0, %s58
    %s62 = sphi 0, %s61
    %s78 = sphi 0, %s62
    %s86 = sphi 0, %s88
    %s89 = sphi 0, %s86
    %s90 = sphi 0, %s89
    %s106 = sphi 0, %s90
  $region4: #{decoder_trunk_forward.19} parent=0 // loop_header_branch
    %11 = sbr.rel (%p9) target = $region8
  $region5: #{decoder_trunk_forward.19} parent=0 // loop_body
    %s13 = ssub.s32 %s8, 1
    %s14 = ssub.s32 %s8, 2
    %s21 = sadd.s32 1, %s16
    %p22 = scmp.ge.s32.totalorder %s21, 1
    %s23 = scalar_select %p22, 0, %s21
    %s24 = sadd.s32 1, %s15
    %s25 = scalar_select %p22, %s24, %s15
    %p26 = scmp.ge.s32.totalorder %s25, 2
    %s27 = scalar_select %p26, 0, %s25
    %s28 = ssub.s32 %s15, %s27
    %p29 = scmp.eq.s32.totalorder %s28, 0
    %s31 = sadd.s32 %s30, 1
    %s32 = scalar_select %p29, %s30, %s31
    %p35 = pneg %p29
    %p36 = scmp.eq.s32.totalorder %s8, 1
    %p37 = por %p35, %p36
    %p38 = scmp.ne.s32.totalorder %s30, %s33
    %p39 = scmp.eq.s32.totalorder %s8, 0
    %p40 = por %p38, %p39
    %p41 = scmp.ne.s32.totalorder %s30, %s33
    %p42 = scmp.eq.s32.totalorder %s13, 1
    %p43 = por %p41, %p42
    %p44 = scmp.ne.s32.totalorder %s33, %s34
    %p45 = scmp.eq.s32.totalorder %s13, 0
    %p46 = por %p44, %p45
    %p47 = scmp.ne.s32.totalorder %s33, %s34
    %p48 = scmp.eq.s32.totalorder %s14, 1
    %p49 = por %p47, %p48
    %p51 = scmp.ne.s32.totalorder %s34, %s50
    %p52 = scmp.eq.s32.totalorder %s14, 0
    %p53 = por %p51, %p52
    %s54 = ssub.s32 %s15, %s27
    %s55 = ssub.s32 %s16, %s23
    %s56 = sor.u32 %s54, %s55
    %p57 = scmp.eq.s32.totalorder %s56, 0
    %s59 = sadd.s32 %s58, 1
    %s60 = scalar_select %p57, %s58, %s59
    %p63 = pneg %p57
    %p64 = scmp.eq.s32.totalorder %s8, 1
    %p65 = por %p63, %p64
    %p66 = scmp.ne.s32.totalorder %s58, %s61
    %p67 = scmp.eq.s32.totalorder %s8, 0
    %p68 = por %p66, %p67
    %p69 = scmp.ne.s32.totalorder %s58, %s61
    %p70 = scmp.eq.s32.totalorder %s13, 1
    %p71 = por %p69, %p70
    %p72 = scmp.ne.s32.totalorder %s61, %s62
    %p73 = scmp.eq.s32.totalorder %s13, 0
    %p74 = por %p72, %p73
    %p75 = scmp.ne.s32.totalorder %s61, %s62
    %p76 = scmp.eq.s32.totalorder %s14, 1
    %p77 = por %p75, %p76
    %p79 = scmp.ne.s32.totalorder %s62, %s78
    %p80 = scmp.eq.s32.totalorder %s14, 0
    %p81 = por %p79, %p80
    %s82 = ssub.s32 %s15, %s27
    %s83 = ssub.s32 %s16, %s23
    %s84 = sor.u32 %s82, %s83
    %p85 = scmp.eq.s32.totalorder %s84, 0
    %s87 = sadd.s32 %s86, 1
    %s88 = scalar_select %p85, %s86, %s87
    %p91 = pneg %p85
    %p92 = scmp.eq.s32.totalorder %s8, 1
    %p93 = por %p91, %p92
    %p94 = scmp.ne.s32.totalorder %s86, %s89
    %p95 = scmp.eq.s32.totalorder %s8, 0
    %p96 = por %p94, %p95
    %p97 = scmp.ne.s32.totalorder %s86, %s89
    %p98 = scmp.eq.s32.totalorder %s13, 1
    %p99 = por %p97, %p98
    %p100 = scmp.ne.s32.totalorder %s89, %s90
    %p101 = scmp.eq.s32.totalorder %s13, 0
    %p102 = por %p100, %p101
    %p103 = scmp.ne.s32.totalorder %s89, %s90
    %p104 = scmp.eq.s32.totalorder %s14, 1
    %p105 = por %p103, %p104
    %p107 = scmp.ne.s32.totalorder %s90, %s106
    %p108 = scmp.eq.s32.totalorder %s14, 0
    %p109 = por %p107, %p108
    %p110 = scmp.le.s32.totalorder 1, %s8
    %p111 = scmp.lt.s32.totalorder %s8, 3
    %p112 = pnand %p110, %p111
    %p113 = pneg %p112
    // Predicated region
    $region9: #{decoder_trunk_forward.19} parent=5 // pred_check
      _
    $region10: #{decoder_trunk_forward.19} parent=5 // pred_check_branch
      %115 = sbr.rel (%p112) target = $region12
    $region11: #{decoder_trunk_forward.19} parent=5 // pred_region
      %s116 = ssub.s32 %s8, 1
    $region12: #{decoder_trunk_forward.19} parent=5 // pred_fallthru
      _
    %p117 = scmp.lt.s32.totalorder %s8, 2
    // Predicated region
    $region13: #{decoder_trunk_forward.19} parent=5 // pred_check
      %p118 = pneg %p117
    $region14: #{decoder_trunk_forward.19} parent=5 // pred_check_branch
      %120 = sbr.rel (%p118) target = $region16
    $region15: #{decoder_trunk_forward.19} parent=5 // pred_region
      // Predicated region
      $region17: #{decoder_trunk_forward.19} parent=15 // pred_check
        %p121 = pneg %p40
      $region18: #{decoder_trunk_forward.19} parent=15 // pred_check_branch
        %123 = sbr.rel (%p121) target = $region20
      $region19: #{decoder_trunk_forward.19} parent=15 // pred_region
        %p124 = scmp.lt.s32.totalorder %s15, 1
        %s125 = scalar_select %p124, %s15, 1
        %s126 = smul.addr %s125, 3
        %s127 = smul.addr %s126, 4
        %s128 = scalar_lea.vmem %s0, %s127
      $region20: #{decoder_trunk_forward.19} parent=15 // pred_fallthru
        _
      // Predicated region
      $region21: #{decoder_trunk_forward.19} parent=15 // pred_check
        %p129 = pneg %p68
      $region22: #{decoder_trunk_forward.19} parent=15 // pred_check_branch
        %131 = sbr.rel (%p129) target = $region24
      $region23: #{decoder_trunk_forward.19} parent=15 // pred_region
        %p132 = scmp.lt.s32.totalorder %s15, 1
        %s133 = scalar_select %p132, %s15, 1
        %p134 = scmp.lt.s32.totalorder %s16, 0
        %s135 = scalar_select %p134, %s16, 0
        %s136 = sadd.s32 %s135, %s133
        %s137 = smul.addr %s136, 4
        %s138 = scalar_lea.vmem %s1, %s137
      $region24: #{decoder_trunk_forward.19} parent=15 // pred_fallthru
        _
    $region16: #{decoder_trunk_forward.19} parent=5 // pred_fallthru
      _
    %p139 = scmp.le.s32.totalorder 1, %s8
    %p140 = scmp.lt.s32.totalorder %s8, 3
    %p141 = pnand %p139, %p140
    %p142 = pneg %p141
    // Predicated region
    $region25: #{decoder_trunk_forward.19} parent=5 // pred_check
      _
    $region26: #{decoder_trunk_forward.19} parent=5 // pred_check_branch
      %144 = sbr.rel (%p141) target = $region28
    $region27: #{decoder_trunk_forward.19} parent=5 // pred_region
      %s145 = ssub.s32 %s8, 1
      %p146 = scmp.lt.s32.totalorder %s17, 1
      %s147 = scalar_select %p146, %s17, 1
      %s148 = smul.addr %s147, 3
      %s149 = smul.addr %s148, 4
      %s150 = scalar_lea.vmem %s0, %s149
      %p151 = pneg %p46
      %p152 = pneg %p43
      %p153 = scmp.lt.s32.totalorder %s17, 1
      %s154 = scalar_select %p153, %s17, 1
      %p155 = scmp.lt.s32.totalorder %s18, 0
      %s156 = scalar_select %p155, %s18, 0
      %s157 = sadd.s32 %s156, %s154
      %s158 = smul.addr %s157, 4
      %s159 = scalar_lea.vmem %s1, %s158
      %p160 = pneg %p74
      %p161 = pneg %p71
      %p162 = pneg %p102
      %p163 = pneg %p99
      %p164 = scmp.lt.s32.totalorder %s17, 1
      %s165 = scalar_select %p164, %s17, 1
      %p166 = scmp.lt.s32.totalorder %s18, 0
      %s167 = scalar_select %p166, %s18, 0
      %s168 = sadd.s32 %s167, %s165
      %s169 = smul.addr %s168, 4
      %s170 = scalar_lea.vmem %s2, %s169
      %p171 = scmp.lt.s32.totalorder %s17, 1
      %s172 = scalar_select %p171, %s17, 1
      %s173 = smul.addr %s172, 3
      %s174 = smul.addr %s173, 4
      %s175 = scalar_lea.vmem %s0, %s174
      %p176 = scmp.lt.s32.totalorder %s17, 1
      %s177 = scalar_select %p176, %s17, 1
      %p178 = scmp.lt.s32.totalorder %s18, 0
      %s179 = scalar_select %p178, %s18, 0
      %s180 = sadd.s32 %s179, %s177
      %s181 = smul.addr %s180, 4
      %s182 = scalar_lea.vmem %s1, %s181
      %p183 = scmp.lt.s32.totalorder %s17, 1
      %s184 = scalar_select %p183, %s17, 1
      %p185 = scmp.lt.s32.totalorder %s18, 0
      %s186 = scalar_select %p185, %s18, 0
      %s187 = sadd.s32 %s186, %s184
      %s188 = smul.addr %s187, 4
      %s189 = scalar_lea.vmem %s2, %s188
      %s191 = smul.u32 %s18, 8
      %v192 = vld [vmem:[%s182] sm:$0xf]
      %v193 = vunpack.c.l.bf16 %v192
      %s194 = sshra.s32 %s191, 3
      %s195 = sand.u32 %s191, 7
      %s196 = smul.u32 %s194, 3
      %s197 = smul.addr %s196, 4
      %s198 = scalar_lea.vmem %s175, %s197
      %v199 = vld [vmem:[%s198] sm:$0xf]
      %v200 = vld [vmem:[%s175 + $0x4] sm:$0xf]
      %v201 = vld [vmem:[%s175 + $0x8] sm:$0xf]
      %vm202 = vcmask 523264
      %v204 = vsel %vm202, %v199, 0
      %v207 = vsel %vm202, %v200, 0
      %209 = vmatprep.subr.bf16.mxu0 0
      %210 = vmatpush1.bf16.xpose.msra.mxu0 %v207
      %211 = vmatprep.subr.bf16.mxu0 0
      %212 = vmatpush1.bf16.xpose.msra.mxu0 0
      %213 = vmatprep.subr.bf16.mxu0 0
      %214 = vmatpush1.bf16.xpose.msra.mxu0 0
      %215 = vmatprep.subr.bf16.mxu0 0
      %216 = vmatpush1.bf16.xpose.msra.mxu0 0
      %217 = vmatprep.subr.bf16.mxu0 0
      %218 = vmatpush1.bf16.xpose.msra.mxu0 0
      %219 = vmatprep.subr.bf16.mxu0 0
      %220 = vmatpush1.bf16.xpose.msra.mxu0 0
      %221 = vmatprep.subr.bf16.mxu0 0
      %222 = vmatpush1.bf16.xpose.msra.mxu0 0
      %223 = vmatprep.subr.bf16.mxu0 0
      %224 = vmatpush1.bf16.xpose.msra.mxu0 0
      %225 = vmatprep.subr.bf16.mxu0 0
      %226 = vmatpush1.bf16.xpose.msra.mxu0 0
      %227 = vmatprep.subr.bf16.mxu0 0
      %228 = vmatpush1.bf16.xpose.msra.mxu0 0
      %229 = vmatprep.subr.bf16.mxu0 0
      %230 = vmatpush1.bf16.xpose.msra.mxu0 0
      %231 = vmatprep.subr.bf16.mxu0 0
      %232 = vmatpush1.bf16.xpose.msra.mxu0 0
      %233 = vmatprep.subr.bf16.mxu0 0
      %234 = vmatpush1.bf16.xpose.msra.mxu0 0
      %235 = vmatprep.subr.bf16.mxu0 0
      %236 = vmatpush1.bf16.xpose.msra.mxu0 0
      %237 = vmatprep.subr.bf16.mxu0 0
      %238 = vmatpush1.bf16.xpose.msra.mxu0 0
      %239 = vmatprep.subr.bf16.mxu0 0
      %240 = vmatpush1.bf16.xpose.msra.mxu0 0
      %241 = vmatprep.mubr.bf16.mxu0 0
      %242 = vmatmul.mubr.bf16.gmra.mrb[0].mxu0 %v204
      %v243 = vpop.f32.mrb[0].mxu0
      %v244 = vadd.f32 0.0, %v243
      %v245 = vpop.f32.mrb[0].mxu0
      %v246 = vpop.f32.mrb[0].mxu0
      %v247 = vpop.f32.mrb[0].mxu0
      %248 = vdwg.mxu0
      %v249 = vmul.f32 %v244, 0.125
      %v250 = vadd.f32 %v249, %v193
      %vm251 = vcmask 64512
      %v252 = vsel %vm251, %v250, -inf
      %253 = vmax.xlane.f32.xlu0 %v252
      %v254 = vpop.xlane.xlu0 %253
      %v255 = vsub.f32 %v250, %v254
      %v256 = vmul.f32 %v255, 1.442695
      %v257 = vpow.pop %v256
      %v258 = vsel %vm251, %v257, 0.0
      %259 = vadd.xlane.f32.xlu0 %v258
      %v260 = vpop.xlane.xlu0 %259
      %v261 = vpack.c.bf16 %v257, %v257
      %v263 = vsel %vm251, %v261, 0
      %vm265 = vcmask 1043456
      %v267 = vsel %vm265, %v201, 0
      %269 = vmatprep.subr.bf16.mxu0 0
      %270 = vmatpush1.bf16.msra.mxu0 %v267
      %271 = vmatprep.subr.bf16.mxu0 0
      %272 = vmatpush1.bf16.msra.mxu0 0
      %273 = vmatprep.subr.bf16.mxu0 0
      %274 = vmatpush1.bf16.msra.mxu0 0
      %275 = vmatprep.subr.bf16.mxu0 0
      %276 = vmatpush1.bf16.msra.mxu0 0
      %277 = vmatprep.subr.bf16.mxu0 0
      %278 = vmatpush1.bf16.msra.mxu0 0
      %279 = vmatprep.subr.bf16.mxu0 0
      %280 = vmatpush1.bf16.msra.mxu0 0
      %281 = vmatprep.subr.bf16.mxu0 0
      %282 = vmatpush1.bf16.msra.mxu0 0
      %283 = vmatprep.subr.bf16.mxu0 0
      %284 = vmatpush1.bf16.msra.mxu0 0
      %285 = vmatprep.subr.bf16.mxu0 0
      %286 = vmatpush1.bf16.msra.mxu0 0
      %287 = vmatprep.subr.bf16.mxu0 0
      %288 = vmatpush1.bf16.msra.mxu0 0
      %289 = vmatprep.subr.bf16.mxu0 0
      %290 = vmatpush1.bf16.msra.mxu0 0
      %291 = vmatprep.subr.bf16.mxu0 0
      %292 = vmatpush1.bf16.msra.mxu0 0
      %293 = vmatprep.subr.bf16.mxu0 0
      %294 = vmatpush1.bf16.msra.mxu0 0
      %295 = vmatprep.subr.bf16.mxu0 0
      %296 = vmatpush1.bf16.msra.mxu0 0
      %297 = vmatprep.subr.bf16.mxu0 0
      %298 = vmatpush1.bf16.msra.mxu0 0
      %299 = vmatprep.subr.bf16.mxu0 0
      %300 = vmatpush1.bf16.msra.mxu0 0
      %301 = vmatprep.mubr.bf16.mxu0 0
      %302 = vmatmul.mubr.bf16.gmra.mrb[0].mxu0 %v263
      %v303 = vpop.f32.mrb[0].mxu0
      %v304 = vadd.f32 0.0, %v303
      %v305 = vpop.f32.mrb[0].mxu0
      %v306 = vpop.f32.mrb[0].mxu0
      %v307 = vpop.f32.mrb[0].mxu0
      %308 = vdwg.mxu0
      %v309 = vrcp.pop %v260
      %v310 = vmul.f32 %v304, %v309
      %v311 = vpack.c.bf16 %v310, %v310
      %vm312 = vcmask 519168
      %313 = vst.msk [vmem:[%s189] sm:$0xf] %vm312, %v311
      %v314 = vld [vmem:[%s198] sm:$0xf]
      %v315 = vld [vmem:[%s175 + $0x4] sm:$0xf]
      %v316 = vld [vmem:[%s175 + $0x8] sm:$0xf]
      %v318 = vunpack.c.l.b16 %v314
      %v319 = vpack.c.b16 %v318, %v318
      %320 = vrot.lane.b32.xlu0 %v319, 64
      %v321 = vpop.permute.xlu0 %320
      %v323 = vunpack.c.l.b16 %v315
      %v324 = vpack.c.b16 %v323, %v323
      %325 = vrot.lane.b32.xlu0 %v324, 64
      %v326 = vpop.permute.xlu0 %325
      %v328 = vsel %vm202, %v321, 0
      %v331 = vsel %vm202, %v326, 0
      %333 = vmatprep.subr.bf16.mxu0 0
      %334 = vmatpush1.bf16.xpose.msra.mxu0 %v331
      %335 = vmatprep.subr.bf16.mxu0 0
      %336 = vmatpush1.bf16.xpose.msra.mxu0 0
      %337 = vmatprep.subr.bf16.mxu0 0
      %338 = vmatpush1.bf16.xpose.msra.mxu0 0
      %339 = vmatprep.subr.bf16.mxu0 0
      %340 = vmatpush1.bf16.xpose.msra.mxu0 0
      %341 = vmatprep.subr.bf16.mxu0 0
      %342 = vmatpush1.bf16.xpose.msra.mxu0 0
      %343 = vmatprep.subr.bf16.mxu0 0
      %344 = vmatpush1.bf16.xpose.msra.mxu0 0
      %345 = vmatprep.subr.bf16.mxu0 0
      %346 = vmatpush1.bf16.xpose.msra.mxu0 0
      %347 = vmatprep.subr.bf16.mxu0 0
      %348 = vmatpush1.bf16.xpose.msra.mxu0 0
      %349 = vmatprep.subr.bf16.mxu0 0
      %350 = vmatpush1.bf16.xpose.msra.mxu0 0
      %351 = vmatprep.subr.bf16.mxu0 0
      %352 = vmatpush1.bf16.xpose.msra.mxu0 0
      %353 = vmatprep.subr.bf16.mxu0 0
      %354 = vmatpush1.bf16.xpose.msra.mxu0 0
      %355 = vmatprep.subr.bf16.mxu0 0
      %356 = vmatpush1.bf16.xpose.msra.mxu0 0
      %357 = vmatprep.subr.bf16.mxu0 0
      %358 = vmatpush1.bf16.xpose.msra.mxu0 0
      %359 = vmatprep.subr.bf16.mxu0 0
      %360 = vmatpush1.bf16.xpose.msra.mxu0 0
      %361 = vmatprep.subr.bf16.mxu0 0
      %362 = vmatpush1.bf16.xpose.msra.mxu0 0
      %363 = vmatprep.subr.bf16.mxu0 0
      %364 = vmatpush1.bf16.xpose.msra.mxu0 0
      %365 = vmatprep.mubr.bf16.mxu0 0
      %366 = vmatmul.mubr.bf16.gmra.mrb[0].mxu0 %v328
      %v367 = vpop.f32.mrb[0].mxu0
      %v368 = vadd.f32 0.0, %v367
      %v369 = vpop.f32.mrb[0].mxu0
      %v370 = vpop.f32.mrb[0].mxu0
      %v371 = vpop.f32.mrb[0].mxu0
      %372 = vdwg.mxu0
      %v373 = vmul.f32 %v368, 0.125
      %v374 = vadd.f32 %v373, %v193
      %v375 = vsel %vm251, %v374, -inf
      %376 = vmax.xlane.f32.xlu0 %v375
      %v377 = vpop.xlane.xlu0 %376
      %v378 = vsub.f32 %v374, %v377
      %v379 = vmul.f32 %v378, 1.442695
      %v380 = vpow.pop %v379
      %v381 = vsel %vm251, %v380, 0.0
      %382 = vadd.xlane.f32.xlu0 %v381
      %v383 = vpop.xlane.xlu0 %382
      %v384 = vpack.c.bf16 %v380, %v380
      %v386 = vunpack.c.l.b16 %v316
      %v387 = vpack.c.b16 %v386, %v386
      %388 = vrot.lane.b32.xlu0 %v387, 64
      %v389 = vpop.permute.xlu0 %388
      %v391 = vsel %vm251, %v384, 0
      %v394 = vsel %vm265, %v389, 0
      %396 = vmatprep.subr.bf16.mxu0 0
      %397 = vmatpush1.bf16.msra.mxu0 %v394
      %398 = vmatprep.subr.bf16.mxu0 0
      %399 = vmatpush1.bf16.msra.mxu0 0
      %400 = vmatprep.subr.bf16.mxu0 0
      %401 = vmatpush1.bf16.msra.mxu0 0
      %402 = vmatprep.subr.bf16.mxu0 0
      %403 = vmatpush1.bf16.msra.mxu0 0
      %404 = vmatprep.subr.bf16.mxu0 0
      %405 = vmatpush1.bf16.msra.mxu0 0
      %406 = vmatprep.subr.bf16.mxu0 0
      %407 = vmatpush1.bf16.msra.mxu0 0
      %408 = vmatprep.subr.bf16.mxu0 0
      %409 = vmatpush1.bf16.msra.mxu0 0
      %410 = vmatprep.subr.bf16.mxu0 0
      %411 = vmatpush1.bf16.msra.mxu0 0
      %412 = vmatprep.subr.bf16.mxu0 0
      %413 = vmatpush1.bf16.msra.mxu0 0
      %414 = vmatprep.subr.bf16.mxu0 0
      %415 = vmatpush1.bf16.msra.mxu0 0
      %416 = vmatprep.subr.bf16.mxu0 0
      %417 = vmatpush1.bf16.msra.mxu0 0
      %418 = vmatprep.subr.bf16.mxu0 0
      %419 = vmatpush1.bf16.msra.mxu0 0
      %420 = vmatprep.subr.bf16.mxu0 0
      %421 = vmatpush1.bf16.msra.mxu0 0
      %422 = vmatprep.subr.bf16.mxu0 0
      %423 = vmatpush1.bf16.msra.mxu0 0
      %424 = vmatprep.subr.bf16.mxu0 0
      %425 = vmatpush1.bf16.msra.mxu0 0
      %426 = vmatprep.subr.bf16.mxu0 0
      %427 = vmatpush1.bf16.msra.mxu0 0
      %428 = vmatprep.mubr.bf16.mxu0 0
      %429 = vmatmul.mubr.bf16.gmra.mrb[0].mxu0 %v391
      %v430 = vpop.f32.mrb[0].mxu0
      %v431 = vadd.f32 0.0, %v430
      %v432 = vpop.f32.mrb[0].mxu0
      %v433 = vpop.f32.mrb[0].mxu0
      %v434 = vpop.f32.mrb[0].mxu0
      %435 = vdwg.mxu0
      %v436 = vrcp.pop %v383
      %v437 = vmul.f32 %v431, %v436
      %v438 = vpack.c.bf16 %v437, %v437
      %v440 = vunpack.c.l.b16 %v438
      %v441 = vpack.c.b16 %v440, %v440
      %442 = vrot.lane.b32.xlu0 %v441, 64
      %v443 = vpop.permute.xlu0 %442
      %vm445 = vcmask 1043968
      %446 = vst.msk [vmem:[%s189] sm:$0xf] %vm445, %v443
      %p447 = scmp.lt.s32.totalorder %s17, 1
      %s448 = scalar_select %p447, %s17, 1
      %p449 = scmp.lt.s32.totalorder %s18, 0
      %s450 = scalar_select %p449, %s18, 0
      %s451 = sadd.s32 %s450, %s448
      %s452 = smul.addr %s451, 4
      %s453 = scalar_lea.vmem %s2, %s452
      // Predicated region
      $region29: #{decoder_trunk_forward.19} parent=27 // pred_check
        %p454 = pneg %p99
      $region30: #{decoder_trunk_forward.19} parent=27 // pred_check_branch
        %456 = sbr.rel (%p454) target = $region32
      $region31: #{decoder_trunk_forward.19} parent=27 // pred_region
        _
      $region32: #{decoder_trunk_forward.19} parent=27 // pred_fallthru
        _
    $region28: #{decoder_trunk_forward.19} parent=5 // pred_fallthru
      _
    %p457 = scmp.le.s32.totalorder 2, %s8
    // Predicated region
    $region33: #{decoder_trunk_forward.19} parent=5 // pred_check
      %p458 = pneg %p457
    $region34: #{decoder_trunk_forward.19} parent=5 // pred_check_branch
      %460 = sbr.rel (%p458) target = $region36
    $region35: #{decoder_trunk_forward.19} parent=5 // pred_region
      %s461 = ssub.s32 %s8, 2
      // Predicated region
      $region37: #{decoder_trunk_forward.19} parent=35 // pred_check
        %p462 = pneg %p105
      $region38: #{decoder_trunk_forward.19} parent=35 // pred_check_branch
        %464 = sbr.rel (%p462) target = $region40
      $region39: #{decoder_trunk_forward.19} parent=35 // pred_region
        %p465 = scmp.lt.s32.totalorder %s19, 1
        %s466 = scalar_select %p465, %s19, 1
        %p467 = scmp.lt.s32.totalorder %s20, 0
        %s468 = scalar_select %p467, %s20, 0
        %s469 = sadd.s32 %s468, %s466
        %s470 = smul.addr %s469, 4
        %s471 = scalar_lea.vmem %s2, %s470
      $region40: #{decoder_trunk_forward.19} parent=35 // pred_fallthru
        _
    $region36: #{decoder_trunk_forward.19} parent=5 // pred_fallthru
      _
  $region6: #{decoder_trunk_forward.19} parent=0 // loop_footer
    %s12 = sadd.s32 1, %s8
  $region7: #{decoder_trunk_forward.19} parent=0 // loop_footer_branch
    %7 = sbr.rel target = $region3
  $region8: #{decoder_trunk_forward.19} parent=0 // loop_exit
    _

// kernel: decoder_trunk_forward.21
$region0: #{decoder_trunk_forward.21}
  #allocation0 [shape = 'u32[]', space=smem, size = 0x4, offset = 0x4, fixed_abs, tag = 'smem constant byte address 0x4 - core index']
  #allocation1 [shape = 'u32[144,128]{1,0:T(1,128)}', space=vmem, size = 0x12000, scoped, tag = 'internal scratch']
  #allocation2 [shape = 'bf16[16,128]{1,0:T(16,128)(2,1)}', space=vmem, size = 0x1000, scoped, tag = 'scratch operand']
  %s0 = inlined_call_operand.vmem [shape: f32[16,128], index: 0, kind: input, shape index: {}]
  %s1 = inlined_call_operand.vmem [shape: f32[1,128], index: 1, kind: input, shape index: {}]
  %s2 = inlined_call_operand.vmem [shape: bf16[128,128], index: 2, kind: input, shape index: {}]
  %s3 = inlined_call_operand.vmem [shape: bf16[16,128], index: 3, kind: output, shape index: {}]
  %s4 = sld [smem:[#allocation0]]
  $region26: #{decoder_trunk_forward.21} parent=0
    _
  %s6 = ssub.s32 1, %s4
  %s7 = scalar_select 0, %s6, %s4
  // Predicated region
  $region2: #{decoder_trunk_forward.21} parent=0 // pred_check
    _
  $region3: #{decoder_trunk_forward.21} parent=0 // pred_check_branch
    %9 = sbr.rel (0) target = $region5
  $region4: #{decoder_trunk_forward.21} parent=0 // pred_region
    _
  $region5: #{decoder_trunk_forward.21} parent=0 // pred_fallthru
    _
  // Predicated region
  $region6: #{decoder_trunk_forward.21} parent=0 // pred_check
    _
  $region7: #{decoder_trunk_forward.21} parent=0 // pred_check_branch
    %11 = sbr.rel (0) target = $region9
  $region8: #{decoder_trunk_forward.21} parent=0 // pred_region
    _
  $region9: #{decoder_trunk_forward.21} parent=0 // pred_fallthru
    _
  // Predicated region
  $region10: #{decoder_trunk_forward.21} parent=0 // pred_check
    _
  $region11: #{decoder_trunk_forward.21} parent=0 // pred_check_branch
    %13 = sbr.rel (0) target = $region13
  $region12: #{decoder_trunk_forward.21} parent=0 // pred_region
    _
  $region13: #{decoder_trunk_forward.21} parent=0 // pred_fallthru
    _
  %p15 = scmp.eq.s32.totalorder 0, 0
  // Predicated region
  $region14: #{decoder_trunk_forward.21} parent=0 // pred_check
    %p16 = pneg %p15
  $region15: #{decoder_trunk_forward.21} parent=0 // pred_check_branch
    %18 = sbr.rel (%p16) target = $region17
  $region16: #{decoder_trunk_forward.21} parent=0 // pred_region
    %v19 = vld [vmem:[%s0] sm:$0xff]
    %v20 = vld [vmem:[%s0 + $0x8] sm:$0xff]
    %21 = vadd.xlane.f32.xlu0 %v19
    %v22 = vpop.xlane.xlu0 %21
    %23 = vadd.xlane.f32.xlu0 %v20
    %v24 = vpop.xlane.xlu0 %23
    %v25 = vrcp.pop 128.0
    %v26 = vmul.f32 %v22, %v25
    %v27 = vmul.f32 %v24, %v25
    %v28 = vsub.f32 %v19, %v26
    %v29 = vsub.f32 %v20, %v27
    %v30 = vmul.f32 %v28, %v28
    %v31 = vmul.f32 %v29, %v29
    %32 = vadd.xlane.f32.xlu0 %v30
    %v33 = vpop.xlane.xlu0 %32
    %34 = vadd.xlane.f32.xlu0 %v31
    %v35 = vpop.xlane.xlu0 %34
    %v36 = vmul.f32 %v33, %v25
    %v37 = vmul.f32 %v35, %v25
    %v38 = vadd.f32 %v36, 1e-06
    %v39 = vadd.f32 %v37, 1e-06
    %v40 = vrsqrt.pop %v38
    %v41 = vrsqrt.pop %v39
    %v42 = vmul.f32 %v28, %v40
    %v43 = vmul.f32 %v29, %v41
    %v44 = vld [vmem:[%s1] sm:$0x1]
    %v46 = vlaneseq
    %v47 = vshrl.u32 %v46, 7
    %v48 = vsub.s32 0, %v47
    %v49 = vrot.slane %v44, %v48
    %v51 = vmul.f32 %v42, %v49
    %v52 = vmul.f32 %v43, %v49
    %v53 = vpack.c.bf16 %v52, %v51
    %54 = vst [vmem:[#allocation2] sm:$0xff] %v53
  $region17: #{decoder_trunk_forward.21} parent=0 // pred_fallthru
    _
  %v55 = vld [vmem:[#allocation2] sm:$0xff]
  %v56 = vld [vmem:[%s2] sm:$0xf]
  %v57 = vld [vmem:[%s2 + $0x4] sm:$0xf]
  %v58 = vld [vmem:[%s2 + $0x8] sm:$0xf]
  %v59 = vld [vmem:[%s2 + $0xc] sm:$0xf]
  %v60 = vld [vmem:[%s2 + $0x10] sm:$0xf]
  %v61 = vld [vmem:[%s2 + $0x14] sm:$0xf]
  %v62 = vld [vmem:[%s2 + $0x18] sm:$0xf]
  %v63 = vld [vmem:[%s2 + $0x1c] sm:$0xf]
  %v64 = vld [vmem:[%s2 + $0x20] sm:$0xf]
  %v65 = vld [vmem:[%s2 + $0x24] sm:$0xf]
  %v66 = vld [vmem:[%s2 + $0x28] sm:$0xf]
  %v67 = vld [vmem:[%s2 + $0x2c] sm:$0xf]
  %v68 = vld [vmem:[%s2 + $0x30] sm:$0xf]
  %v69 = vld [vmem:[%s2 + $0x34] sm:$0xf]
  %v70 = vld [vmem:[%s2 + $0x38] sm:$0xf]
  %v71 = vld [vmem:[%s2 + $0x3c] sm:$0xf]
  %v88 = vunpack.c.l.b16 %v56
  %v89 = vunpack.c.l.b16 %v57
  %v90 = vunpack.c.l.b16 %v58
  %v91 = vunpack.c.l.b16 %v59
  %v92 = vunpack.c.l.b16 %v60
  %v93 = vunpack.c.l.b16 %v61
  %v94 = vunpack.c.l.b16 %v62
  %v95 = vunpack.c.l.b16 %v63
  %v96 = vunpack.c.l.b16 %v64
  %v97 = vunpack.c.l.b16 %v65
  %v98 = vunpack.c.l.b16 %v66
  %v99 = vunpack.c.l.b16 %v67
  %v100 = vunpack.c.l.b16 %v68
  %v101 = vunpack.c.l.b16 %v69
  %v102 = vunpack.c.l.b16 %v70
  %v103 = vunpack.c.l.b16 %v71
  %v104 = vpack.c.b16 %v89, %v88
  %v105 = vpack.c.b16 %v91, %v90
  %v106 = vpack.c.b16 %v93, %v92
  %v107 = vpack.c.b16 %v95, %v94
  %v108 = vpack.c.b16 %v97, %v96
  %v109 = vpack.c.b16 %v99, %v98
  %v110 = vpack.c.b16 %v101, %v100
  %v111 = vpack.c.b16 %v103, %v102
  %120 = vmatprep.subr.bf16.mxu0 0
  %121 = vmatpush1.bf16.msra.mxu0 %v104
  %122 = vmatprep.subr.bf16.mxu0 0
  %123 = vmatpush1.bf16.msra.mxu0 %v105
  %124 = vmatprep.subr.bf16.mxu0 0
  %125 = vmatpush1.bf16.msra.mxu0 %v106
  %126 = vmatprep.subr.bf16.mxu0 0
  %127 = vmatpush1.bf16.msra.mxu0 %v107
  %128 = vmatprep.subr.bf16.mxu0 0
  %129 = vmatpush1.bf16.msra.mxu0 %v108
  %130 = vmatprep.subr.bf16.mxu0 0
  %131 = vmatpush1.bf16.msra.mxu0 %v109
  %132 = vmatprep.subr.bf16.mxu0 0
  %133 = vmatpush1.bf16.msra.mxu0 %v110
  %134 = vmatprep.subr.bf16.mxu0 0
  %135 = vmatpush1.bf16.msra.mxu0 %v111
  %136 = vmatprep.subr.bf16.mxu0 0
  %137 = vmatpush1.bf16.msra.mxu0 0
  %138 = vmatprep.subr.bf16.mxu0 0
  %139 = vmatpush1.bf16.msra.mxu0 0
  %140 = vmatprep.subr.bf16.mxu0 0
  %141 = vmatpush1.bf16.msra.mxu0 0
  %142 = vmatprep.subr.bf16.mxu0 0
  %143 = vmatpush1.bf16.msra.mxu0 0
  %144 = vmatprep.subr.bf16.mxu0 0
  %145 = vmatpush1.bf16.msra.mxu0 0
  %146 = vmatprep.subr.bf16.mxu0 0
  %147 = vmatpush1.bf16.msra.mxu0 0
  %148 = vmatprep.subr.bf16.mxu0 0
  %149 = vmatpush1.bf16.msra.mxu0 0
  %150 = vmatprep.subr.bf16.mxu0 0
  %151 = vmatpush1.bf16.msra.mxu0 0
  %152 = vmatprep.mubr.bf16.mxu0 0
  %153 = vmatmul.mubr.bf16.gmra.mrb[0].mxu0 %v55
  %v154 = vpop.f32.mrb[0].mxu0
  %v155 = vadd.f32 0.0, %v154
  %v156 = vpop.f32.mrb[0].mxu0
  %v157 = vpop.f32.mrb[0].mxu0
  %v158 = vadd.f32 0.0, %v157
  %v159 = vpop.f32.mrb[0].mxu0
  %160 = vdwg.mxu0
  %v161 = vpack.c.bf16 %v158, %v155
  %v163 = vunpack.c.l.b16 %v161
  %v164 = vunpack.c.h.b16 %v161
  %v165 = vpack.c.b16 %v163, %v163
  %v166 = vpack.c.b16 %v164, %v164
  %169 = vst [vmem:[%s3] sm:$0xf] %v165
  %170 = vst [vmem:[%s3 + $0x4] sm:$0xf] %v166
  // Predicated region
  $region18: #{decoder_trunk_forward.21} parent=0 // pred_check
    _
  $region19: #{decoder_trunk_forward.21} parent=0 // pred_check_branch
    %172 = sbr.rel (0) target = $region21
  $region20: #{decoder_trunk_forward.21} parent=0 // pred_region
    _
  $region21: #{decoder_trunk_forward.21} parent=0 // pred_fallthru
    _
  // Predicated region
  $region22: #{decoder_trunk_forward.21} parent=0 // pred_check
    _
  $region23: #{decoder_trunk_forward.21} parent=0 // pred_check_branch
    %174 = sbr.rel (0) target = $region25
  $region24: #{decoder_trunk_forward.21} parent=0 // pred_region
    _
  $region25: #{decoder_trunk_forward.21} parent=0 // pred_fallthru
    _

// kernel: decoder_trunk_forward.20
$region0: #{decoder_trunk_forward.20}
  #allocation0 [shape = 'u32[]', space=smem, size = 0x4, offset = 0x4, fixed_abs, tag = 'smem constant byte address 0x4 - core index']
  #allocation1 [shape = 'u32[144,128]{1,0:T(1,128)}', space=vmem, size = 0x12000, scoped, tag = 'internal scratch']
  %s0 = inlined_call_operand.vmem [shape: bf16[16,128], index: 0, kind: input, shape index: {}]
  %s1 = inlined_call_operand.vmem [shape: bf16[128,128], index: 1, kind: input, shape index: {}]
  %s2 = inlined_call_operand.vmem [shape: f32[16,128], index: 2, kind: input, shape index: {}]
  %s3 = inlined_call_operand.vmem [shape: f32[16,128], index: 3, kind: output, shape index: {}]
  %s4 = sld [smem:[#allocation0]]
  $region22: #{decoder_trunk_forward.20} parent=0
    _
  %s6 = ssub.s32 1, %s4
  %s7 = scalar_select 0, %s6, %s4
  // Predicated region
  $region2: #{decoder_trunk_forward.20} parent=0 // pred_check
    _
  $region3: #{decoder_trunk_forward.20} parent=0 // pred_check_branch
    %9 = sbr.rel (0) target = $region5
  $region4: #{decoder_trunk_forward.20} parent=0 // pred_region
    _
  $region5: #{decoder_trunk_forward.20} parent=0 // pred_fallthru
    _
  // Predicated region
  $region6: #{decoder_trunk_forward.20} parent=0 // pred_check
    _
  $region7: #{decoder_trunk_forward.20} parent=0 // pred_check_branch
    %11 = sbr.rel (0) target = $region9
  $region8: #{decoder_trunk_forward.20} parent=0 // pred_region
    _
  $region9: #{decoder_trunk_forward.20} parent=0 // pred_fallthru
    _
  // Predicated region
  $region10: #{decoder_trunk_forward.20} parent=0 // pred_check
    _
  $region11: #{decoder_trunk_forward.20} parent=0 // pred_check_branch
    %13 = sbr.rel (0) target = $region13
  $region12: #{decoder_trunk_forward.20} parent=0 // pred_region
    _
  $region13: #{decoder_trunk_forward.20} parent=0 // pred_fallthru
    _
  %v15 = vld [vmem:[%s0] sm:$0xf]
  %v16 = vld [vmem:[%s0 + $0x4] sm:$0xf]
  %v17 = vld [vmem:[%s1] sm:$0xf]
  %v18 = vld [vmem:[%s1 + $0x4] sm:$0xf]
  %v19 = vld [vmem:[%s1 + $0x8] sm:$0xf]
  %v20 = vld [vmem:[%s1 + $0xc] sm:$0xf]
  %v21 = vld [vmem:[%s1 + $0x10] sm:$0xf]
  %v22 = vld [vmem:[%s1 + $0x14] sm:$0xf]
  %v23 = vld [vmem:[%s1 + $0x18] sm:$0xf]
  %v24 = vld [vmem:[%s1 + $0x1c] sm:$0xf]
  %v25 = vld [vmem:[%s1 + $0x20] sm:$0xf]
  %v26 = vld [vmem:[%s1 + $0x24] sm:$0xf]
  %v27 = vld [vmem:[%s1 + $0x28] sm:$0xf]
  %v28 = vld [vmem:[%s1 + $0x2c] sm:$0xf]
  %v29 = vld [vmem:[%s1 + $0x30] sm:$0xf]
  %v30 = vld [vmem:[%s1 + $0x34] sm:$0xf]
  %v31 = vld [vmem:[%s1 + $0x38] sm:$0xf]
  %v32 = vld [vmem:[%s1 + $0x3c] sm:$0xf]
  %v35 = vunpack.c.l.b16 %v15
  %v36 = vunpack.c.l.b16 %v16
  %v37 = vpack.c.b16 %v36, %v35
  %v55 = vunpack.c.l.b16 %v17
  %v56 = vunpack.c.l.b16 %v18
  %v57 = vunpack.c.l.b16 %v19
  %v58 = vunpack.c.l.b16 %v20
  %v59 = vunpack.c.l.b16 %v21
  %v60 = vunpack.c.l.b16 %v22
  %v61 = vunpack.c.l.b16 %v23
  %v62 = vunpack.c.l.b16 %v24
  %v63 = vunpack.c.l.b16 %v25
  %v64 = vunpack.c.l.b16 %v26
  %v65 = vunpack.c.l.b16 %v27
  %v66 = vunpack.c.l.b16 %v28
  %v67 = vunpack.c.l.b16 %v29
  %v68 = vunpack.c.l.b16 %v30
  %v69 = vunpack.c.l.b16 %v31
  %v70 = vunpack.c.l.b16 %v32
  %v71 = vpack.c.b16 %v56, %v55
  %v72 = vpack.c.b16 %v58, %v57
  %v73 = vpack.c.b16 %v60, %v59
  %v74 = vpack.c.b16 %v62, %v61
  %v75 = vpack.c.b16 %v64, %v63
  %v76 = vpack.c.b16 %v66, %v65
  %v77 = vpack.c.b16 %v68, %v67
  %v78 = vpack.c.b16 %v70, %v69
  %87 = vmatprep.subr.bf16.mxu0 0
  %88 = vmatpush1.bf16.msra.mxu0 %v71
  %89 = vmatprep.subr.bf16.mxu0 0
  %90 = vmatpush1.bf16.msra.mxu0 %v72
  %91 = vmatprep.subr.bf16.mxu0 0
  %92 = vmatpush1.bf16.msra.mxu0 %v73
  %93 = vmatprep.subr.bf16.mxu0 0
  %94 = vmatpush1.bf16.msra.mxu0 %v74
  %95 = vmatprep.subr.bf16.mxu0 0
  %96 = vmatpush1.bf16.msra.mxu0 %v75
  %97 = vmatprep.subr.bf16.mxu0 0
  %98 = vmatpush1.bf16.msra.mxu0 %v76
  %99 = vmatprep.subr.bf16.mxu0 0
  %100 = vmatpush1.bf16.msra.mxu0 %v77
  %101 = vmatprep.subr.bf16.mxu0 0
  %102 = vmatpush1.bf16.msra.mxu0 %v78
  %103 = vmatprep.subr.bf16.mxu0 0
  %104 = vmatpush1.bf16.msra.mxu0 0
  %105 = vmatprep.subr.bf16.mxu0 0
  %106 = vmatpush1.bf16.msra.mxu0 0
  %107 = vmatprep.subr.bf16.mxu0 0
  %108 = vmatpush1.bf16.msra.mxu0 0
  %109 = vmatprep.subr.bf16.mxu0 0
  %110 = vmatpush1.bf16.msra.mxu0 0
  %111 = vmatprep.subr.bf16.mxu0 0
  %112 = vmatpush1.bf16.msra.mxu0 0
  %113 = vmatprep.subr.bf16.mxu0 0
  %114 = vmatpush1.bf16.msra.mxu0 0
  %115 = vmatprep.subr.bf16.mxu0 0
  %116 = vmatpush1.bf16.msra.mxu0 0
  %117 = vmatprep.subr.bf16.mxu0 0
  %118 = vmatpush1.bf16.msra.mxu0 0
  %119 = vmatprep.mubr.bf16.mxu0 0
  %120 = vmatmul.mubr.bf16.gmra.mrb[0].mxu0 %v37
  %v121 = vpop.f32.mrb[0].mxu0
  %v122 = vadd.f32 0.0, %v121
  %v123 = vpop.f32.mrb[0].mxu0
  %v124 = vpop.f32.mrb[0].mxu0
  %v125 = vadd.f32 0.0, %v124
  %v126 = vpop.f32.mrb[0].mxu0
  %127 = vdwg.mxu0
  %v128 = vld [vmem:[%s2] sm:$0xff]
  %v129 = vld [vmem:[%s2 + $0x8] sm:$0xff]
  %v130 = vadd.f32 %v128, %v122
  %v131 = vadd.f32 %v129, %v125
  %132 = vst [vmem:[%s3] sm:$0xff] %v130
  %133 = vst [vmem:[%s3 + $0x8] sm:$0xff] %v131
  // Predicated region
  $region14: #{decoder_trunk_forward.20} parent=0 // pred_check
    _
  $region15: #{decoder_trunk_forward.20} parent=0 // pred_check_branch
    %135 = sbr.rel (0) target = $region17
  $region16: #{decoder_trunk_forward.20} parent=0 // pred_region
    _
  $region17: #{decoder_trunk_forward.20} parent=0 // pred_fallthru
    _
  // Predicated region
  $region18: #{decoder_trunk_forward.20} parent=0 // pred_check
    _
  $region19: #{decoder_trunk_forward.20} parent=0 // pred_check_branch
    %137 = sbr.rel (0) target = $region21
  $region20: #{decoder_trunk_forward.20} parent=0 // pred_region
    _
  $region21: #{decoder_trunk_forward.20} parent=0 // pred_fallthru
    _

// kernel: decoder_trunk_forward.18
$region0: #{decoder_trunk_forward.18}
  #allocation0 [shape = 'u32[]', space=smem, size = 0x4, offset = 0x4, fixed_abs, tag = 'smem constant byte address 0x4 - core index']
  #allocation1 [shape = 'u32[144,128]{1,0:T(1,128)}', space=vmem, size = 0x12000, scoped, tag = 'internal scratch']
  #allocation2 [shape = 'bf16[16,128]{1,0:T(16,128)(2,1)}', space=vmem, size = 0x1000, scoped, tag = 'scratch operand']
  %s0 = inlined_call_operand.vmem [shape: f32[16,128], index: 0, kind: input, shape index: {}]
  %s1 = inlined_call_operand.vmem [shape: f32[1,128], index: 1, kind: input, shape index: {}]
  %s2 = inlined_call_operand.vmem [shape: bf16[128,384], index: 2, kind: input, shape index: {}]
  %s3 = inlined_call_operand.vmem [shape: bf16[16,384], index: 3, kind: output, shape index: {}]
  %s4 = sld [smem:[#allocation0]]
  $region26: #{decoder_trunk_forward.18} parent=0
    _
  %s6 = ssub.s32 1, %s4
  %s7 = scalar_select 0, %s6, %s4
  // Predicated region
  $region2: #{decoder_trunk_forward.18} parent=0 // pred_check
    _
  $region3: #{decoder_trunk_forward.18} parent=0 // pred_check_branch
    %9 = sbr.rel (0) target = $region5
  $region4: #{decoder_trunk_forward.18} parent=0 // pred_region
    _
  $region5: #{decoder_trunk_forward.18} parent=0 // pred_fallthru
    _
  // Predicated region
  $region6: #{decoder_trunk_forward.18} parent=0 // pred_check
    _
  $region7: #{decoder_trunk_forward.18} parent=0 // pred_check_branch
    %11 = sbr.rel (0) target = $region9
  $region8: #{decoder_trunk_forward.18} parent=0 // pred_region
    _
  $region9: #{decoder_trunk_forward.18} parent=0 // pred_fallthru
    _
  // Predicated region
  $region10: #{decoder_trunk_forward.18} parent=0 // pred_check
    _
  $region11: #{decoder_trunk_forward.18} parent=0 // pred_check_branch
    %13 = sbr.rel (0) target = $region13
  $region12: #{decoder_trunk_forward.18} parent=0 // pred_region
    _
  $region13: #{decoder_trunk_forward.18} parent=0 // pred_fallthru
    _
  %p15 = scmp.eq.s32.totalorder 0, 0
  // Predicated region
  $region14: #{decoder_trunk_forward.18} parent=0 // pred_check
    %p16 = pneg %p15
  $region15: #{decoder_trunk_forward.18} parent=0 // pred_check_branch
    %18 = sbr.rel (%p16) target = $region17
  $region16: #{decoder_trunk_forward.18} parent=0 // pred_region
    %v19 = vld [vmem:[%s0] sm:$0xff]
    %v20 = vld [vmem:[%s0 + $0x8] sm:$0xff]
    %21 = vadd.xlane.f32.xlu0 %v19
    %v22 = vpop.xlane.xlu0 %21
    %23 = vadd.xlane.f32.xlu0 %v20
    %v24 = vpop.xlane.xlu0 %23
    %v25 = vrcp.pop 128.0
    %v26 = vmul.f32 %v22, %v25
    %v27 = vmul.f32 %v24, %v25
    %v28 = vsub.f32 %v19, %v26
    %v29 = vsub.f32 %v20, %v27
    %v30 = vmul.f32 %v28, %v28
    %v31 = vmul.f32 %v29, %v29
    %32 = vadd.xlane.f32.xlu0 %v30
    %v33 = vpop.xlane.xlu0 %32
    %34 = vadd.xlane.f32.xlu0 %v31
    %v35 = vpop.xlane.xlu0 %34
    %v36 = vmul.f32 %v33, %v25
    %v37 = vmul.f32 %v35, %v25
    %v38 = vadd.f32 %v36, 1e-06
    %v39 = vadd.f32 %v37, 1e-06
    %v40 = vrsqrt.pop %v38
    %v41 = vrsqrt.pop %v39
    %v42 = vmul.f32 %v28, %v40
    %v43 = vmul.f32 %v29, %v41
    %v44 = vld [vmem:[%s1] sm:$0x1]
    %v46 = vlaneseq
    %v47 = vshrl.u32 %v46, 7
    %v48 = vsub.s32 0, %v47
    %v49 = vrot.slane %v44, %v48
    %v51 = vmul.f32 %v42, %v49
    %v52 = vmul.f32 %v43, %v49
    %v53 = vpack.c.bf16 %v52, %v51
    %54 = vst [vmem:[#allocation2] sm:$0xff] %v53
  $region17: #{decoder_trunk_forward.18} parent=0 // pred_fallthru
    _
  %v55 = vld [vmem:[#allocation2] sm:$0xff]
  %v56 = vld [vmem:[%s2] sm:$0xff]
  %v57 = vld [vmem:[%s2 + $0x8] sm:$0xf]
  %v58 = vld [vmem:[%s2 + $0xc] sm:$0xff]
  %v59 = vld [vmem:[%s2 + $0x14] sm:$0xf]
  %v60 = vld [vmem:[%s2 + $0x18] sm:$0xff]
  %v61 = vld [vmem:[%s2 + $0x20] sm:$0xf]
  %v62 = vld [vmem:[%s2 + $0x24] sm:$0xff]
  %v63 = vld [vmem:[%s2 + $0x2c] sm:$0xf]
  %v64 = vld [vmem:[%s2 + $0x30] sm:$0xff]
  %v65 = vld [vmem:[%s2 + $0x38] sm:$0xf]
  %v66 = vld [vmem:[%s2 + $0x3c] sm:$0xff]
  %v67 = vld [vmem:[%s2 + $0x44] sm:$0xf]
  %v68 = vld [vmem:[%s2 + $0x48] sm:$0xff]
  %v69 = vld [vmem:[%s2 + $0x50] sm:$0xf]
  %v70 = vld [vmem:[%s2 + $0x54] sm:$0xff]
  %v71 = vld [vmem:[%s2 + $0x5c] sm:$0xf]
  %v72 = vld [vmem:[%s2 + $0x60] sm:$0xff]
  %v73 = vld [vmem:[%s2 + $0x68] sm:$0xf]
  %v74 = vld [vmem:[%s2 + $0x6c] sm:$0xff]
  %v75 = vld [vmem:[%s2 + $0x74] sm:$0xf]
  %v76 = vld [vmem:[%s2 + $0x78] sm:$0xff]
  %v77 = vld [vmem:[%s2 + $0x80] sm:$0xf]
  %v78 = vld [vmem:[%s2 + $0x84] sm:$0xff]
  %v79 = vld [vmem:[%s2 + $0x8c] sm:$0xf]
  %v80 = vld [vmem:[%s2 + $0x90] sm:$0xff]
  %v81 = vld [vmem:[%s2 + $0x98] sm:$0xf]
  %v82 = vld [vmem:[%s2 + $0x9c] sm:$0xff]
  %v83 = vld [vmem:[%s2 + $0xa4] sm:$0xf]
  %v84 = vld [vmem:[%s2 + $0xa8] sm:$0xff]
  %v85 = vld [vmem:[%s2 + $0xb0] sm:$0xf]
  %v86 = vld [vmem:[%s2 + $0xb4] sm:$0xff]
  %v87 = vld [vmem:[%s2 + $0xbc] sm:$0xf]
  %v120 = vunpack.c.l.b16 %v56
  %v121 = vunpack.c.h.b16 %v56
  %v122 = vunpack.c.l.b16 %v57
  %v123 = vunpack.c.l.b16 %v58
  %v124 = vunpack.c.h.b16 %v58
  %v125 = vunpack.c.l.b16 %v59
  %v126 = vunpack.c.l.b16 %v60
  %v127 = vunpack.c.h.b16 %v60
  %v128 = vunpack.c.l.b16 %v61
  %v129 = vunpack.c.l.b16 %v62
  %v130 = vunpack.c.h.b16 %v62
  %v131 = vunpack.c.l.b16 %v63
  %v132 = vunpack.c.l.b16 %v64
  %v133 = vunpack.c.h.b16 %v64
  %v134 = vunpack.c.l.b16 %v65
  %v135 = vunpack.c.l.b16 %v66
  %v136 = vunpack.c.h.b16 %v66
  %v137 = vunpack.c.l.b16 %v67
  %v138 = vunpack.c.l.b16 %v68
  %v139 = vunpack.c.h.b16 %v68
  %v140 = vunpack.c.l.b16 %v69
  %v141 = vunpack.c.l.b16 %v70
  %v142 = vunpack.c.h.b16 %v70
  %v143 = vunpack.c.l.b16 %v71
  %v144 = vunpack.c.l.b16 %v72
  %v145 = vunpack.c.h.b16 %v72
  %v146 = vunpack.c.l.b16 %v73
  %v147 = vunpack.c.l.b16 %v74
  %v148 = vunpack.c.h.b16 %v74
  %v149 = vunpack.c.l.b16 %v75
  %v150 = vunpack.c.l.b16 %v76
  %v151 = vunpack.c.h.b16 %v76
  %v152 = vunpack.c.l.b16 %v77
  %v153 = vunpack.c.l.b16 %v78
  %v154 = vunpack.c.h.b16 %v78
  %v155 = vunpack.c.l.b16 %v79
  %v156 = vunpack.c.l.b16 %v80
  %v157 = vunpack.c.h.b16 %v80
  %v158 = vunpack.c.l.b16 %v81
  %v159 = vunpack.c.l.b16 %v82
  %v160 = vunpack.c.h.b16 %v82
  %v161 = vunpack.c.l.b16 %v83
  %v162 = vunpack.c.l.b16 %v84
  %v163 = vunpack.c.h.b16 %v84
  %v164 = vunpack.c.l.b16 %v85
  %v165 = vunpack.c.l.b16 %v86
  %v166 = vunpack.c.h.b16 %v86
  %v167 = vunpack.c.l.b16 %v87
  %v168 = vpack.c.b16 %v123, %v120
  %v169 = vpack.c.b16 %v124, %v121
  %v170 = vpack.c.b16 %v125, %v122
  %v171 = vpack.c.b16 %v129, %v126
  %v172 = vpack.c.b16 %v130, %v127
  %v173 = vpack.c.b16 %v131, %v128
  %v174 = vpack.c.b16 %v135, %v132
  %v175 = vpack.c.b16 %v136, %v133
  %v176 = vpack.c.b16 %v137, %v134
  %v177 = vpack.c.b16 %v141, %v138
  %v178 = vpack.c.b16 %v142, %v139
  %v179 = vpack.c.b16 %v143, %v140
  %v180 = vpack.c.b16 %v147, %v144
  %v181 = vpack.c.b16 %v148, %v145
  %v182 = vpack.c.b16 %v149, %v146
  %v183 = vpack.c.b16 %v153, %v150
  %v184 = vpack.c.b16 %v154, %v151
  %v185 = vpack.c.b16 %v155, %v152
  %v186 = vpack.c.b16 %v159, %v156
  %v187 = vpack.c.b16 %v160, %v157
  %v188 = vpack.c.b16 %v161, %v158
  %v189 = vpack.c.b16 %v165, %v162
  %v190 = vpack.c.b16 %v166, %v163
  %v191 = vpack.c.b16 %v167, %v164
  %216 = vmatprep.subr.bf16.mxu0 %v169
  %217 = vmatpush1.bf16.msra.mxu0 %v168
  %218 = vmatprep.subr.bf16.mxu0 %v172
  %219 = vmatpush1.bf16.msra.mxu0 %v171
  %220 = vmatprep.subr.bf16.mxu0 %v175
  %221 = vmatpush1.bf16.msra.mxu0 %v174
  %222 = vmatprep.subr.bf16.mxu0 %v178
  %223 = vmatpush1.bf16.msra.mxu0 %v177
  %224 = vmatprep.subr.bf16.mxu0 %v181
  %225 = vmatpush1.bf16.msra.mxu0 %v180
  %226 = vmatprep.subr.bf16.mxu0 %v184
  %227 = vmatpush1.bf16.msra.mxu0 %v183
  %228 = vmatprep.subr.bf16.mxu0 %v187
  %229 = vmatpush1.bf16.msra.mxu0 %v186
  %230 = vmatprep.subr.bf16.mxu0 %v190
  %231 = vmatpush1.bf16.msra.mxu0 %v189
  %232 = vmatprep.subr.bf16.mxu0 0
  %233 = vmatpush1.bf16.msra.mxu0 0
  %234 = vmatprep.subr.bf16.mxu0 0
  %235 = vmatpush1.bf16.msra.mxu0 0
  %236 = vmatprep.subr.bf16.mxu0 0
  %237 = vmatpush1.bf16.msra.mxu0 0
  %238 = vmatprep.subr.bf16.mxu0 0
  %239 = vmatpush1.bf16.msra.mxu0 0
  %240 = vmatprep.subr.bf16.mxu0 0
  %241 = vmatpush1.bf16.msra.mxu0 0
  %242 = vmatprep.subr.bf16.mxu0 0
  %243 = vmatpush1.bf16.msra.mxu0 0
  %244 = vmatprep.subr.bf16.mxu0 0
  %245 = vmatpush1.bf16.msra.mxu0 0
  %246 = vmatprep.subr.bf16.mxu0 0
  %247 = vmatpush1.bf16.msra.mxu0 0
  %248 = vmatprep.mubr.bf16.mxu0 0
  %249 = vmatmul.mubr.bf16.gmra.mrb[0].mxu0 %v55
  %v250 = vpop.f32.mrb[0].mxu0
  %v251 = vadd.f32 0.0, %v250
  %v252 = vpop.f32.mrb[0].mxu0
  %v253 = vadd.f32 0.0, %v252
  %v254 = vpop.f32.mrb[0].mxu0
  %v255 = vadd.f32 0.0, %v254
  %v256 = vpop.f32.mrb[0].mxu0
  %v257 = vadd.f32 0.0, %v256
  %258 = vdwg.mxu0
  %259 = vmatprep.subr.bf16.mxu0 0
  %260 = vmatpush1.bf16.msra.mxu0 %v170
  %261 = vmatprep.subr.bf16.mxu0 0
  %262 = vmatpush1.bf16.msra.mxu0 %v173
  %263 = vmatprep.subr.bf16.mxu0 0
  %264 = vmatpush1.bf16.msra.mxu0 %v176
  %265 = vmatprep.subr.bf16.mxu0 0
  %266 = vmatpush1.bf16.msra.mxu0 %v179
  %267 = vmatprep.subr.bf16.mxu0 0
  %268 = vmatpush1.bf16.msra.mxu0 %v182
  %269 = vmatprep.subr.bf16.mxu0 0
  %270 = vmatpush1.bf16.msra.mxu0 %v185
  %271 = vmatprep.subr.bf16.mxu0 0
  %272 = vmatpush1.bf16.msra.mxu0 %v188
  %273 = vmatprep.subr.bf16.mxu0 0
  %274 = vmatpush1.bf16.msra.mxu0 %v191
  %275 = vmatprep.subr.bf16.mxu0 0
  %276 = vmatpush1.bf16.msra.mxu0 0
  %277 = vmatprep.subr.bf16.mxu0 0
  %278 = vmatpush1.bf16.msra.mxu0 0
  %279 = vmatprep.subr.bf16.mxu0 0
  %280 = vmatpush1.bf16.msra.mxu0 0
  %281 = vmatprep.subr.bf16.mxu0 0
  %282 = vmatpush1.bf16.msra.mxu0 0
  %283 = vmatprep.subr.bf16.mxu0 0
  %284 = vmatpush1.bf16.msra.mxu0 0
  %285 = vmatprep.subr.bf16.mxu0 0
  %286 = vmatpush1.bf16.msra.mxu0 0
  %287 = vmatprep.subr.bf16.mxu0 0
  %288 = vmatpush1.bf16.msra.mxu0 0
  %289 = vmatprep.subr.bf16.mxu0 0
  %290 = vmatpush1.bf16.msra.mxu0 0
  %291 = vmatprep.mubr.bf16.mxu0 0
  %292 = vmatmul.mubr.bf16.gmra.mrb[0].mxu0 %v55
  %v293 = vpop.f32.mrb[0].mxu0
  %v294 = vadd.f32 0.0, %v293
  %v295 = vpop.f32.mrb[0].mxu0
  %v296 = vpop.f32.mrb[0].mxu0
  %v297 = vadd.f32 0.0, %v296
  %v298 = vpop.f32.mrb[0].mxu0
  %299 = vdwg.mxu0
  %v300 = vpack.c.bf16 %v255, %v251
  %v301 = vpack.c.bf16 %v257, %v253
  %v302 = vpack.c.bf16 %v297, %v294
  %v306 = vunpack.c.l.b16 %v300
  %v307 = vunpack.c.l.b16 %v301
  %v308 = vunpack.c.l.b16 %v302
  %v309 = vunpack.c.h.b16 %v300
  %v310 = vunpack.c.h.b16 %v301
  %v311 = vunpack.c.h.b16 %v302
  %v312 = vpack.c.b16 %v307, %v306
  %v313 = vpack.c.b16 %v308, %v308
  %v314 = vpack.c.b16 %v310, %v309
  %v315 = vpack.c.b16 %v311, %v311
  %320 = vst [vmem:[%s3] sm:$0xff] %v312
  %321 = vst [vmem:[%s3 + $0x8] sm:$0xf] %v313
  %322 = vst [vmem:[%s3 + $0xc] sm:$0xff] %v314
  %323 = vst [vmem:[%s3 + $0x14] sm:$0xf] %v315
  // Predicated region
  $region18: #{decoder_trunk_forward.18} parent=0 // pred_check
    _
  $region19: #{decoder_trunk_forward.18} parent=0 // pred_check_branch
    %325 = sbr.rel (0) target = $region21
  $region20: #{decoder_trunk_forward.18} parent=0 // pred_region
    _
  $region21: #{decoder_trunk_forward.18} parent=0 // pred_fallthru
    _
  // Predicated region
  $region22: #{decoder_trunk_forward.18} parent=0 // pred_check
    _
  $region23: #{decoder_trunk_forward.18} parent=0 // pred_check_branch
    %327 = sbr.rel (0) target = $region25
  $region24: #{decoder_trunk_forward.18} parent=0 // pred_region
    _
  $region25: #{decoder_trunk_forward.18} parent=0 // pred_fallthru
    _

// kernel: decoder_trunk_forward.22
$region0: #{decoder_trunk_forward.22}
  #allocation0 [shape = 'u32[]', space=smem, size = 0x4, offset = 0x4, fixed_abs, tag = 'smem constant byte address 0x4 - core index']
  #allocation1 [shape = 'u32[144,128]{1,0:T(1,128)}', space=vmem, size = 0x12000, scoped, tag = 'internal scratch']
  #allocation2 [shape = 'bf16[32,128]{1,0:T(16,128)(2,1)}', space=vmem, size = 0x2000, scoped, tag = 'scratch operand']
  %s0 = inlined_call_operand.vmem [shape: f32[32,128], index: 0, kind: input, shape index: {}]
  %s1 = inlined_call_operand.vmem [shape: f32[1,128], index: 1, kind: input, shape index: {}]
  %s2 = inlined_call_operand.vmem [shape: bf16[128,256], index: 2, kind: input, shape index: {}]
  %s3 = inlined_call_operand.vmem [shape: bf16[32,256], index: 3, kind: output, shape index: {}]
  %s4 = sld [smem:[#allocation0]]
  $region26: #{decoder_trunk_forward.22} parent=0
    _
  %s6 = ssub.s32 1, %s4
  %s7 = scalar_select 0, %s6, %s4
  // Predicated region
  $region2: #{decoder_trunk_forward.22} parent=0 // pred_check
    _
  $region3: #{decoder_trunk_forward.22} parent=0 // pred_check_branch
    %9 = sbr.rel (0) target = $region5
  $region4: #{decoder_trunk_forward.22} parent=0 // pred_region
    _
  $region5: #{decoder_trunk_forward.22} parent=0 // pred_fallthru
    _
  // Predicated region
  $region6: #{decoder_trunk_forward.22} parent=0 // pred_check
    _
  $region7: #{decoder_trunk_forward.22} parent=0 // pred_check_branch
    %11 = sbr.rel (0) target = $region9
  $region8: #{decoder_trunk_forward.22} parent=0 // pred_region
    _
  $region9: #{decoder_trunk_forward.22} parent=0 // pred_fallthru
    _
  // Predicated region
  $region10: #{decoder_trunk_forward.22} parent=0 // pred_check
    _
  $region11: #{decoder_trunk_forward.22} parent=0 // pred_check_branch
    %13 = sbr.rel (0) target = $region13
  $region12: #{decoder_trunk_forward.22} parent=0 // pred_region
    _
  $region13: #{decoder_trunk_forward.22} parent=0 // pred_fallthru
    _
  %p15 = scmp.eq.s32.totalorder 0, 0
  // Predicated region
  $region14: #{decoder_trunk_forward.22} parent=0 // pred_check
    %p16 = pneg %p15
  $region15: #{decoder_trunk_forward.22} parent=0 // pred_check_branch
    %18 = sbr.rel (%p16) target = $region17
  $region16: #{decoder_trunk_forward.22} parent=0 // pred_region
    %v19 = vld [vmem:[%s0] sm:$0xff]
    %v20 = vld [vmem:[%s0 + $0x8] sm:$0xff]
    %v21 = vld [vmem:[%s0 + $0x10] sm:$0xff]
    %v22 = vld [vmem:[%s0 + $0x18] sm:$0xff]
    %23 = vadd.xlane.f32.xlu0 %v19
    %v24 = vpop.xlane.xlu0 %23
    %25 = vadd.xlane.f32.xlu0 %v20
    %v26 = vpop.xlane.xlu0 %25
    %27 = vadd.xlane.f32.xlu0 %v21
    %v28 = vpop.xlane.xlu0 %27
    %29 = vadd.xlane.f32.xlu0 %v22
    %v30 = vpop.xlane.xlu0 %29
    %v31 = vrcp.pop 128.0
    %v32 = vmul.f32 %v24, %v31
    %v33 = vmul.f32 %v26, %v31
    %v34 = vmul.f32 %v28, %v31
    %v35 = vmul.f32 %v30, %v31
    %v36 = vsub.f32 %v19, %v32
    %v37 = vsub.f32 %v20, %v33
    %v38 = vsub.f32 %v21, %v34
    %v39 = vsub.f32 %v22, %v35
    %v40 = vmul.f32 %v36, %v36
    %v41 = vmul.f32 %v37, %v37
    %v42 = vmul.f32 %v38, %v38
    %v43 = vmul.f32 %v39, %v39
    %44 = vadd.xlane.f32.xlu0 %v40
    %v45 = vpop.xlane.xlu0 %44
    %46 = vadd.xlane.f32.xlu0 %v41
    %v47 = vpop.xlane.xlu0 %46
    %48 = vadd.xlane.f32.xlu0 %v42
    %v49 = vpop.xlane.xlu0 %48
    %50 = vadd.xlane.f32.xlu0 %v43
    %v51 = vpop.xlane.xlu0 %50
    %v52 = vmul.f32 %v45, %v31
    %v53 = vmul.f32 %v47, %v31
    %v54 = vmul.f32 %v49, %v31
    %v55 = vmul.f32 %v51, %v31
    %v56 = vadd.f32 %v52, 1e-06
    %v57 = vadd.f32 %v53, 1e-06
    %v58 = vadd.f32 %v54, 1e-06
    %v59 = vadd.f32 %v55, 1e-06
    %v60 = vrsqrt.pop %v56
    %v61 = vrsqrt.pop %v57
    %v62 = vrsqrt.pop %v58
    %v63 = vrsqrt.pop %v59
    %v64 = vmul.f32 %v36, %v60
    %v65 = vmul.f32 %v37, %v61
    %v66 = vmul.f32 %v38, %v62
    %v67 = vmul.f32 %v39, %v63
    %v68 = vld [vmem:[%s1] sm:$0x1]
    %v70 = vlaneseq
    %v71 = vshrl.u32 %v70, 7
    %v72 = vsub.s32 0, %v71
    %v73 = vrot.slane %v68, %v72
    %v75 = vmul.f32 %v64, %v73
    %v76 = vmul.f32 %v65, %v73
    %v77 = vmul.f32 %v66, %v73
    %v78 = vmul.f32 %v67, %v73
    %v79 = vpack.c.bf16 %v76, %v75
    %v80 = vpack.c.bf16 %v78, %v77
    %81 = vst [vmem:[#allocation2] sm:$0xff] %v79
    %82 = vst [vmem:[#allocation2 + $0x8] sm:$0xff] %v80
  $region17: #{decoder_trunk_forward.22} parent=0 // pred_fallthru
    _
  %v83 = vld [vmem:[#allocation2] sm:$0xff]
  %v84 = vld [vmem:[#allocation2 + $0x8] sm:$0xff]
  %v85 = vld [vmem:[%s2] sm:$0xff]
  %v86 = vld [vmem:[%s2 + $0x8] sm:$0xff]
  %v87 = vld [vmem:[%s2 + $0x10] sm:$0xff]
  %v88 = vld [vmem:[%s2 + $0x18] sm:$0xff]
  %v89 = vld [vmem:[%s2 + $0x20] sm:$0xff]
  %v90 = vld [vmem:[%s2 + $0x28] sm:$0xff]
  %v91 = vld [vmem:[%s2 + $0x30] sm:$0xff]
  %v92 = vld [vmem:[%s2 + $0x38] sm:$0xff]
  %v93 = vld [vmem:[%s2 + $0x40] sm:$0xff]
  %v94 = vld [vmem:[%s2 + $0x48] sm:$0xff]
  %v95 = vld [vmem:[%s2 + $0x50] sm:$0xff]
  %v96 = vld [vmem:[%s2 + $0x58] sm:$0xff]
  %v97 = vld [vmem:[%s2 + $0x60] sm:$0xff]
  %v98 = vld [vmem:[%s2 + $0x68] sm:$0xff]
  %v99 = vld [vmem:[%s2 + $0x70] sm:$0xff]
  %v100 = vld [vmem:[%s2 + $0x78] sm:$0xff]
  %v117 = vunpack.c.l.b16 %v85
  %v118 = vunpack.c.h.b16 %v85
  %v119 = vunpack.c.l.b16 %v86
  %v120 = vunpack.c.h.b16 %v86
  %v121 = vunpack.c.l.b16 %v87
  %v122 = vunpack.c.h.b16 %v87
  %v123 = vunpack.c.l.b16 %v88
  %v124 = vunpack.c.h.b16 %v88
  %v125 = vunpack.c.l.b16 %v89
  %v126 = vunpack.c.h.b16 %v89
  %v127 = vunpack.c.l.b16 %v90
  %v128 = vunpack.c.h.b16 %v90
  %v129 = vunpack.c.l.b16 %v91
  %v130 = vunpack.c.h.b16 %v91
  %v131 = vunpack.c.l.b16 %v92
  %v132 = vunpack.c.h.b16 %v92
  %v133 = vunpack.c.l.b16 %v93
  %v134 = vunpack.c.h.b16 %v93
  %v135 = vunpack.c.l.b16 %v94
  %v136 = vunpack.c.h.b16 %v94
  %v137 = vunpack.c.l.b16 %v95
  %v138 = vunpack.c.h.b16 %v95
  %v139 = vunpack.c.l.b16 %v96
  %v140 = vunpack.c.h.b16 %v96
  %v141 = vunpack.c.l.b16 %v97
  %v142 = vunpack.c.h.b16 %v97
  %v143 = vunpack.c.l.b16 %v98
  %v144 = vunpack.c.h.b16 %v98
  %v145 = vunpack.c.l.b16 %v99
  %v146 = vunpack.c.h.b16 %v99
  %v147 = vunpack.c.l.b16 %v100
  %v148 = vunpack.c.h.b16 %v100
  %v149 = vpack.c.b16 %v119, %v117
  %v150 = vpack.c.b16 %v120, %v118
  %v151 = vpack.c.b16 %v123, %v121
  %v152 = vpack.c.b16 %v124, %v122
  %v153 = vpack.c.b16 %v127, %v125
  %v154 = vpack.c.b16 %v128, %v126
  %v155 = vpack.c.b16 %v131, %v129
  %v156 = vpack.c.b16 %v132, %v130
  %v157 = vpack.c.b16 %v135, %v133
  %v158 = vpack.c.b16 %v136, %v134
  %v159 = vpack.c.b16 %v139, %v137
  %v160 = vpack.c.b16 %v140, %v138
  %v161 = vpack.c.b16 %v143, %v141
  %v162 = vpack.c.b16 %v144, %v142
  %v163 = vpack.c.b16 %v147, %v145
  %v164 = vpack.c.b16 %v148, %v146
  %181 = vmatprep.subr.bf16.mxu0 %v150
  %182 = vmatpush1.bf16.msra.mxu0 %v149
  %183 = vmatprep.subr.bf16.mxu0 %v152
  %184 = vmatpush1.bf16.msra.mxu0 %v151
  %185 = vmatprep.subr.bf16.mxu0 %v154
  %186 = vmatpush1.bf16.msra.mxu0 %v153
  %187 = vmatprep.subr.bf16.mxu0 %v156
  %188 = vmatpush1.bf16.msra.mxu0 %v155
  %189 = vmatprep.subr.bf16.mxu0 %v158
  %190 = vmatpush1.bf16.msra.mxu0 %v157
  %191 = vmatprep.subr.bf16.mxu0 %v160
  %192 = vmatpush1.bf16.msra.mxu0 %v159
  %193 = vmatprep.subr.bf16.mxu0 %v162
  %194 = vmatpush1.bf16.msra.mxu0 %v161
  %195 = vmatprep.subr.bf16.mxu0 %v164
  %196 = vmatpush1.bf16.msra.mxu0 %v163
  %197 = vmatprep.subr.bf16.mxu0 0
  %198 = vmatpush1.bf16.msra.mxu0 0
  %199 = vmatprep.subr.bf16.mxu0 0
  %200 = vmatpush1.bf16.msra.mxu0 0
  %201 = vmatprep.subr.bf16.mxu0 0
  %202 = vmatpush1.bf16.msra.mxu0 0
  %203 = vmatprep.subr.bf16.mxu0 0
  %204 = vmatpush1.bf16.msra.mxu0 0
  %205 = vmatprep.subr.bf16.mxu0 0
  %206 = vmatpush1.bf16.msra.mxu0 0
  %207 = vmatprep.subr.bf16.mxu0 0
  %208 = vmatpush1.bf16.msra.mxu0 0
  %209 = vmatprep.subr.bf16.mxu0 0
  %210 = vmatpush1.bf16.msra.mxu0 0
  %211 = vmatprep.subr.bf16.mxu0 0
  %212 = vmatpush1.bf16.msra.mxu0 0
  %213 = vmatprep.mubr.bf16.mxu0 0
  %214 = vmatmul.mubr.bf16.gmra.mrb[0].mxu0 %v83
  %v215 = vpop.f32.mrb[0].mxu0
  %v216 = vadd.f32 0.0, %v215
  %v217 = vpop.f32.mrb[0].mxu0
  %v218 = vadd.f32 0.0, %v217
  %v219 = vpop.f32.mrb[0].mxu0
  %v220 = vadd.f32 0.0, %v219
  %v221 = vpop.f32.mrb[0].mxu0
  %v222 = vadd.f32 0.0, %v221
  %223 = vmatprep.mubr.bf16.mxu0 0
  %224 = vmatmul.mubr.bf16.gmra.mrb[0].mxu0 %v84
  %v225 = vpop.f32.mrb[0].mxu0
  %v226 = vadd.f32 0.0, %v225
  %v227 = vpop.f32.mrb[0].mxu0
  %v228 = vadd.f32 0.0, %v227
  %v229 = vpop.f32.mrb[0].mxu0
  %v230 = vadd.f32 0.0, %v229
  %v231 = vpop.f32.mrb[0].mxu0
  %v232 = vadd.f32 0.0, %v231
  %233 = vdwg.mxu0
  %v234 = vpack.c.bf16 %v220, %v216
  %v235 = vpack.c.bf16 %v222, %v218
  %v236 = vpack.c.bf16 %v230, %v226
  %v237 = vpack.c.bf16 %v232, %v228
  %v242 = vunpack.c.l.b16 %v234
  %v243 = vunpack.c.l.b16 %v235
  %v244 = vunpack.c.h.b16 %v234
  %v245 = vunpack.c.h.b16 %v235
  %v246 = vunpack.c.l.b16 %v236
  %v247 = vunpack.c.l.b16 %v237
  %v248 = vunpack.c.h.b16 %v236
  %v249 = vunpack.c.h.b16 %v237
  %v250 = vpack.c.b16 %v243, %v242
  %v251 = vpack.c.b16 %v245, %v244
  %v252 = vpack.c.b16 %v247, %v246
  %v253 = vpack.c.b16 %v249, %v248
  %258 = vst [vmem:[%s3] sm:$0xff] %v250
  %259 = vst [vmem:[%s3 + $0x8] sm:$0xff] %v251
  %260 = vst [vmem:[%s3 + $0x10] sm:$0xff] %v252
  %261 = vst [vmem:[%s3 + $0x18] sm:$0xff] %v253
  // Predicated region
  $region18: #{decoder_trunk_forward.22} parent=0 // pred_check
    _
  $region19: #{decoder_trunk_forward.22} parent=0 // pred_check_branch
    %263 = sbr.rel (0) target = $region21
  $region20: #{decoder_trunk_forward.22} parent=0 // pred_region
    _
  $region21: #{decoder_trunk_forward.22} parent=0 // pred_fallthru
    _
  // Predicated region
  $region22: #{decoder_trunk_forward.22} parent=0 // pred_check
    _
  $region23: #{decoder_trunk_forward.22} parent=0 // pred_check_branch
    %265 = sbr.rel (0) target = $region25
  $region24: #{decoder_trunk_forward.22} parent=0 // pred_region
    _
  $region25: #{decoder_trunk_forward.22} parent=0 // pred_fallthru
    _

// kernel: decoder_trunk_forward.23
$region0: #{decoder_trunk_forward.23}
  #allocation0 [shape = 'u32[]', space=smem, size = 0x4, offset = 0x4, fixed_abs, tag = 'smem constant byte address 0x4 - core index']
  #allocation1 [shape = 'u32[144,128]{1,0:T(1,128)}', space=vmem, size = 0x12000, scoped, tag = 'internal scratch']
  %s0 = inlined_call_operand.vmem [shape: bf16[2,8,128], index: 0, kind: input, shape index: {}]
  %s1 = inlined_call_operand.vmem [shape: bf16[2,16,256], index: 1, kind: input, shape index: {}]
  %s2 = inlined_call_operand.vmem [shape: bf16[2,8,16], index: 2, kind: input, shape index: {}]
  %s3 = inlined_call_operand.vmem [shape: bf16[2,8,128], index: 3, kind: output, shape index: {}]
  %s4 = sld [smem:[#allocation0]]
  $region45: #{decoder_trunk_forward.23} parent=0
    _
  %s6 = ssub.s32 1, %s4
  %s7 = scalar_select 0, %s6, %s4
  loop: start=0, step=1, limit=4
  $region2: #{decoder_trunk_forward.23} parent=0 // loop_pre_header
    _
  $region3: #{decoder_trunk_forward.23} parent=0 // loop_header
    %s9 = sphi 0, %s13
    %p10 = scmp.ge.s32.totalorder %s9, 4
    %s16 = sphi 0, %s28
    %s17 = sphi 0, %s24
    %s18 = sphi 0, %s16
    %s19 = sphi 0, %s17
    %s20 = sphi 0, %s18
    %s21 = sphi 0, %s19
    %s33 = sphi 0, %s35
    %s36 = sphi 0, %s33
    %s37 = sphi 0, %s36
    %s53 = sphi 0, %s37
    %s59 = sphi 0, %s61
    %s62 = sphi 0, %s59
    %s63 = sphi 0, %s62
    %s79 = sphi 0, %s63
    %s87 = sphi 0, %s89
    %s90 = sphi 0, %s87
    %s91 = sphi 0, %s90
    %s107 = sphi 0, %s91
    %s115 = sphi 0, %s117
    %s118 = sphi 0, %s115
    %s119 = sphi 0, %s118
    %s135 = sphi 0, %s119
  $region4: #{decoder_trunk_forward.23} parent=0 // loop_header_branch
    %12 = sbr.rel (%p10) target = $region8
  $region5: #{decoder_trunk_forward.23} parent=0 // loop_body
    %s14 = ssub.s32 %s9, 1
    %s15 = ssub.s32 %s9, 2
    %s22 = sadd.s32 1, %s17
    %p23 = scmp.ge.s32.totalorder %s22, 1
    %s24 = scalar_select %p23, 0, %s22
    %s25 = sadd.s32 1, %s16
    %s26 = scalar_select %p23, %s25, %s16
    %p27 = scmp.ge.s32.totalorder %s26, 2
    %s28 = scalar_select %p27, 0, %s26
    %s29 = ssub.s32 %s16, %s28
    %s30 = ssub.s32 %s17, %s24
    %s31 = sor.u32 %s29, %s30
    %p32 = scmp.eq.s32.totalorder %s31, 0
    %s34 = sadd.s32 %s33, 1
    %s35 = scalar_select %p32, %s33, %s34
    %p38 = pneg %p32
    %p39 = scmp.eq.s32.totalorder %s9, 1
    %p40 = por %p38, %p39
    %p41 = scmp.ne.s32.totalorder %s33, %s36
    %p42 = scmp.eq.s32.totalorder %s9, 0
    %p43 = por %p41, %p42
    %p44 = scmp.ne.s32.totalorder %s33, %s36
    %p45 = scmp.eq.s32.totalorder %s14, 1
    %p46 = por %p44, %p45
    %p47 = scmp.ne.s32.totalorder %s36, %s37
    %p48 = scmp.eq.s32.totalorder %s14, 0
    %p49 = por %p47, %p48
    %p50 = scmp.ne.s32.totalorder %s36, %s37
    %p51 = scmp.eq.s32.totalorder %s15, 1
    %p52 = por %p50, %p51
    %p54 = scmp.ne.s32.totalorder %s37, %s53
    %p55 = scmp.eq.s32.totalorder %s15, 0
    %p56 = por %p54, %p55
    %s57 = ssub.s32 %s16, %s28
    %p58 = scmp.eq.s32.totalorder %s57, 0
    %s60 = sadd.s32 %s59, 1
    %s61 = scalar_select %p58, %s59, %s60
    %p64 = pneg %p58
    %p65 = scmp.eq.s32.totalorder %s9, 1
    %p66 = por %p64, %p65
    %p67 = scmp.ne.s32.totalorder %s59, %s62
    %p68 = scmp.eq.s32.totalorder %s9, 0
    %p69 = por %p67, %p68
    %p70 = scmp.ne.s32.totalorder %s59, %s62
    %p71 = scmp.eq.s32.totalorder %s14, 1
    %p72 = por %p70, %p71
    %p73 = scmp.ne.s32.totalorder %s62, %s63
    %p74 = scmp.eq.s32.totalorder %s14, 0
    %p75 = por %p73, %p74
    %p76 = scmp.ne.s32.totalorder %s62, %s63
    %p77 = scmp.eq.s32.totalorder %s15, 1
    %p78 = por %p76, %p77
    %p80 = scmp.ne.s32.totalorder %s63, %s79
    %p81 = scmp.eq.s32.totalorder %s15, 0
    %p82 = por %p80, %p81
    %s83 = ssub.s32 %s16, %s28
    %s84 = ssub.s32 %s17, %s24
    %s85 = sor.u32 %s83, %s84
    %p86 = scmp.eq.s32.totalorder %s85, 0
    %s88 = sadd.s32 %s87, 1
    %s89 = scalar_select %p86, %s87, %s88
    %p92 = pneg %p86
    %p93 = scmp.eq.s32.totalorder %s9, 1
    %p94 = por %p92, %p93
    %p95 = scmp.ne.s32.totalorder %s87, %s90
    %p96 = scmp.eq.s32.totalorder %s9, 0
    %p97 = por %p95, %p96
    %p98 = scmp.ne.s32.totalorder %s87, %s90
    %p99 = scmp.eq.s32.totalorder %s14, 1
    %p100 = por %p98, %p99
    %p101 = scmp.ne.s32.totalorder %s90, %s91
    %p102 = scmp.eq.s32.totalorder %s14, 0
    %p103 = por %p101, %p102
    %p104 = scmp.ne.s32.totalorder %s90, %s91
    %p105 = scmp.eq.s32.totalorder %s15, 1
    %p106 = por %p104, %p105
    %p108 = scmp.ne.s32.totalorder %s91, %s107
    %p109 = scmp.eq.s32.totalorder %s15, 0
    %p110 = por %p108, %p109
    %s111 = ssub.s32 %s16, %s28
    %s112 = ssub.s32 %s17, %s24
    %s113 = sor.u32 %s111, %s112
    %p114 = scmp.eq.s32.totalorder %s113, 0
    %s116 = sadd.s32 %s115, 1
    %s117 = scalar_select %p114, %s115, %s116
    %p120 = pneg %p114
    %p121 = scmp.eq.s32.totalorder %s9, 1
    %p122 = por %p120, %p121
    %p123 = scmp.ne.s32.totalorder %s115, %s118
    %p124 = scmp.eq.s32.totalorder %s9, 0
    %p125 = por %p123, %p124
    %p126 = scmp.ne.s32.totalorder %s115, %s118
    %p127 = scmp.eq.s32.totalorder %s14, 1
    %p128 = por %p126, %p127
    %p129 = scmp.ne.s32.totalorder %s118, %s119
    %p130 = scmp.eq.s32.totalorder %s14, 0
    %p131 = por %p129, %p130
    %p132 = scmp.ne.s32.totalorder %s118, %s119
    %p133 = scmp.eq.s32.totalorder %s15, 1
    %p134 = por %p132, %p133
    %p136 = scmp.ne.s32.totalorder %s119, %s135
    %p137 = scmp.eq.s32.totalorder %s15, 0
    %p138 = por %p136, %p137
    %p139 = scmp.le.s32.totalorder 1, %s9
    %p140 = scmp.lt.s32.totalorder %s9, 3
    %p141 = pnand %p139, %p140
    %p142 = pneg %p141
    // Predicated region
    $region9: #{decoder_trunk_forward.23} parent=5 // pred_check
      _
    $region10: #{decoder_trunk_forward.23} parent=5 // pred_check_branch
      %144 = sbr.rel (%p141) target = $region12
    $region11: #{decoder_trunk_forward.23} parent=5 // pred_region
      %s145 = ssub.s32 %s9, 1
    $region12: #{decoder_trunk_forward.23} parent=5 // pred_fallthru
      _
    %p146 = scmp.lt.s32.totalorder %s9, 2
    // Predicated region
    $region13: #{decoder_trunk_forward.23} parent=5 // pred_check
      %p147 = pneg %p146
    $region14: #{decoder_trunk_forward.23} parent=5 // pred_check_branch
      %149 = sbr.rel (%p147) target = $region16
    $region15: #{decoder_trunk_forward.23} parent=5 // pred_region
      // Predicated region
      $region17: #{decoder_trunk_forward.23} parent=15 // pred_check
        %p150 = pneg %p43
      $region18: #{decoder_trunk_forward.23} parent=15 // pred_check_branch
        %152 = sbr.rel (%p150) target = $region20
      $region19: #{decoder_trunk_forward.23} parent=15 // pred_region
        %p153 = scmp.lt.s32.totalorder %s16, 1
        %s154 = scalar_select %p153, %s16, 1
        %p155 = scmp.lt.s32.totalorder %s17, 0
        %s156 = scalar_select %p155, %s17, 0
        %s157 = sadd.s32 %s156, %s154
        %s158 = smul.addr %s157, 4
        %s159 = scalar_lea.vmem %s0, %s158
      $region20: #{decoder_trunk_forward.23} parent=15 // pred_fallthru
        _
      // Predicated region
      $region21: #{decoder_trunk_forward.23} parent=15 // pred_check
        %p160 = pneg %p69
      $region22: #{decoder_trunk_forward.23} parent=15 // pred_check_branch
        %162 = sbr.rel (%p160) target = $region24
      $region23: #{decoder_trunk_forward.23} parent=15 // pred_region
        %p163 = scmp.lt.s32.totalorder %s16, 1
        %s164 = scalar_select %p163, %s16, 1
        %s165 = smul.addr %s164, 4
        %s166 = smul.addr %s165, 4
        %s167 = scalar_lea.vmem %s1, %s166
      $region24: #{decoder_trunk_forward.23} parent=15 // pred_fallthru
        _
      // Predicated region
      $region25: #{decoder_trunk_forward.23} parent=15 // pred_check
        %p168 = pneg %p97
      $region26: #{decoder_trunk_forward.23} parent=15 // pred_check_branch
        %170 = sbr.rel (%p168) target = $region28
      $region27: #{decoder_trunk_forward.23} parent=15 // pred_region
        %p171 = scmp.lt.s32.totalorder %s16, 1
        %s172 = scalar_select %p171, %s16, 1
        %p173 = scmp.lt.s32.totalorder %s17, 0
        %s174 = scalar_select %p173, %s17, 0
        %s175 = sadd.s32 %s174, %s172
        %s176 = smul.addr %s175, 4
        %s177 = scalar_lea.vmem %s2, %s176
      $region28: #{decoder_trunk_forward.23} parent=15 // pred_fallthru
        _
    $region16: #{decoder_trunk_forward.23} parent=5 // pred_fallthru
      _
    %p178 = scmp.le.s32.totalorder 1, %s9
    %p179 = scmp.lt.s32.totalorder %s9, 3
    %p180 = pnand %p178, %p179
    %p181 = pneg %p180
    // Predicated region
    $region29: #{decoder_trunk_forward.23} parent=5 // pred_check
      _
    $region30: #{decoder_trunk_forward.23} parent=5 // pred_check_branch
      %183 = sbr.rel (%p180) target = $region32
    $region31: #{decoder_trunk_forward.23} parent=5 // pred_region
      %s184 = ssub.s32 %s9, 1
      %p185 = scmp.lt.s32.totalorder %s18, 1
      %s186 = scalar_select %p185, %s18, 1
      %p187 = scmp.lt.s32.totalorder %s19, 0
      %s188 = scalar_select %p187, %s19, 0
      %s189 = sadd.s32 %s188, %s186
      %s190 = smul.addr %s189, 4
      %s191 = scalar_lea.vmem %s0, %s190
      %p192 = pneg %p49
      %p193 = pneg %p46
      %p194 = scmp.lt.s32.totalorder %s18, 1
      %s195 = scalar_select %p194, %s18, 1
      %s196 = smul.addr %s195, 4
      %s197 = smul.addr %s196, 4
      %s198 = scalar_lea.vmem %s1, %s197
      %p199 = pneg %p75
      %p200 = pneg %p72
      %p201 = scmp.lt.s32.totalorder %s18, 1
      %s202 = scalar_select %p201, %s18, 1
      %p203 = scmp.lt.s32.totalorder %s19, 0
      %s204 = scalar_select %p203, %s19, 0
      %s205 = sadd.s32 %s204, %s202
      %s206 = smul.addr %s205, 4
      %s207 = scalar_lea.vmem %s2, %s206
      %p208 = pneg %p103
      %p209 = pneg %p100
      %p210 = pneg %p131
      %p211 = pneg %p128
      %p212 = scmp.lt.s32.totalorder %s18, 1
      %s213 = scalar_select %p212, %s18, 1
      %p214 = scmp.lt.s32.totalorder %s19, 0
      %s215 = scalar_select %p214, %s19, 0
      %s216 = sadd.s32 %s215, %s213
      %s217 = smul.addr %s216, 4
      %s218 = scalar_lea.vmem %s3, %s217
      %p219 = scmp.lt.s32.totalorder %s18, 1
      %s220 = scalar_select %p219, %s18, 1
      %p221 = scmp.lt.s32.totalorder %s19, 0
      %s222 = scalar_select %p221, %s19, 0
      %s223 = sadd.s32 %s222, %s220
      %s224 = smul.addr %s223, 4
      %s225 = scalar_lea.vmem %s0, %s224
      %p226 = scmp.lt.s32.totalorder %s18, 1
      %s227 = scalar_select %p226, %s18, 1
      %s228 = smul.addr %s227, 4
      %s229 = smul.addr %s228, 4
      %s230 = scalar_lea.vmem %s1, %s229
      %p231 = scmp.lt.s32.totalorder %s18, 1
      %s232 = scalar_select %p231, %s18, 1
      %p233 = scmp.lt.s32.totalorder %s19, 0
      %s234 = scalar_select %p233, %s19, 0
      %s235 = sadd.s32 %s234, %s232
      %s236 = smul.addr %s235, 4
      %s237 = scalar_lea.vmem %s2, %s236
      %p238 = scmp.lt.s32.totalorder %s18, 1
      %s239 = scalar_select %p238, %s18, 1
      %p240 = scmp.lt.s32.totalorder %s19, 0
      %s241 = scalar_select %p240, %s19, 0
      %s242 = sadd.s32 %s241, %s239
      %s243 = smul.addr %s242, 4
      %s244 = scalar_lea.vmem %s3, %s243
      %v246 = vld [vmem:[%s237] sm:$0xf]
      %v247 = vunpack.c.l.bf16 %v246
      %v248 = vld [vmem:[%s225] sm:$0xf]
      %v249 = vld [vmem:[%s230] sm:$0xf]
      %v250 = vld [vmem:[%s230 + $0x8] sm:$0xf]
      %v251 = vld [vmem:[%s230 + $0x4] sm:$0xf]
      %v252 = vld [vmem:[%s230 + $0xc] sm:$0xf]
      %v255 = vunpack.c.l.b16 %v249
      %v256 = vunpack.c.l.b16 %v250
      %v257 = vpack.c.b16 %v256, %v255
      %vm258 = vcmask 523264
      %v260 = vsel %vm258, %v248, 0
      %v263 = vsel %vm258, %v257, 0
      %265 = vmatprep.subr.bf16.mxu0 0
      %266 = vmatpush1.bf16.xpose.msra.mxu0 %v263
      %267 = vmatprep.subr.bf16.mxu0 0
      %268 = vmatpush1.bf16.xpose.msra.mxu0 0
      %269 = vmatprep.subr.bf16.mxu0 0
      %270 = vmatpush1.bf16.xpose.msra.mxu0 0
      %271 = vmatprep.subr.bf16.mxu0 0
      %272 = vmatpush1.bf16.xpose.msra.mxu0 0
      %273 = vmatprep.subr.bf16.mxu0 0
      %274 = vmatpush1.bf16.xpose.msra.mxu0 0
      %275 = vmatprep.subr.bf16.mxu0 0
      %276 = vmatpush1.bf16.xpose.msra.mxu0 0
      %277 = vmatprep.subr.bf16.mxu0 0
      %278 = vmatpush1.bf16.xpose.msra.mxu0 0
      %279 = vmatprep.subr.bf16.mxu0 0
      %280 = vmatpush1.bf16.xpose.msra.mxu0 0
      %281 = vmatprep.subr.bf16.mxu0 0
      %282 = vmatpush1.bf16.xpose.msra.mxu0 0
      %283 = vmatprep.subr.bf16.mxu0 0
      %284 = vmatpush1.bf16.xpose.msra.mxu0 0
      %285 = vmatprep.subr.bf16.mxu0 0
      %286 = vmatpush1.bf16.xpose.msra.mxu0 0
      %287 = vmatprep.subr.bf16.mxu0 0
      %288 = vmatpush1.bf16.xpose.msra.mxu0 0
      %289 = vmatprep.subr.bf16.mxu0 0
      %290 = vmatpush1.bf16.xpose.msra.mxu0 0
      %291 = vmatprep.subr.bf16.mxu0 0
      %292 = vmatpush1.bf16.xpose.msra.mxu0 0
      %293 = vmatprep.subr.bf16.mxu0 0
      %294 = vmatpush1.bf16.xpose.msra.mxu0 0
      %295 = vmatprep.subr.bf16.mxu0 0
      %296 = vmatpush1.bf16.xpose.msra.mxu0 0
      %297 = vmatprep.mubr.bf16.mxu0 0
      %298 = vmatmul.mubr.bf16.gmra.mrb[0].mxu0 %v260
      %v299 = vpop.f32.mrb[0].mxu0
      %v300 = vadd.f32 0.0, %v299
      %v301 = vpop.f32.mrb[0].mxu0
      %v302 = vpop.f32.mrb[0].mxu0
      %v303 = vpop.f32.mrb[0].mxu0
      %304 = vdwg.mxu0
      %v305 = vmul.f32 %v300, 0.125
      %v306 = vadd.f32 %v305, %v247
      %vm307 = vcmask 130048
      %v308 = vsel %vm307, %v306, -inf
      %309 = vmax.xlane.f32.xlu0 %v308
      %v310 = vpop.xlane.xlu0 %309
      %v311 = vsub.f32 %v306, %v310
      %v312 = vmul.f32 %v311, 1.442695
      %v313 = vpow.pop %v312
      %v314 = vsel %vm307, %v313, 0.0
      %315 = vadd.xlane.f32.xlu0 %v314
      %v316 = vpop.xlane.xlu0 %315
      %v317 = vpack.c.bf16 %v313, %v313
      %v320 = vunpack.c.l.b16 %v251
      %v321 = vunpack.c.l.b16 %v252
      %v322 = vpack.c.b16 %v321, %v320
      %v325 = vsel %vm307, %v317, 0
      %327 = vmatprep.subr.bf16.mxu0 0
      %328 = vmatpush1.bf16.msra.mxu0 %v322
      %329 = vmatprep.subr.bf16.mxu0 0
      %330 = vmatpush1.bf16.msra.mxu0 0
      %331 = vmatprep.subr.bf16.mxu0 0
      %332 = vmatpush1.bf16.msra.mxu0 0
      %333 = vmatprep.subr.bf16.mxu0 0
      %334 = vmatpush1.bf16.msra.mxu0 0
      %335 = vmatprep.subr.bf16.mxu0 0
      %336 = vmatpush1.bf16.msra.mxu0 0
      %337 = vmatprep.subr.bf16.mxu0 0
      %338 = vmatpush1.bf16.msra.mxu0 0
      %339 = vmatprep.subr.bf16.mxu0 0
      %340 = vmatpush1.bf16.msra.mxu0 0
      %341 = vmatprep.subr.bf16.mxu0 0
      %342 = vmatpush1.bf16.msra.mxu0 0
      %343 = vmatprep.subr.bf16.mxu0 0
      %344 = vmatpush1.bf16.msra.mxu0 0
      %345 = vmatprep.subr.bf16.mxu0 0
      %346 = vmatpush1.bf16.msra.mxu0 0
      %347 = vmatprep.subr.bf16.mxu0 0
      %348 = vmatpush1.bf16.msra.mxu0 0
      %349 = vmatprep.subr.bf16.mxu0 0
      %350 = vmatpush1.bf16.msra.mxu0 0
      %351 = vmatprep.subr.bf16.mxu0 0
      %352 = vmatpush1.bf16.msra.mxu0 0
      %353 = vmatprep.subr.bf16.mxu0 0
      %354 = vmatpush1.bf16.msra.mxu0 0
      %355 = vmatprep.subr.bf16.mxu0 0
      %356 = vmatpush1.bf16.msra.mxu0 0
      %357 = vmatprep.subr.bf16.mxu0 0
      %358 = vmatpush1.bf16.msra.mxu0 0
      %359 = vmatprep.mubr.bf16.mxu0 0
      %360 = vmatmul.mubr.bf16.gmra.mrb[0].mxu0 %v325
      %v361 = vpop.f32.mrb[0].mxu0
      %v362 = vadd.f32 0.0, %v361
      %v363 = vpop.f32.mrb[0].mxu0
      %v364 = vpop.f32.mrb[0].mxu0
      %v365 = vpop.f32.mrb[0].mxu0
      %366 = vdwg.mxu0
      %v367 = vrcp.pop %v316
      %v368 = vmul.f32 %v362, %v367
      %v369 = vpack.c.bf16 %v368, %v368
      %vm370 = vcmask 519168
      %371 = vst.msk [vmem:[%s244] sm:$0xf] %vm370, %v369
      %v372 = vld [vmem:[%s225] sm:$0xf]
      %v373 = vld [vmem:[%s230] sm:$0xf]
      %v374 = vld [vmem:[%s230 + $0x8] sm:$0xf]
      %v375 = vld [vmem:[%s230 + $0x4] sm:$0xf]
      %v376 = vld [vmem:[%s230 + $0xc] sm:$0xf]
      %v378 = vunpack.c.l.b16 %v372
      %v379 = vpack.c.b16 %v378, %v378
      %380 = vrot.lane.b32.xlu0 %v379, 64
      %v381 = vpop.permute.xlu0 %380
      %v384 = vunpack.c.l.b16 %v373
      %v385 = vunpack.c.l.b16 %v374
      %v386 = vpack.c.b16 %v385, %v384
      %387 = vrot.lane.b32.xlu0 %v386, 64
      %v388 = vpop.permute.xlu0 %387
      %v390 = vsel %vm258, %v381, 0
      %v393 = vsel %vm258, %v388, 0
      %395 = vmatprep.subr.bf16.mxu0 0
      %396 = vmatpush1.bf16.xpose.msra.mxu0 %v393
      %397 = vmatprep.subr.bf16.mxu0 0
      %398 = vmatpush1.bf16.xpose.msra.mxu0 0
      %399 = vmatprep.subr.bf16.mxu0 0
      %400 = vmatpush1.bf16.xpose.msra.mxu0 0
      %401 = vmatprep.subr.bf16.mxu0 0
      %402 = vmatpush1.bf16.xpose.msra.mxu0 0
      %403 = vmatprep.subr.bf16.mxu0 0
      %404 = vmatpush1.bf16.xpose.msra.mxu0 0
      %405 = vmatprep.subr.bf16.mxu0 0
      %406 = vmatpush1.bf16.xpose.msra.mxu0 0
      %407 = vmatprep.subr.bf16.mxu0 0
      %408 = vmatpush1.bf16.xpose.msra.mxu0 0
      %409 = vmatprep.subr.bf16.mxu0 0
      %410 = vmatpush1.bf16.xpose.msra.mxu0 0
      %411 = vmatprep.subr.bf16.mxu0 0
      %412 = vmatpush1.bf16.xpose.msra.mxu0 0
      %413 = vmatprep.subr.bf16.mxu0 0
      %414 = vmatpush1.bf16.xpose.msra.mxu0 0
      %415 = vmatprep.subr.bf16.mxu0 0
      %416 = vmatpush1.bf16.xpose.msra.mxu0 0
      %417 = vmatprep.subr.bf16.mxu0 0
      %418 = vmatpush1.bf16.xpose.msra.mxu0 0
      %419 = vmatprep.subr.bf16.mxu0 0
      %420 = vmatpush1.bf16.xpose.msra.mxu0 0
      %421 = vmatprep.subr.bf16.mxu0 0
      %422 = vmatpush1.bf16.xpose.msra.mxu0 0
      %423 = vmatprep.subr.bf16.mxu0 0
      %424 = vmatpush1.bf16.xpose.msra.mxu0 0
      %425 = vmatprep.subr.bf16.mxu0 0
      %426 = vmatpush1.bf16.xpose.msra.mxu0 0
      %427 = vmatprep.mubr.bf16.mxu0 0
      %428 = vmatmul.mubr.bf16.gmra.mrb[0].mxu0 %v390
      %v429 = vpop.f32.mrb[0].mxu0
      %v430 = vadd.f32 0.0, %v429
      %v431 = vpop.f32.mrb[0].mxu0
      %v432 = vpop.f32.mrb[0].mxu0
      %v433 = vpop.f32.mrb[0].mxu0
      %434 = vdwg.mxu0
      %v435 = vmul.f32 %v430, 0.125
      %v436 = vadd.f32 %v435, %v247
      %v437 = vsel %vm307, %v436, -inf
      %438 = vmax.xlane.f32.xlu0 %v437
      %v439 = vpop.xlane.xlu0 %438
      %v440 = vsub.f32 %v436, %v439
      %v441 = vmul.f32 %v440, 1.442695
      %v442 = vpow.pop %v441
      %v443 = vsel %vm307, %v442, 0.0
      %444 = vadd.xlane.f32.xlu0 %v443
      %v445 = vpop.xlane.xlu0 %444
      %v446 = vpack.c.bf16 %v442, %v442
      %v449 = vunpack.c.l.b16 %v375
      %v450 = vunpack.c.l.b16 %v376
      %v451 = vpack.c.b16 %v450, %v449
      %452 = vrot.lane.b32.xlu0 %v451, 64
      %v453 = vpop.permute.xlu0 %452
      %v456 = vsel %vm307, %v446, 0
      %458 = vmatprep.subr.bf16.mxu0 0
      %459 = vmatpush1.bf16.msra.mxu0 %v453
      %460 = vmatprep.subr.bf16.mxu0 0
      %461 = vmatpush1.bf16.msra.mxu0 0
      %462 = vmatprep.subr.bf16.mxu0 0
      %463 = vmatpush1.bf16.msra.mxu0 0
      %464 = vmatprep.subr.bf16.mxu0 0
      %465 = vmatpush1.bf16.msra.mxu0 0
      %466 = vmatprep.subr.bf16.mxu0 0
      %467 = vmatpush1.bf16.msra.mxu0 0
      %468 = vmatprep.subr.bf16.mxu0 0
      %469 = vmatpush1.bf16.msra.mxu0 0
      %470 = vmatprep.subr.bf16.mxu0 0
      %471 = vmatpush1.bf16.msra.mxu0 0
      %472 = vmatprep.subr.bf16.mxu0 0
      %473 = vmatpush1.bf16.msra.mxu0 0
      %474 = vmatprep.subr.bf16.mxu0 0
      %475 = vmatpush1.bf16.msra.mxu0 0
      %476 = vmatprep.subr.bf16.mxu0 0
      %477 = vmatpush1.bf16.msra.mxu0 0
      %478 = vmatprep.subr.bf16.mxu0 0
      %479 = vmatpush1.bf16.msra.mxu0 0
      %480 = vmatprep.subr.bf16.mxu0 0
      %481 = vmatpush1.bf16.msra.mxu0 0
      %482 = vmatprep.subr.bf16.mxu0 0
      %483 = vmatpush1.bf16.msra.mxu0 0
      %484 = vmatprep.subr.bf16.mxu0 0
      %485 = vmatpush1.bf16.msra.mxu0 0
      %486 = vmatprep.subr.bf16.mxu0 0
      %487 = vmatpush1.bf16.msra.mxu0 0
      %488 = vmatprep.subr.bf16.mxu0 0
      %489 = vmatpush1.bf16.msra.mxu0 0
      %490 = vmatprep.mubr.bf16.mxu0 0
      %491 = vmatmul.mubr.bf16.gmra.mrb[0].mxu0 %v456
      %v492 = vpop.f32.mrb[0].mxu0
      %v493 = vadd.f32 0.0, %v492
      %v494 = vpop.f32.mrb[0].mxu0
      %v495 = vpop.f32.mrb[0].mxu0
      %v496 = vpop.f32.mrb[0].mxu0
      %497 = vdwg.mxu0
      %v498 = vrcp.pop %v445
      %v499 = vmul.f32 %v493, %v498
      %v500 = vpack.c.bf16 %v499, %v499
      %v502 = vunpack.c.l.b16 %v500
      %v503 = vpack.c.b16 %v502, %v502
      %504 = vrot.lane.b32.xlu0 %v503, 64
      %v505 = vpop.permute.xlu0 %504
      %vm507 = vcmask 1043968
      %508 = vst.msk [vmem:[%s244] sm:$0xf] %vm507, %v505
      %p509 = scmp.lt.s32.totalorder %s18, 1
      %s510 = scalar_select %p509, %s18, 1
      %p511 = scmp.lt.s32.totalorder %s19, 0
      %s512 = scalar_select %p511, %s19, 0
      %s513 = sadd.s32 %s512, %s510
      %s514 = smul.addr %s513, 4
      %s515 = scalar_lea.vmem %s3, %s514
      // Predicated region
      $region33: #{decoder_trunk_forward.23} parent=31 // pred_check
        %p516 = pneg %p128
      $region34: #{decoder_trunk_forward.23} parent=31 // pred_check_branch
        %518 = sbr.rel (%p516) target = $region36
      $region35: #{decoder_trunk_forward.23} parent=31 // pred_region
        _
      $region36: #{decoder_trunk_forward.23} parent=31 // pred_fallthru
        _
    $region32: #{decoder_trunk_forward.23} parent=5 // pred_fallthru
      _
    %p519 = scmp.le.s32.totalorder 2, %s9
    // Predicated region
    $region37: #{decoder_trunk_forward.23} parent=5 // pred_check
      %p520 = pneg %p519
    $region38: #{decoder_trunk_forward.23} parent=5 // pred_check_branch
      %522 = sbr.rel (%p520) target = $region40
    $region39: #{decoder_trunk_forward.23} parent=5 // pred_region
      %s523 = ssub.s32 %s9, 2
      // Predicated region
      $region41: #{decoder_trunk_forward.23} parent=39 // pred_check
        %p524 = pneg %p134
      $region42: #{decoder_trunk_forward.23} parent=39 // pred_check_branch
        %526 = sbr.rel (%p524) target = $region44
      $region43: #{decoder_trunk_forward.23} parent=39 // pred_region
        %p527 = scmp.lt.s32.totalorder %s20, 1
        %s528 = scalar_select %p527, %s20, 1
        %p529 = scmp.lt.s32.totalorder %s21, 0
        %s530 = scalar_select %p529, %s21, 0
        %s531 = sadd.s32 %s530, %s528
        %s532 = smul.addr %s531, 4
        %s533 = scalar_lea.vmem %s3, %s532
      $region44: #{decoder_trunk_forward.23} parent=39 // pred_fallthru
        _
    $region40: #{decoder_trunk_forward.23} parent=5 // pred_fallthru
      _
  $region6: #{decoder_trunk_forward.23} parent=0 // loop_footer
    %s13 = sadd.s32 1, %s9
  $region7: #{decoder_trunk_forward.23} parent=0 // loop_footer_branch
    %8 = sbr.rel target = $region3
  $region8: #{decoder_trunk_forward.23} parent=0 // loop_exit
    _

// kernel: decoder_trunk_forward.25
$region0: #{decoder_trunk_forward.25}
  #allocation0 [shape = 'u32[]', space=smem, size = 0x4, offset = 0x4, fixed_abs, tag = 'smem constant byte address 0x4 - core index']
  #allocation1 [shape = 'u32[144,128]{1,0:T(1,128)}', space=vmem, size = 0x12000, scoped, tag = 'internal scratch']
  #allocation2 [shape = 'bf16[16,128]{1,0:T(16,128)(2,1)}', space=vmem, size = 0x1000, scoped, tag = 'scratch operand']
  %s0 = inlined_call_operand.vmem [shape: f32[16,128], index: 0, kind: input, shape index: {}]
  %s1 = inlined_call_operand.vmem [shape: f32[1,128], index: 1, kind: input, shape index: {}]
  %s2 = inlined_call_operand.vmem [shape: bf16[128,512], index: 2, kind: input, shape index: {}]
  %s3 = inlined_call_operand.vmem [shape: bf16[16,512], index: 3, kind: output, shape index: {}]
  %s4 = sld [smem:[#allocation0]]
  $region26: #{decoder_trunk_forward.25} parent=0
    _
  %s6 = ssub.s32 1, %s4
  %s7 = scalar_select 0, %s6, %s4
  // Predicated region
  $region2: #{decoder_trunk_forward.25} parent=0 // pred_check
    _
  $region3: #{decoder_trunk_forward.25} parent=0 // pred_check_branch
    %9 = sbr.rel (0) target = $region5
  $region4: #{decoder_trunk_forward.25} parent=0 // pred_region
    _
  $region5: #{decoder_trunk_forward.25} parent=0 // pred_fallthru
    _
  // Predicated region
  $region6: #{decoder_trunk_forward.25} parent=0 // pred_check
    _
  $region7: #{decoder_trunk_forward.25} parent=0 // pred_check_branch
    %11 = sbr.rel (0) target = $region9
  $region8: #{decoder_trunk_forward.25} parent=0 // pred_region
    _
  $region9: #{decoder_trunk_forward.25} parent=0 // pred_fallthru
    _
  // Predicated region
  $region10: #{decoder_trunk_forward.25} parent=0 // pred_check
    _
  $region11: #{decoder_trunk_forward.25} parent=0 // pred_check_branch
    %13 = sbr.rel (0) target = $region13
  $region12: #{decoder_trunk_forward.25} parent=0 // pred_region
    _
  $region13: #{decoder_trunk_forward.25} parent=0 // pred_fallthru
    _
  %p15 = scmp.eq.s32.totalorder 0, 0
  // Predicated region
  $region14: #{decoder_trunk_forward.25} parent=0 // pred_check
    %p16 = pneg %p15
  $region15: #{decoder_trunk_forward.25} parent=0 // pred_check_branch
    %18 = sbr.rel (%p16) target = $region17
  $region16: #{decoder_trunk_forward.25} parent=0 // pred_region
    %v19 = vld [vmem:[%s0] sm:$0xff]
    %v20 = vld [vmem:[%s0 + $0x8] sm:$0xff]
    %21 = vadd.xlane.f32.xlu0 %v19
    %v22 = vpop.xlane.xlu0 %21
    %23 = vadd.xlane.f32.xlu0 %v20
    %v24 = vpop.xlane.xlu0 %23
    %v25 = vrcp.pop 128.0
    %v26 = vmul.f32 %v22, %v25
    %v27 = vmul.f32 %v24, %v25
    %v28 = vsub.f32 %v19, %v26
    %v29 = vsub.f32 %v20, %v27
    %v30 = vmul.f32 %v28, %v28
    %v31 = vmul.f32 %v29, %v29
    %32 = vadd.xlane.f32.xlu0 %v30
    %v33 = vpop.xlane.xlu0 %32
    %34 = vadd.xlane.f32.xlu0 %v31
    %v35 = vpop.xlane.xlu0 %34
    %v36 = vmul.f32 %v33, %v25
    %v37 = vmul.f32 %v35, %v25
    %v38 = vadd.f32 %v36, 1e-06
    %v39 = vadd.f32 %v37, 1e-06
    %v40 = vrsqrt.pop %v38
    %v41 = vrsqrt.pop %v39
    %v42 = vmul.f32 %v28, %v40
    %v43 = vmul.f32 %v29, %v41
    %v44 = vld [vmem:[%s1] sm:$0x1]
    %v46 = vlaneseq
    %v47 = vshrl.u32 %v46, 7
    %v48 = vsub.s32 0, %v47
    %v49 = vrot.slane %v44, %v48
    %v51 = vmul.f32 %v42, %v49
    %v52 = vmul.f32 %v43, %v49
    %v53 = vpack.c.bf16 %v52, %v51
    %54 = vst [vmem:[#allocation2] sm:$0xff] %v53
  $region17: #{decoder_trunk_forward.25} parent=0 // pred_fallthru
    _
  %v55 = vld [vmem:[#allocation2] sm:$0xff]
  %v56 = vld [vmem:[%s2] sm:$0xff]
  %v57 = vld [vmem:[%s2 + $0x8] sm:$0xff]
  %v58 = vld [vmem:[%s2 + $0x10] sm:$0xff]
  %v59 = vld [vmem:[%s2 + $0x18] sm:$0xff]
  %v60 = vld [vmem:[%s2 + $0x20] sm:$0xff]
  %v61 = vld [vmem:[%s2 + $0x28] sm:$0xff]
  %v62 = vld [vmem:[%s2 + $0x30] sm:$0xff]
  %v63 = vld [vmem:[%s2 + $0x38] sm:$0xff]
  %v64 = vld [vmem:[%s2 + $0x40] sm:$0xff]
  %v65 = vld [vmem:[%s2 + $0x48] sm:$0xff]
  %v66 = vld [vmem:[%s2 + $0x50] sm:$0xff]
  %v67 = vld [vmem:[%s2 + $0x58] sm:$0xff]
  %v68 = vld [vmem:[%s2 + $0x60] sm:$0xff]
  %v69 = vld [vmem:[%s2 + $0x68] sm:$0xff]
  %v70 = vld [vmem:[%s2 + $0x70] sm:$0xff]
  %v71 = vld [vmem:[%s2 + $0x78] sm:$0xff]
  %v72 = vld [vmem:[%s2 + $0x80] sm:$0xff]
  %v73 = vld [vmem:[%s2 + $0x88] sm:$0xff]
  %v74 = vld [vmem:[%s2 + $0x90] sm:$0xff]
  %v75 = vld [vmem:[%s2 + $0x98] sm:$0xff]
  %v76 = vld [vmem:[%s2 + $0xa0] sm:$0xff]
  %v77 = vld [vmem:[%s2 + $0xa8] sm:$0xff]
  %v78 = vld [vmem:[%s2 + $0xb0] sm:$0xff]
  %v79 = vld [vmem:[%s2 + $0xb8] sm:$0xff]
  %v80 = vld [vmem:[%s2 + $0xc0] sm:$0xff]
  %v81 = vld [vmem:[%s2 + $0xc8] sm:$0xff]
  %v82 = vld [vmem:[%s2 + $0xd0] sm:$0xff]
  %v83 = vld [vmem:[%s2 + $0xd8] sm:$0xff]
  %v84 = vld [vmem:[%s2 + $0xe0] sm:$0xff]
  %v85 = vld [vmem:[%s2 + $0xe8] sm:$0xff]
  %v86 = vld [vmem:[%s2 + $0xf0] sm:$0xff]
  %v87 = vld [vmem:[%s2 + $0xf8] sm:$0xff]
  %v120 = vunpack.c.l.b16 %v56
  %v121 = vunpack.c.h.b16 %v56
  %v122 = vunpack.c.l.b16 %v57
  %v123 = vunpack.c.h.b16 %v57
  %v124 = vunpack.c.l.b16 %v58
  %v125 = vunpack.c.h.b16 %v58
  %v126 = vunpack.c.l.b16 %v59
  %v127 = vunpack.c.h.b16 %v59
  %v128 = vunpack.c.l.b16 %v60
  %v129 = vunpack.c.h.b16 %v60
  %v130 = vunpack.c.l.b16 %v61
  %v131 = vunpack.c.h.b16 %v61
  %v132 = vunpack.c.l.b16 %v62
  %v133 = vunpack.c.h.b16 %v62
  %v134 = vunpack.c.l.b16 %v63
  %v135 = vunpack.c.h.b16 %v63
  %v136 = vunpack.c.l.b16 %v64
  %v137 = vunpack.c.h.b16 %v64
  %v138 = vunpack.c.l.b16 %v65
  %v139 = vunpack.c.h.b16 %v65
  %v140 = vunpack.c.l.b16 %v66
  %v141 = vunpack.c.h.b16 %v66
  %v142 = vunpack.c.l.b16 %v67
  %v143 = vunpack.c.h.b16 %v67
  %v144 = vunpack.c.l.b16 %v68
  %v145 = vunpack.c.h.b16 %v68
  %v146 = vunpack.c.l.b16 %v69
  %v147 = vunpack.c.h.b16 %v69
  %v148 = vunpack.c.l.b16 %v70
  %v149 = vunpack.c.h.b16 %v70
  %v150 = vunpack.c.l.b16 %v71
  %v151 = vunpack.c.h.b16 %v71
  %v152 = vunpack.c.l.b16 %v72
  %v153 = vunpack.c.h.b16 %v72
  %v154 = vunpack.c.l.b16 %v73
  %v155 = vunpack.c.h.b16 %v73
  %v156 = vunpack.c.l.b16 %v74
  %v157 = vunpack.c.h.b16 %v74
  %v158 = vunpack.c.l.b16 %v75
  %v159 = vunpack.c.h.b16 %v75
  %v160 = vunpack.c.l.b16 %v76
  %v161 = vunpack.c.h.b16 %v76
  %v162 = vunpack.c.l.b16 %v77
  %v163 = vunpack.c.h.b16 %v77
  %v164 = vunpack.c.l.b16 %v78
  %v165 = vunpack.c.h.b16 %v78
  %v166 = vunpack.c.l.b16 %v79
  %v167 = vunpack.c.h.b16 %v79
  %v168 = vunpack.c.l.b16 %v80
  %v169 = vunpack.c.h.b16 %v80
  %v170 = vunpack.c.l.b16 %v81
  %v171 = vunpack.c.h.b16 %v81
  %v172 = vunpack.c.l.b16 %v82
  %v173 = vunpack.c.h.b16 %v82
  %v174 = vunpack.c.l.b16 %v83
  %v175 = vunpack.c.h.b16 %v83
  %v176 = vunpack.c.l.b16 %v84
  %v177 = vunpack.c.h.b16 %v84
  %v178 = vunpack.c.l.b16 %v85
  %v179 = vunpack.c.h.b16 %v85
  %v180 = vunpack.c.l.b16 %v86
  %v181 = vunpack.c.h.b16 %v86
  %v182 = vunpack.c.l.b16 %v87
  %v183 = vunpack.c.h.b16 %v87
  %v184 = vpack.c.b16 %v124, %v120
  %v185 = vpack.c.b16 %v125, %v121
  %v186 = vpack.c.b16 %v126, %v122
  %v187 = vpack.c.b16 %v127, %v123
  %v188 = vpack.c.b16 %v132, %v128
  %v189 = vpack.c.b16 %v133, %v129
  %v190 = vpack.c.b16 %v134, %v130
  %v191 = vpack.c.b16 %v135, %v131
  %v192 = vpack.c.b16 %v140, %v136
  %v193 = vpack.c.b16 %v141, %v137
  %v194 = vpack.c.b16 %v142, %v138
  %v195 = vpack.c.b16 %v143, %v139
  %v196 = vpack.c.b16 %v148, %v144
  %v197 = vpack.c.b16 %v149, %v145
  %v198 = vpack.c.b16 %v150, %v146
  %v199 = vpack.c.b16 %v151, %v147
  %v200 = vpack.c.b16 %v156, %v152
  %v201 = vpack.c.b16 %v157, %v153
  %v202 = vpack.c.b16 %v158, %v154
  %v203 = vpack.c.b16 %v159, %v155
  %v204 = vpack.c.b16 %v164, %v160
  %v205 = vpack.c.b16 %v165, %v161
  %v206 = vpack.c.b16 %v166, %v162
  %v207 = vpack.c.b16 %v167, %v163
  %v208 = vpack.c.b16 %v172, %v168
  %v209 = vpack.c.b16 %v173, %v169
  %v210 = vpack.c.b16 %v174, %v170
  %v211 = vpack.c.b16 %v175, %v171
  %v212 = vpack.c.b16 %v180, %v176
  %v213 = vpack.c.b16 %v181, %v177
  %v214 = vpack.c.b16 %v182, %v178
  %v215 = vpack.c.b16 %v183, %v179
  %248 = vmatprep.subr.bf16.mxu0 %v185
  %249 = vmatpush1.bf16.msra.mxu0 %v184
  %250 = vmatprep.subr.bf16.mxu0 %v189
  %251 = vmatpush1.bf16.msra.mxu0 %v188
  %252 = vmatprep.subr.bf16.mxu0 %v193
  %253 = vmatpush1.bf16.msra.mxu0 %v192
  %254 = vmatprep.subr.bf16.mxu0 %v197
  %255 = vmatpush1.bf16.msra.mxu0 %v196
  %256 = vmatprep.subr.bf16.mxu0 %v201
  %257 = vmatpush1.bf16.msra.mxu0 %v200
  %258 = vmatprep.subr.bf16.mxu0 %v205
  %259 = vmatpush1.bf16.msra.mxu0 %v204
  %260 = vmatprep.subr.bf16.mxu0 %v209
  %261 = vmatpush1.bf16.msra.mxu0 %v208
  %262 = vmatprep.subr.bf16.mxu0 %v213
  %263 = vmatpush1.bf16.msra.mxu0 %v212
  %264 = vmatprep.subr.bf16.mxu0 0
  %265 = vmatpush1.bf16.msra.mxu0 0
  %266 = vmatprep.subr.bf16.mxu0 0
  %267 = vmatpush1.bf16.msra.mxu0 0
  %268 = vmatprep.subr.bf16.mxu0 0
  %269 = vmatpush1.bf16.msra.mxu0 0
  %270 = vmatprep.subr.bf16.mxu0 0
  %271 = vmatpush1.bf16.msra.mxu0 0
  %272 = vmatprep.subr.bf16.mxu0 0
  %273 = vmatpush1.bf16.msra.mxu0 0
  %274 = vmatprep.subr.bf16.mxu0 0
  %275 = vmatpush1.bf16.msra.mxu0 0
  %276 = vmatprep.subr.bf16.mxu0 0
  %277 = vmatpush1.bf16.msra.mxu0 0
  %278 = vmatprep.subr.bf16.mxu0 0
  %279 = vmatpush1.bf16.msra.mxu0 0
  %280 = vmatprep.mubr.bf16.mxu0 0
  %281 = vmatmul.mubr.bf16.gmra.mrb[0].mxu0 %v55
  %v282 = vpop.f32.mrb[0].mxu0
  %v283 = vadd.f32 0.0, %v282
  %v284 = vpop.f32.mrb[0].mxu0
  %v285 = vadd.f32 0.0, %v284
  %v286 = vpop.f32.mrb[0].mxu0
  %v287 = vadd.f32 0.0, %v286
  %v288 = vpop.f32.mrb[0].mxu0
  %v289 = vadd.f32 0.0, %v288
  %290 = vdwg.mxu0
  %291 = vmatprep.subr.bf16.mxu0 %v187
  %292 = vmatpush1.bf16.msra.mxu0 %v186
  %293 = vmatprep.subr.bf16.mxu0 %v191
  %294 = vmatpush1.bf16.msra.mxu0 %v190
  %295 = vmatprep.subr.bf16.mxu0 %v195
  %296 = vmatpush1.bf16.msra.mxu0 %v194
  %297 = vmatprep.subr.bf16.mxu0 %v199
  %298 = vmatpush1.bf16.msra.mxu0 %v198
  %299 = vmatprep.subr.bf16.mxu0 %v203
  %300 = vmatpush1.bf16.msra.mxu0 %v202
  %301 = vmatprep.subr.bf16.mxu0 %v207
  %302 = vmatpush1.bf16.msra.mxu0 %v206
  %303 = vmatprep.subr.bf16.mxu0 %v211
  %304 = vmatpush1.bf16.msra.mxu0 %v210
  %305 = vmatprep.subr.bf16.mxu0 %v215
  %306 = vmatpush1.bf16.msra.mxu0 %v214
  %307 = vmatprep.subr.bf16.mxu0 0
  %308 = vmatpush1.bf16.msra.mxu0 0
  %309 = vmatprep.subr.bf16.mxu0 0
  %310 = vmatpush1.bf16.msra.mxu0 0
  %311 = vmatprep.subr.bf16.mxu0 0
  %312 = vmatpush1.bf16.msra.mxu0 0
  %313 = vmatprep.subr.bf16.mxu0 0
  %314 = vmatpush1.bf16.msra.mxu0 0
  %315 = vmatprep.subr.bf16.mxu0 0
  %316 = vmatpush1.bf16.msra.mxu0 0
  %317 = vmatprep.subr.bf16.mxu0 0
  %318 = vmatpush1.bf16.msra.mxu0 0
  %319 = vmatprep.subr.bf16.mxu0 0
  %320 = vmatpush1.bf16.msra.mxu0 0
  %321 = vmatprep.subr.bf16.mxu0 0
  %322 = vmatpush1.bf16.msra.mxu0 0
  %323 = vmatprep.mubr.bf16.mxu0 0
  %324 = vmatmul.mubr.bf16.gmra.mrb[0].mxu0 %v55
  %v325 = vpop.f32.mrb[0].mxu0
  %v326 = vadd.f32 0.0, %v325
  %v327 = vpop.f32.mrb[0].mxu0
  %v328 = vadd.f32 0.0, %v327
  %v329 = vpop.f32.mrb[0].mxu0
  %v330 = vadd.f32 0.0, %v329
  %v331 = vpop.f32.mrb[0].mxu0
  %v332 = vadd.f32 0.0, %v331
  %333 = vdwg.mxu0
  %v334 = vmul.f32 %v283, %v283
  %v335 = vmul.f32 %v285, %v285
  %v336 = vmul.f32 %v326, %v326
  %v337 = vmul.f32 %v328, %v328
  %v338 = vmul.f32 %v287, %v287
  %v339 = vmul.f32 %v289, %v289
  %v340 = vmul.f32 %v330, %v330
  %v341 = vmul.f32 %v332, %v332
  %v342 = vmul.f32 %v283, %v334
  %v343 = vmul.f32 %v285, %v335
  %v344 = vmul.f32 %v326, %v336
  %v345 = vmul.f32 %v328, %v337
  %v346 = vmul.f32 %v287, %v338
  %v347 = vmul.f32 %v289, %v339
  %v348 = vmul.f32 %v330, %v340
  %v349 = vmul.f32 %v332, %v341
  %v350 = vmul.f32 %v342, 0.044715
  %v351 = vmul.f32 %v343, 0.044715
  %v352 = vmul.f32 %v344, 0.044715
  %v353 = vmul.f32 %v345, 0.044715
  %v354 = vmul.f32 %v346, 0.044715
  %v355 = vmul.f32 %v347, 0.044715
  %v356 = vmul.f32 %v348, 0.044715
  %v357 = vmul.f32 %v349, 0.044715
  %v358 = vadd.f32 %v283, %v350
  %v359 = vadd.f32 %v285, %v351
  %v360 = vadd.f32 %v326, %v352
  %v361 = vadd.f32 %v328, %v353
  %v362 = vadd.f32 %v287, %v354
  %v363 = vadd.f32 %v289, %v355
  %v364 = vadd.f32 %v330, %v356
  %v365 = vadd.f32 %v332, %v357
  %v366 = vmul.f32 %v358, 0.7978846
  %v367 = vmul.f32 %v359, 0.7978846
  %v368 = vmul.f32 %v360, 0.7978846
  %v369 = vmul.f32 %v361, 0.7978846
  %v370 = vmul.f32 %v362, 0.7978846
  %v371 = vmul.f32 %v363, 0.7978846
  %v372 = vmul.f32 %v364, 0.7978846
  %v373 = vmul.f32 %v365, 0.7978846
  %v374 = vtanh.pop %v366
  %v375 = vtanh.pop %v367
  %v376 = vtanh.pop %v368
  %v377 = vtanh.pop %v369
  %v378 = vtanh.pop %v370
  %v379 = vtanh.pop %v371
  %v380 = vtanh.pop %v372
  %v381 = vtanh.pop %v373
  %v382 = vadd.f32 %v374, 1.0
  %v383 = vadd.f32 %v375, 1.0
  %v384 = vadd.f32 %v376, 1.0
  %v385 = vadd.f32 %v377, 1.0
  %v386 = vadd.f32 %v378, 1.0
  %v387 = vadd.f32 %v379, 1.0
  %v388 = vadd.f32 %v380, 1.0
  %v389 = vadd.f32 %v381, 1.0
  %v390 = vmul.f32 %v382, 0.5
  %v391 = vmul.f32 %v383, 0.5
  %v392 = vmul.f32 %v384, 0.5
  %v393 = vmul.f32 %v385, 0.5
  %v394 = vmul.f32 %v386, 0.5
  %v395 = vmul.f32 %v387, 0.5
  %v396 = vmul.f32 %v388, 0.5
  %v397 = vmul.f32 %v389, 0.5
  %v398 = vmul.f32 %v283, %v390
  %v399 = vmul.f32 %v285, %v391
  %v400 = vmul.f32 %v326, %v392
  %v401 = vmul.f32 %v328, %v393
  %v402 = vmul.f32 %v287, %v394
  %v403 = vmul.f32 %v289, %v395
  %v404 = vmul.f32 %v330, %v396
  %v405 = vmul.f32 %v332, %v397
  %v406 = vpack.c.bf16 %v402, %v398
  %v407 = vpack.c.bf16 %v403, %v399
  %v408 = vpack.c.bf16 %v404, %v400
  %v409 = vpack.c.bf16 %v405, %v401
  %v414 = vunpack.c.l.b16 %v406
  %v415 = vunpack.c.l.b16 %v407
  %v416 = vunpack.c.l.b16 %v408
  %v417 = vunpack.c.l.b16 %v409
  %v418 = vunpack.c.h.b16 %v406
  %v419 = vunpack.c.h.b16 %v407
  %v420 = vunpack.c.h.b16 %v408
  %v421 = vunpack.c.h.b16 %v409
  %v422 = vpack.c.b16 %v415, %v414
  %v423 = vpack.c.b16 %v417, %v416
  %v424 = vpack.c.b16 %v419, %v418
  %v425 = vpack.c.b16 %v421, %v420
  %430 = vst [vmem:[%s3] sm:$0xff] %v422
  %431 = vst [vmem:[%s3 + $0x8] sm:$0xff] %v423
  %432 = vst [vmem:[%s3 + $0x10] sm:$0xff] %v424
  %433 = vst [vmem:[%s3 + $0x18] sm:$0xff] %v425
  // Predicated region
  $region18: #{decoder_trunk_forward.25} parent=0 // pred_check
    _
  $region19: #{decoder_trunk_forward.25} parent=0 // pred_check_branch
    %435 = sbr.rel (0) target = $region21
  $region20: #{decoder_trunk_forward.25} parent=0 // pred_region
    _
  $region21: #{decoder_trunk_forward.25} parent=0 // pred_fallthru
    _
  // Predicated region
  $region22: #{decoder_trunk_forward.25} parent=0 // pred_check
    _
  $region23: #{decoder_trunk_forward.25} parent=0 // pred_check_branch
    %437 = sbr.rel (0) target = $region25
  $region24: #{decoder_trunk_forward.25} parent=0 // pred_region
    _
  $region25: #{decoder_trunk_forward.25} parent=0 // pred_fallthru
    _

// kernel: decoder_trunk_forward.26
$region0: #{decoder_trunk_forward.26}
  #allocation0 [shape = 'u32[]', space=smem, size = 0x4, offset = 0x4, fixed_abs, tag = 'smem constant byte address 0x4 - core index']
  #allocation1 [shape = 'u32[144,128]{1,0:T(1,128)}', space=vmem, size = 0x12000, scoped, tag = 'internal scratch']
  %s0 = inlined_call_operand.vmem [shape: bf16[16,512], index: 0, kind: input, shape index: {}]
  %s1 = inlined_call_operand.vmem [shape: bf16[512,128], index: 1, kind: input, shape index: {}]
  %s2 = inlined_call_operand.vmem [shape: f32[16,128], index: 2, kind: input, shape index: {}]
  %s3 = inlined_call_operand.vmem [shape: f32[16,128], index: 3, kind: output, shape index: {}]
  %s4 = sld [smem:[#allocation0]]
  $region22: #{decoder_trunk_forward.26} parent=0
    _
  %s6 = ssub.s32 1, %s4
  %s7 = scalar_select 0, %s6, %s4
  // Predicated region
  $region2: #{decoder_trunk_forward.26} parent=0 // pred_check
    _
  $region3: #{decoder_trunk_forward.26} parent=0 // pred_check_branch
    %9 = sbr.rel (0) target = $region5
  $region4: #{decoder_trunk_forward.26} parent=0 // pred_region
    _
  $region5: #{decoder_trunk_forward.26} parent=0 // pred_fallthru
    _
  // Predicated region
  $region6: #{decoder_trunk_forward.26} parent=0 // pred_check
    _
  $region7: #{decoder_trunk_forward.26} parent=0 // pred_check_branch
    %11 = sbr.rel (0) target = $region9
  $region8: #{decoder_trunk_forward.26} parent=0 // pred_region
    _
  $region9: #{decoder_trunk_forward.26} parent=0 // pred_fallthru
    _
  // Predicated region
  $region10: #{decoder_trunk_forward.26} parent=0 // pred_check
    _
  $region11: #{decoder_trunk_forward.26} parent=0 // pred_check_branch
    %13 = sbr.rel (0) target = $region13
  $region12: #{decoder_trunk_forward.26} parent=0 // pred_region
    _
  $region13: #{decoder_trunk_forward.26} parent=0 // pred_fallthru
    _
  %v15 = vld [vmem:[%s0] sm:$0xff]
  %v16 = vld [vmem:[%s0 + $0x8] sm:$0xff]
  %v17 = vld [vmem:[%s0 + $0x10] sm:$0xff]
  %v18 = vld [vmem:[%s0 + $0x18] sm:$0xff]
  %v19 = vld [vmem:[%s1] sm:$0xf]
  %v20 = vld [vmem:[%s1 + $0x4] sm:$0xf]
  %v21 = vld [vmem:[%s1 + $0x8] sm:$0xf]
  %v22 = vld [vmem:[%s1 + $0xc] sm:$0xf]
  %v23 = vld [vmem:[%s1 + $0x10] sm:$0xf]
  %v24 = vld [vmem:[%s1 + $0x14] sm:$0xf]
  %v25 = vld [vmem:[%s1 + $0x18] sm:$0xf]
  %v26 = vld [vmem:[%s1 + $0x1c] sm:$0xf]
  %v27 = vld [vmem:[%s1 + $0x20] sm:$0xf]
  %v28 = vld [vmem:[%s1 + $0x24] sm:$0xf]
  %v29 = vld [vmem:[%s1 + $0x28] sm:$0xf]
  %v30 = vld [vmem:[%s1 + $0x2c] sm:$0xf]
  %v31 = vld [vmem:[%s1 + $0x30] sm:$0xf]
  %v32 = vld [vmem:[%s1 + $0x34] sm:$0xf]
  %v33 = vld [vmem:[%s1 + $0x38] sm:$0xf]
  %v34 = vld [vmem:[%s1 + $0x3c] sm:$0xf]
  %v35 = vld [vmem:[%s1 + $0x40] sm:$0xf]
  %v36 = vld [vmem:[%s1 + $0x44] sm:$0xf]
  %v37 = vld [vmem:[%s1 + $0x48] sm:$0xf]
  %v38 = vld [vmem:[%s1 + $0x4c] sm:$0xf]
  %v39 = vld [vmem:[%s1 + $0x50] sm:$0xf]
  %v40 = vld [vmem:[%s1 + $0x54] sm:$0xf]
  %v41 = vld [vmem:[%s1 + $0x58] sm:$0xf]
  %v42 = vld [vmem:[%s1 + $0x5c] sm:$0xf]
  %v43 = vld [vmem:[%s1 + $0x60] sm:$0xf]
  %v44 = vld [vmem:[%s1 + $0x64] sm:$0xf]
  %v45 = vld [vmem:[%s1 + $0x68] sm:$0xf]
  %v46 = vld [vmem:[%s1 + $0x6c] sm:$0xf]
  %v47 = vld [vmem:[%s1 + $0x70] sm:$0xf]
  %v48 = vld [vmem:[%s1 + $0x74] sm:$0xf]
  %v49 = vld [vmem:[%s1 + $0x78] sm:$0xf]
  %v50 = vld [vmem:[%s1 + $0x7c] sm:$0xf]
  %v51 = vld [vmem:[%s1 + $0x80] sm:$0xf]
  %v52 = vld [vmem:[%s1 + $0x84] sm:$0xf]
  %v53 = vld [vmem:[%s1 + $0x88] sm:$0xf]
  %v54 = vld [vmem:[%s1 + $0x8c] sm:$0xf]
  %v55 = vld [vmem:[%s1 + $0x90] sm:$0xf]
  %v56 = vld [vmem:[%s1 + $0x94] sm:$0xf]
  %v57 = vld [vmem:[%s1 + $0x98] sm:$0xf]
  %v58 = vld [vmem:[%s1 + $0x9c] sm:$0xf]
  %v59 = vld [vmem:[%s1 + $0xa0] sm:$0xf]
  %v60 = vld [vmem:[%s1 + $0xa4] sm:$0xf]
  %v61 = vld [vmem:[%s1 + $0xa8] sm:$0xf]
  %v62 = vld [vmem:[%s1 + $0xac] sm:$0xf]
  %v63 = vld [vmem:[%s1 + $0xb0] sm:$0xf]
  %v64 = vld [vmem:[%s1 + $0xb4] sm:$0xf]
  %v65 = vld [vmem:[%s1 + $0xb8] sm:$0xf]
  %v66 = vld [vmem:[%s1 + $0xbc] sm:$0xf]
  %v67 = vld [vmem:[%s1 + $0xc0] sm:$0xf]
  %v68 = vld [vmem:[%s1 + $0xc4] sm:$0xf]
  %v69 = vld [vmem:[%s1 + $0xc8] sm:$0xf]
  %v70 = vld [vmem:[%s1 + $0xcc] sm:$0xf]
  %v71 = vld [vmem:[%s1 + $0xd0] sm:$0xf]
  %v72 = vld [vmem:[%s1 + $0xd4] sm:$0xf]
  %v73 = vld [vmem:[%s1 + $0xd8] sm:$0xf]
  %v74 = vld [vmem:[%s1 + $0xdc] sm:$0xf]
  %v75 = vld [vmem:[%s1 + $0xe0] sm:$0xf]
  %v76 = vld [vmem:[%s1 + $0xe4] sm:$0xf]
  %v77 = vld [vmem:[%s1 + $0xe8] sm:$0xf]
  %v78 = vld [vmem:[%s1 + $0xec] sm:$0xf]
  %v79 = vld [vmem:[%s1 + $0xf0] sm:$0xf]
  %v80 = vld [vmem:[%s1 + $0xf4] sm:$0xf]
  %v81 = vld [vmem:[%s1 + $0xf8] sm:$0xf]
  %v82 = vld [vmem:[%s1 + $0xfc] sm:$0xf]
  %v87 = vunpack.c.l.b16 %v15
  %v88 = vunpack.c.h.b16 %v15
  %v89 = vunpack.c.l.b16 %v16
  %v90 = vunpack.c.h.b16 %v16
  %v91 = vunpack.c.l.b16 %v17
  %v92 = vunpack.c.h.b16 %v17
  %v93 = vunpack.c.l.b16 %v18
  %v94 = vunpack.c.h.b16 %v18
  %v95 = vpack.c.b16 %v91, %v87
  %v96 = vpack.c.b16 %v92, %v88
  %v97 = vpack.c.b16 %v93, %v89
  %v98 = vpack.c.b16 %v94, %v90
  %v167 = vunpack.c.l.b16 %v19
  %v168 = vunpack.c.l.b16 %v20
  %v169 = vunpack.c.l.b16 %v21
  %v170 = vunpack.c.l.b16 %v22
  %v171 = vunpack.c.l.b16 %v23
  %v172 = vunpack.c.l.b16 %v24
  %v173 = vunpack.c.l.b16 %v25
  %v174 = vunpack.c.l.b16 %v26
  %v175 = vunpack.c.l.b16 %v27
  %v176 = vunpack.c.l.b16 %v28
  %v177 = vunpack.c.l.b16 %v29
  %v178 = vunpack.c.l.b16 %v30
  %v179 = vunpack.c.l.b16 %v31
  %v180 = vunpack.c.l.b16 %v32
  %v181 = vunpack.c.l.b16 %v33
  %v182 = vunpack.c.l.b16 %v34
  %v183 = vunpack.c.l.b16 %v35
  %v184 = vunpack.c.l.b16 %v36
  %v185 = vunpack.c.l.b16 %v37
  %v186 = vunpack.c.l.b16 %v38
  %v187 = vunpack.c.l.b16 %v39
  %v188 = vunpack.c.l.b16 %v40
  %v189 = vunpack.c.l.b16 %v41
  %v190 = vunpack.c.l.b16 %v42
  %v191 = vunpack.c.l.b16 %v43
  %v192 = vunpack.c.l.b16 %v44
  %v193 = vunpack.c.l.b16 %v45
  %v194 = vunpack.c.l.b16 %v46
  %v195 = vunpack.c.l.b16 %v47
  %v196 = vunpack.c.l.b16 %v48
  %v197 = vunpack.c.l.b16 %v49
  %v198 = vunpack.c.l.b16 %v50
  %v199 = vunpack.c.l.b16 %v51
  %v200 = vunpack.c.l.b16 %v52
  %v201 = vunpack.c.l.b16 %v53
  %v202 = vunpack.c.l.b16 %v54
  %v203 = vunpack.c.l.b16 %v55
  %v204 = vunpack.c.l.b16 %v56
  %v205 = vunpack.c.l.b16 %v57
  %v206 = vunpack.c.l.b16 %v58
  %v207 = vunpack.c.l.b16 %v59
  %v208 = vunpack.c.l.b16 %v60
  %v209 = vunpack.c.l.b16 %v61
  %v210 = vunpack.c.l.b16 %v62
  %v211 = vunpack.c.l.b16 %v63
  %v212 = vunpack.c.l.b16 %v64
  %v213 = vunpack.c.l.b16 %v65
  %v214 = vunpack.c.l.b16 %v66
  %v215 = vunpack.c.l.b16 %v67
  %v216 = vunpack.c.l.b16 %v68
  %v217 = vunpack.c.l.b16 %v69
  %v218 = vunpack.c.l.b16 %v70
  %v219 = vunpack.c.l.b16 %v71
  %v220 = vunpack.c.l.b16 %v72
  %v221 = vunpack.c.l.b16 %v73
  %v222 = vunpack.c.l.b16 %v74
  %v223 = vunpack.c.l.b16 %v75
  %v224 = vunpack.c.l.b16 %v76
  %v225 = vunpack.c.l.b16 %v77
  %v226 = vunpack.c.l.b16 %v78
  %v227 = vunpack.c.l.b16 %v79
  %v228 = vunpack.c.l.b16 %v80
  %v229 = vunpack.c.l.b16 %v81
  %v230 = vunpack.c.l.b16 %v82
  %v231 = vpack.c.b16 %v168, %v167
  %v232 = vpack.c.b16 %v170, %v169
  %v233 = vpack.c.b16 %v172, %v171
  %v234 = vpack.c.b16 %v174, %v173
  %v235 = vpack.c.b16 %v176, %v175
  %v236 = vpack.c.b16 %v178, %v177
  %v237 = vpack.c.b16 %v180, %v179
  %v238 = vpack.c.b16 %v182, %v181
  %v239 = vpack.c.b16 %v184, %v183
  %v240 = vpack.c.b16 %v186, %v185
  %v241 = vpack.c.b16 %v188, %v187
  %v242 = vpack.c.b16 %v190, %v189
  %v243 = vpack.c.b16 %v192, %v191
  %v244 = vpack.c.b16 %v194, %v193
  %v245 = vpack.c.b16 %v196, %v195
  %v246 = vpack.c.b16 %v198, %v197
  %v247 = vpack.c.b16 %v200, %v199
  %v248 = vpack.c.b16 %v202, %v201
  %v249 = vpack.c.b16 %v204, %v203
  %v250 = vpack.c.b16 %v206, %v205
  %v251 = vpack.c.b16 %v208, %v207
  %v252 = vpack.c.b16 %v210, %v209
  %v253 = vpack.c.b16 %v212, %v211
  %v254 = vpack.c.b16 %v214, %v213
  %v255 = vpack.c.b16 %v216, %v215
  %v256 = vpack.c.b16 %v218, %v217
  %v257 = vpack.c.b16 %v220, %v219
  %v258 = vpack.c.b16 %v222, %v221
  %v259 = vpack.c.b16 %v224, %v223
  %v260 = vpack.c.b16 %v226, %v225
  %v261 = vpack.c.b16 %v228, %v227
  %v262 = vpack.c.b16 %v230, %v229
  %295 = vmatprep.subr.bf16.mxu0 0
  %296 = vmatpush1.bf16.msra.mxu0 %v231
  %297 = vmatprep.subr.bf16.mxu0 0
  %298 = vmatpush1.bf16.msra.mxu0 %v232
  %299 = vmatprep.subr.bf16.mxu0 0
  %300 = vmatpush1.bf16.msra.mxu0 %v233
  %301 = vmatprep.subr.bf16.mxu0 0
  %302 = vmatpush1.bf16.msra.mxu0 %v234
  %303 = vmatprep.subr.bf16.mxu0 0
  %304 = vmatpush1.bf16.msra.mxu0 %v235
  %305 = vmatprep.subr.bf16.mxu0 0
  %306 = vmatpush1.bf16.msra.mxu0 %v236
  %307 = vmatprep.subr.bf16.mxu0 0
  %308 = vmatpush1.bf16.msra.mxu0 %v237
  %309 = vmatprep.subr.bf16.mxu0 0
  %310 = vmatpush1.bf16.msra.mxu0 %v238
  %311 = vmatprep.subr.bf16.mxu0 0
  %312 = vmatpush1.bf16.msra.mxu0 %v239
  %313 = vmatprep.subr.bf16.mxu0 0
  %314 = vmatpush1.bf16.msra.mxu0 %v240
  %315 = vmatprep.subr.bf16.mxu0 0
  %316 = vmatpush1.bf16.msra.mxu0 %v241
  %317 = vmatprep.subr.bf16.mxu0 0
  %318 = vmatpush1.bf16.msra.mxu0 %v242
  %319 = vmatprep.subr.bf16.mxu0 0
  %320 = vmatpush1.bf16.msra.mxu0 %v243
  %321 = vmatprep.subr.bf16.mxu0 0
  %322 = vmatpush1.bf16.msra.mxu0 %v244
  %323 = vmatprep.subr.bf16.mxu0 0
  %324 = vmatpush1.bf16.msra.mxu0 %v245
  %325 = vmatprep.subr.bf16.mxu0 0
  %326 = vmatpush1.bf16.msra.mxu0 %v246
  %327 = vmatprep.mubr.bf16.mxu0 %v96
  %328 = vmatmul.mubr.bf16.gmra.mrb[0].mxu0 %v95
  %v329 = vpop.f32.mrb[0].mxu0
  %v330 = vadd.f32 0.0, %v329
  %v331 = vpop.f32.mrb[0].mxu0
  %v332 = vpop.f32.mrb[0].mxu0
  %v333 = vadd.f32 0.0, %v332
  %v334 = vpop.f32.mrb[0].mxu0
  %335 = vdwg.mxu0
  %336 = vmatprep.subr.bf16.mxu0 0
  %337 = vmatpush1.bf16.msra.mxu0 %v247
  %338 = vmatprep.subr.bf16.mxu0 0
  %339 = vmatpush1.bf16.msra.mxu0 %v248
  %340 = vmatprep.subr.bf16.mxu0 0
  %341 = vmatpush1.bf16.msra.mxu0 %v249
  %342 = vmatprep.subr.bf16.mxu0 0
  %343 = vmatpush1.bf16.msra.mxu0 %v250
  %344 = vmatprep.subr.bf16.mxu0 0
  %345 = vmatpush1.bf16.msra.mxu0 %v251
  %346 = vmatprep.subr.bf16.mxu0 0
  %347 = vmatpush1.bf16.msra.mxu0 %v252
  %348 = vmatprep.subr.bf16.mxu0 0
  %349 = vmatpush1.bf16.msra.mxu0 %v253
  %350 = vmatprep.subr.bf16.mxu0 0
  %351 = vmatpush1.bf16.msra.mxu0 %v254
  %352 = vmatprep.subr.bf16.mxu0 0
  %353 = vmatpush1.bf16.msra.mxu0 %v255
  %354 = vmatprep.subr.bf16.mxu0 0
  %355 = vmatpush1.bf16.msra.mxu0 %v256
  %356 = vmatprep.subr.bf16.mxu0 0
  %357 = vmatpush1.bf16.msra.mxu0 %v257
  %358 = vmatprep.subr.bf16.mxu0 0
  %359 = vmatpush1.bf16.msra.mxu0 %v258
  %360 = vmatprep.subr.bf16.mxu0 0
  %361 = vmatpush1.bf16.msra.mxu0 %v259
  %362 = vmatprep.subr.bf16.mxu0 0
  %363 = vmatpush1.bf16.msra.mxu0 %v260
  %364 = vmatprep.subr.bf16.mxu0 0
  %365 = vmatpush1.bf16.msra.mxu0 %v261
  %366 = vmatprep.subr.bf16.mxu0 0
  %367 = vmatpush1.bf16.msra.mxu0 %v262
  %368 = vmatprep.mubr.bf16.mxu0 %v98
  %369 = vmatmul.mubr.bf16.gmra.mrb[0].mxu0 %v97
  %v370 = vpop.f32.mrb[0].mxu0
  %v371 = vadd.f32 %v330, %v370
  %v372 = vpop.f32.mrb[0].mxu0
  %v373 = vpop.f32.mrb[0].mxu0
  %v374 = vadd.f32 %v333, %v373
  %v375 = vpop.f32.mrb[0].mxu0
  %376 = vdwg.mxu0
  %v377 = vld [vmem:[%s2] sm:$0xff]
  %v378 = vld [vmem:[%s2 + $0x8] sm:$0xff]
  %v379 = vadd.f32 %v377, %v371
  %v380 = vadd.f32 %v378, %v374
  %381 = vst [vmem:[%s3] sm:$0xff] %v379
  %382 = vst [vmem:[%s3 + $0x8] sm:$0xff] %v380
  // Predicated region
  $region14: #{decoder_trunk_forward.26} parent=0 // pred_check
    _
  $region15: #{decoder_trunk_forward.26} parent=0 // pred_check_branch
    %384 = sbr.rel (0) target = $region17
  $region16: #{decoder_trunk_forward.26} parent=0 // pred_region
    _
  $region17: #{decoder_trunk_forward.26} parent=0 // pred_fallthru
    _
  // Predicated region
  $region18: #{decoder_trunk_forward.26} parent=0 // pred_check
    _
  $region19: #{decoder_trunk_forward.26} parent=0 // pred_check_branch
    %386 = sbr.rel (0) target = $region21
  $region20: #{decoder_trunk_forward.26} parent=0 // pred_region
    _
  $region21: #{decoder_trunk_forward.26} parent=0 // pred_fallthru
    _

// kernel: decoder_trunk_forward.35
$region0: #{decoder_trunk_forward.35}
  #allocation0 [shape = 'u32[]', space=smem, size = 0x4, offset = 0x4, fixed_abs, tag = 'smem constant byte address 0x4 - core index']
  #allocation1 [shape = 'u32[144,128]{1,0:T(1,128)}', space=vmem, size = 0x12000, scoped, tag = 'internal scratch']
  %s0 = inlined_call_operand.vmem [shape: bf16[16,512], index: 0, kind: input, shape index: {}]
  %s1 = inlined_call_operand.vmem [shape: bf16[512,128], index: 1, kind: input, shape index: {}]
  %s2 = inlined_call_operand.vmem [shape: f32[16,128], index: 2, kind: input, shape index: {}]
  %s3 = inlined_call_operand.hbm [shape: f32[16,128], index: 3, kind: output, shape index: {}]
  %s4 = sld [smem:[#allocation0]]
  $region22: #{decoder_trunk_forward.35} parent=0
    _
  %s6 = ssub.s32 1, %s4
  %s7 = scalar_select 0, %s6, %s4
  $region1: #{decoder_trunk_forward.35} parent=0
    #allocation2 [shape = 'u8[8192]{0}', space=vmem, size = 0x2000, scoped, tag = 'output window, operand 0, single buffered']
    #allocation3 [shape = 's32[1]{0}', space=sflag, size = 0x4, scoped, tag = 'scoped memory for decoder_trunk_forward.35']
    %8 = vsyncpa [#allocation3], 0
    // Predicated region
    $region2: #{decoder_trunk_forward.35} parent=1 // pred_check
      _
    $region3: #{decoder_trunk_forward.35} parent=1 // pred_check_branch
      %10 = sbr.rel (0) target = $region5
    $region4: #{decoder_trunk_forward.35} parent=1 // pred_region
      _
    $region5: #{decoder_trunk_forward.35} parent=1 // pred_fallthru
      _
    // Predicated region
    $region6: #{decoder_trunk_forward.35} parent=1 // pred_check
      _
    $region7: #{decoder_trunk_forward.35} parent=1 // pred_check_branch
      %12 = sbr.rel (0) target = $region9
    $region8: #{decoder_trunk_forward.35} parent=1 // pred_region
      _
    $region9: #{decoder_trunk_forward.35} parent=1 // pred_fallthru
      _
    // Predicated region
    $region10: #{decoder_trunk_forward.35} parent=1 // pred_check
      _
    $region11: #{decoder_trunk_forward.35} parent=1 // pred_check_branch
      %14 = sbr.rel (0) target = $region13
    $region12: #{decoder_trunk_forward.35} parent=1 // pred_region
      _
    $region13: #{decoder_trunk_forward.35} parent=1 // pred_fallthru
      _
    %v16 = vld [vmem:[%s0] sm:$0xff]
    %v17 = vld [vmem:[%s0 + $0x8] sm:$0xff]
    %v18 = vld [vmem:[%s0 + $0x10] sm:$0xff]
    %v19 = vld [vmem:[%s0 + $0x18] sm:$0xff]
    %v20 = vld [vmem:[%s1] sm:$0xf]
    %v21 = vld [vmem:[%s1 + $0x4] sm:$0xf]
    %v22 = vld [vmem:[%s1 + $0x8] sm:$0xf]
    %v23 = vld [vmem:[%s1 + $0xc] sm:$0xf]
    %v24 = vld [vmem:[%s1 + $0x10] sm:$0xf]
    %v25 = vld [vmem:[%s1 + $0x14] sm:$0xf]
    %v26 = vld [vmem:[%s1 + $0x18] sm:$0xf]
    %v27 = vld [vmem:[%s1 + $0x1c] sm:$0xf]
    %v28 = vld [vmem:[%s1 + $0x20] sm:$0xf]
    %v29 = vld [vmem:[%s1 + $0x24] sm:$0xf]
    %v30 = vld [vmem:[%s1 + $0x28] sm:$0xf]
    %v31 = vld [vmem:[%s1 + $0x2c] sm:$0xf]
    %v32 = vld [vmem:[%s1 + $0x30] sm:$0xf]
    %v33 = vld [vmem:[%s1 + $0x34] sm:$0xf]
    %v34 = vld [vmem:[%s1 + $0x38] sm:$0xf]
    %v35 = vld [vmem:[%s1 + $0x3c] sm:$0xf]
    %v36 = vld [vmem:[%s1 + $0x40] sm:$0xf]
    %v37 = vld [vmem:[%s1 + $0x44] sm:$0xf]
    %v38 = vld [vmem:[%s1 + $0x48] sm:$0xf]
    %v39 = vld [vmem:[%s1 + $0x4c] sm:$0xf]
    %v40 = vld [vmem:[%s1 + $0x50] sm:$0xf]
    %v41 = vld [vmem:[%s1 + $0x54] sm:$0xf]
    %v42 = vld [vmem:[%s1 + $0x58] sm:$0xf]
    %v43 = vld [vmem:[%s1 + $0x5c] sm:$0xf]
    %v44 = vld [vmem:[%s1 + $0x60] sm:$0xf]
    %v45 = vld [vmem:[%s1 + $0x64] sm:$0xf]
    %v46 = vld [vmem:[%s1 + $0x68] sm:$0xf]
    %v47 = vld [vmem:[%s1 + $0x6c] sm:$0xf]
    %v48 = vld [vmem:[%s1 + $0x70] sm:$0xf]
    %v49 = vld [vmem:[%s1 + $0x74] sm:$0xf]
    %v50 = vld [vmem:[%s1 + $0x78] sm:$0xf]
    %v51 = vld [vmem:[%s1 + $0x7c] sm:$0xf]
    %v52 = vld [vmem:[%s1 + $0x80] sm:$0xf]
    %v53 = vld [vmem:[%s1 + $0x84] sm:$0xf]
    %v54 = vld [vmem:[%s1 + $0x88] sm:$0xf]
    %v55 = vld [vmem:[%s1 + $0x8c] sm:$0xf]
    %v56 = vld [vmem:[%s1 + $0x90] sm:$0xf]
    %v57 = vld [vmem:[%s1 + $0x94] sm:$0xf]
    %v58 = vld [vmem:[%s1 + $0x98] sm:$0xf]
    %v59 = vld [vmem:[%s1 + $0x9c] sm:$0xf]
    %v60 = vld [vmem:[%s1 + $0xa0] sm:$0xf]
    %v61 = vld [vmem:[%s1 + $0xa4] sm:$0xf]
    %v62 = vld [vmem:[%s1 + $0xa8] sm:$0xf]
    %v63 = vld [vmem:[%s1 + $0xac] sm:$0xf]
    %v64 = vld [vmem:[%s1 + $0xb0] sm:$0xf]
    %v65 = vld [vmem:[%s1 + $0xb4] sm:$0xf]
    %v66 = vld [vmem:[%s1 + $0xb8] sm:$0xf]
    %v67 = vld [vmem:[%s1 + $0xbc] sm:$0xf]
    %v68 = vld [vmem:[%s1 + $0xc0] sm:$0xf]
    %v69 = vld [vmem:[%s1 + $0xc4] sm:$0xf]
    %v70 = vld [vmem:[%s1 + $0xc8] sm:$0xf]
    %v71 = vld [vmem:[%s1 + $0xcc] sm:$0xf]
    %v72 = vld [vmem:[%s1 + $0xd0] sm:$0xf]
    %v73 = vld [vmem:[%s1 + $0xd4] sm:$0xf]
    %v74 = vld [vmem:[%s1 + $0xd8] sm:$0xf]
    %v75 = vld [vmem:[%s1 + $0xdc] sm:$0xf]
    %v76 = vld [vmem:[%s1 + $0xe0] sm:$0xf]
    %v77 = vld [vmem:[%s1 + $0xe4] sm:$0xf]
    %v78 = vld [vmem:[%s1 + $0xe8] sm:$0xf]
    %v79 = vld [vmem:[%s1 + $0xec] sm:$0xf]
    %v80 = vld [vmem:[%s1 + $0xf0] sm:$0xf]
    %v81 = vld [vmem:[%s1 + $0xf4] sm:$0xf]
    %v82 = vld [vmem:[%s1 + $0xf8] sm:$0xf]
    %v83 = vld [vmem:[%s1 + $0xfc] sm:$0xf]
    %v88 = vunpack.c.l.b16 %v16
    %v89 = vunpack.c.h.b16 %v16
    %v90 = vunpack.c.l.b16 %v17
    %v91 = vunpack.c.h.b16 %v17
    %v92 = vunpack.c.l.b16 %v18
    %v93 = vunpack.c.h.b16 %v18
    %v94 = vunpack.c.l.b16 %v19
    %v95 = vunpack.c.h.b16 %v19
    %v96 = vpack.c.b16 %v92, %v88
    %v97 = vpack.c.b16 %v93, %v89
    %v98 = vpack.c.b16 %v94, %v90
    %v99 = vpack.c.b16 %v95, %v91
    %v168 = vunpack.c.l.b16 %v20
    %v169 = vunpack.c.l.b16 %v21
    %v170 = vunpack.c.l.b16 %v22
    %v171 = vunpack.c.l.b16 %v23
    %v172 = vunpack.c.l.b16 %v24
    %v173 = vunpack.c.l.b16 %v25
    %v174 = vunpack.c.l.b16 %v26
    %v175 = vunpack.c.l.b16 %v27
    %v176 = vunpack.c.l.b16 %v28
    %v177 = vunpack.c.l.b16 %v29
    %v178 = vunpack.c.l.b16 %v30
    %v179 = vunpack.c.l.b16 %v31
    %v180 = vunpack.c.l.b16 %v32
    %v181 = vunpack.c.l.b16 %v33
    %v182 = vunpack.c.l.b16 %v34
    %v183 = vunpack.c.l.b16 %v35
    %v184 = vunpack.c.l.b16 %v36
    %v185 = vunpack.c.l.b16 %v37
    %v186 = vunpack.c.l.b16 %v38
    %v187 = vunpack.c.l.b16 %v39
    %v188 = vunpack.c.l.b16 %v40
    %v189 = vunpack.c.l.b16 %v41
    %v190 = vunpack.c.l.b16 %v42
    %v191 = vunpack.c.l.b16 %v43
    %v192 = vunpack.c.l.b16 %v44
    %v193 = vunpack.c.l.b16 %v45
    %v194 = vunpack.c.l.b16 %v46
    %v195 = vunpack.c.l.b16 %v47
    %v196 = vunpack.c.l.b16 %v48
    %v197 = vunpack.c.l.b16 %v49
    %v198 = vunpack.c.l.b16 %v50
    %v199 = vunpack.c.l.b16 %v51
    %v200 = vunpack.c.l.b16 %v52
    %v201 = vunpack.c.l.b16 %v53
    %v202 = vunpack.c.l.b16 %v54
    %v203 = vunpack.c.l.b16 %v55
    %v204 = vunpack.c.l.b16 %v56
    %v205 = vunpack.c.l.b16 %v57
    %v206 = vunpack.c.l.b16 %v58
    %v207 = vunpack.c.l.b16 %v59
    %v208 = vunpack.c.l.b16 %v60
    %v209 = vunpack.c.l.b16 %v61
    %v210 = vunpack.c.l.b16 %v62
    %v211 = vunpack.c.l.b16 %v63
    %v212 = vunpack.c.l.b16 %v64
    %v213 = vunpack.c.l.b16 %v65
    %v214 = vunpack.c.l.b16 %v66
    %v215 = vunpack.c.l.b16 %v67
    %v216 = vunpack.c.l.b16 %v68
    %v217 = vunpack.c.l.b16 %v69
    %v218 = vunpack.c.l.b16 %v70
    %v219 = vunpack.c.l.b16 %v71
    %v220 = vunpack.c.l.b16 %v72
    %v221 = vunpack.c.l.b16 %v73
    %v222 = vunpack.c.l.b16 %v74
    %v223 = vunpack.c.l.b16 %v75
    %v224 = vunpack.c.l.b16 %v76
    %v225 = vunpack.c.l.b16 %v77
    %v226 = vunpack.c.l.b16 %v78
    %v227 = vunpack.c.l.b16 %v79
    %v228 = vunpack.c.l.b16 %v80
    %v229 = vunpack.c.l.b16 %v81
    %v230 = vunpack.c.l.b16 %v82
    %v231 = vunpack.c.l.b16 %v83
    %v232 = vpack.c.b16 %v169, %v168
    %v233 = vpack.c.b16 %v171, %v170
    %v234 = vpack.c.b16 %v173, %v172
    %v235 = vpack.c.b16 %v175, %v174
    %v236 = vpack.c.b16 %v177, %v176
    %v237 = vpack.c.b16 %v179, %v178
    %v238 = vpack.c.b16 %v181, %v180
    %v239 = vpack.c.b16 %v183, %v182
    %v240 = vpack.c.b16 %v185, %v184
    %v241 = vpack.c.b16 %v187, %v186
    %v242 = vpack.c.b16 %v189, %v188
    %v243 = vpack.c.b16 %v191, %v190
    %v244 = vpack.c.b16 %v193, %v192
    %v245 = vpack.c.b16 %v195, %v194
    %v246 = vpack.c.b16 %v197, %v196
    %v247 = vpack.c.b16 %v199, %v198
    %v248 = vpack.c.b16 %v201, %v200
    %v249 = vpack.c.b16 %v203, %v202
    %v250 = vpack.c.b16 %v205, %v204
    %v251 = vpack.c.b16 %v207, %v206
    %v252 = vpack.c.b16 %v209, %v208
    %v253 = vpack.c.b16 %v211, %v210
    %v254 = vpack.c.b16 %v213, %v212
    %v255 = vpack.c.b16 %v215, %v214
    %v256 = vpack.c.b16 %v217, %v216
    %v257 = vpack.c.b16 %v219, %v218
    %v258 = vpack.c.b16 %v221, %v220
    %v259 = vpack.c.b16 %v223, %v222
    %v260 = vpack.c.b16 %v225, %v224
    %v261 = vpack.c.b16 %v227, %v226
    %v262 = vpack.c.b16 %v229, %v228
    %v263 = vpack.c.b16 %v231, %v230
    %296 = vmatprep.subr.bf16.mxu0 0
    %297 = vmatpush1.bf16.msra.mxu0 %v232
    %298 = vmatprep.subr.bf16.mxu0 0
    %299 = vmatpush1.bf16.msra.mxu0 %v233
    %300 = vmatprep.subr.bf16.mxu0 0
    %301 = vmatpush1.bf16.msra.mxu0 %v234
    %302 = vmatprep.subr.bf16.mxu0 0
    %303 = vmatpush1.bf16.msra.mxu0 %v235
    %304 = vmatprep.subr.bf16.mxu0 0
    %305 = vmatpush1.bf16.msra.mxu0 %v236
    %306 = vmatprep.subr.bf16.mxu0 0
    %307 = vmatpush1.bf16.msra.mxu0 %v237
    %308 = vmatprep.subr.bf16.mxu0 0
    %309 = vmatpush1.bf16.msra.mxu0 %v238
    %310 = vmatprep.subr.bf16.mxu0 0
    %311 = vmatpush1.bf16.msra.mxu0 %v239
    %312 = vmatprep.subr.bf16.mxu0 0
    %313 = vmatpush1.bf16.msra.mxu0 %v240
    %314 = vmatprep.subr.bf16.mxu0 0
    %315 = vmatpush1.bf16.msra.mxu0 %v241
    %316 = vmatprep.subr.bf16.mxu0 0
    %317 = vmatpush1.bf16.msra.mxu0 %v242
    %318 = vmatprep.subr.bf16.mxu0 0
    %319 = vmatpush1.bf16.msra.mxu0 %v243
    %320 = vmatprep.subr.bf16.mxu0 0
    %321 = vmatpush1.bf16.msra.mxu0 %v244
    %322 = vmatprep.subr.bf16.mxu0 0
    %323 = vmatpush1.bf16.msra.mxu0 %v245
    %324 = vmatprep.subr.bf16.mxu0 0
    %325 = vmatpush1.bf16.msra.mxu0 %v246
    %326 = vmatprep.subr.bf16.mxu0 0
    %327 = vmatpush1.bf16.msra.mxu0 %v247
    %328 = vmatprep.mubr.bf16.mxu0 %v97
    %329 = vmatmul.mubr.bf16.gmra.mrb[0].mxu0 %v96
    %v330 = vpop.f32.mrb[0].mxu0
    %v331 = vadd.f32 0.0, %v330
    %v332 = vpop.f32.mrb[0].mxu0
    %v333 = vpop.f32.mrb[0].mxu0
    %v334 = vadd.f32 0.0, %v333
    %v335 = vpop.f32.mrb[0].mxu0
    %336 = vdwg.mxu0
    %337 = vmatprep.subr.bf16.mxu0 0
    %338 = vmatpush1.bf16.msra.mxu0 %v248
    %339 = vmatprep.subr.bf16.mxu0 0
    %340 = vmatpush1.bf16.msra.mxu0 %v249
    %341 = vmatprep.subr.bf16.mxu0 0
    %342 = vmatpush1.bf16.msra.mxu0 %v250
    %343 = vmatprep.subr.bf16.mxu0 0
    %344 = vmatpush1.bf16.msra.mxu0 %v251
    %345 = vmatprep.subr.bf16.mxu0 0
    %346 = vmatpush1.bf16.msra.mxu0 %v252
    %347 = vmatprep.subr.bf16.mxu0 0
    %348 = vmatpush1.bf16.msra.mxu0 %v253
    %349 = vmatprep.subr.bf16.mxu0 0
    %350 = vmatpush1.bf16.msra.mxu0 %v254
    %351 = vmatprep.subr.bf16.mxu0 0
    %352 = vmatpush1.bf16.msra.mxu0 %v255
    %353 = vmatprep.subr.bf16.mxu0 0
    %354 = vmatpush1.bf16.msra.mxu0 %v256
    %355 = vmatprep.subr.bf16.mxu0 0
    %356 = vmatpush1.bf16.msra.mxu0 %v257
    %357 = vmatprep.subr.bf16.mxu0 0
    %358 = vmatpush1.bf16.msra.mxu0 %v258
    %359 = vmatprep.subr.bf16.mxu0 0
    %360 = vmatpush1.bf16.msra.mxu0 %v259
    %361 = vmatprep.subr.bf16.mxu0 0
    %362 = vmatpush1.bf16.msra.mxu0 %v260
    %363 = vmatprep.subr.bf16.mxu0 0
    %364 = vmatpush1.bf16.msra.mxu0 %v261
    %365 = vmatprep.subr.bf16.mxu0 0
    %366 = vmatpush1.bf16.msra.mxu0 %v262
    %367 = vmatprep.subr.bf16.mxu0 0
    %368 = vmatpush1.bf16.msra.mxu0 %v263
    %369 = vmatprep.mubr.bf16.mxu0 %v99
    %370 = vmatmul.mubr.bf16.gmra.mrb[0].mxu0 %v98
    %v371 = vpop.f32.mrb[0].mxu0
    %v372 = vadd.f32 %v331, %v371
    %v373 = vpop.f32.mrb[0].mxu0
    %v374 = vpop.f32.mrb[0].mxu0
    %v375 = vadd.f32 %v334, %v374
    %v376 = vpop.f32.mrb[0].mxu0
    %377 = vdwg.mxu0
    %v378 = vld [vmem:[%s2] sm:$0xff]
    %v379 = vld [vmem:[%s2 + $0x8] sm:$0xff]
    %v380 = vadd.f32 %v378, %v372
    %v381 = vadd.f32 %v379, %v375
    %382 = vst [vmem:[#allocation2] sm:$0xff] %v380
    %383 = vst [vmem:[#allocation2 + $0x8] sm:$0xff] %v381
    // Predicated region
    $region14: #{decoder_trunk_forward.35} parent=1 // pred_check
      _
    $region15: #{decoder_trunk_forward.35} parent=1 // pred_check_branch
      %385 = sbr.rel (0) target = $region17
    $region16: #{decoder_trunk_forward.35} parent=1 // pred_region
      %s387 = ssub.s32 256, 256
      %388 = vsyncadd [#allocation3], %s387
      %s389 = sshll.u32 [#allocation2], 4
      %s390 = int_to_ptr.vmem [resolvable:$true] %s389
      %395 = dma.vmem_to_hbm [thread:$0]  %s390, 256, %s3, [#allocation3], 128, 128, 8
    $region17: #{decoder_trunk_forward.35} parent=1 // pred_fallthru
      _
    // Predicated region
    $region18: #{decoder_trunk_forward.35} parent=1 // pred_check
      _
    $region19: #{decoder_trunk_forward.35} parent=1 // pred_check_branch
      %397 = sbr.rel (0) target = $region21
    $region20: #{decoder_trunk_forward.35} parent=1 // pred_region
      %398 = dma.done [#allocation3], 256
    $region21: #{decoder_trunk_forward.35} parent=1 // pred_fallthru
      _
    %399 = vsyncpa [#allocation3], 1

</llo_original>
